<compile_context>
chip_gen: v7x
topology: tpu7x:2x2x1
jax: 0.10.0
libtpu: 0.0.40
codegen_flags: <defaults>
</compile_context>

<pallas_src>
import functools

import jax
import jax.numpy as jnp
from jax.experimental import pallas as pl
from jax.experimental.pallas import tpu as pltpu

EPS = 1e-5     # nn.BatchNorm2d default
LANES = 128    # TPU lane width; channels are padded to a multiple of this

_CP = pltpu.CompilerParams(
    dimension_semantics=("parallel", "parallel"),
    vmem_limit_bytes=32 * 1024 * 1024,   # explicit, safe on v5e/v6e/v7x
)


# ------------------------------ Pallas kernels -------------------------------

def _conv_mm_kernel(x_ref, w_ref, y_ref, s_ref, q_ref):
    """y = x @ w on one (1, th, wo, K) row-tile + per-channel BN-stats epilogue."""
    _, th, wo, k = x_ref.shape
    cpo = y_ref.shape[-1]
    lhs = x_ref[0].astype(jnp.bfloat16).reshape(th * wo, k)
    y = jnp.dot(lhs, w_ref[...], preferred_element_type=jnp.float32)
    y_ref[...] = y.reshape(1, th, wo, cpo).astype(y_ref.dtype)
    s_ref[...] = jnp.sum(y, axis=0).reshape(1, 1, 1, cpo)
    q_ref[...] = jnp.sum(y * y, axis=0).reshape(1, 1, 1, cpo)


def _conv_mm_dual_kernel(x_ref, w_ref, y1_ref, ys_ref, s1_ref, q1_ref,
                         ss_ref, qs_ref):
    """Fused conv1 (9 taps folded into K) + 1x1 projection shortcut.

    w_ref packs [w1_folded | ws_embedded] along the output-channel axis so one
    MXU matmul yields both tiles; BN stats for both come from the f32 result.
    """
    _, th, wo, k = x_ref.shape
    cpo = y1_ref.shape[-1]
    lhs = x_ref[0].astype(jnp.bfloat16).reshape(th * wo, k)
    y = jnp.dot(lhs, w_ref[...], preferred_element_type=jnp.float32)
    y1 = y[:, :cpo]
    ys = y[:, cpo:]
    y1_ref[...] = y1.reshape(1, th, wo, cpo).astype(y1_ref.dtype)
    ys_ref[...] = ys.reshape(1, th, wo, cpo).astype(ys_ref.dtype)
    s1_ref[...] = jnp.sum(y1, axis=0).reshape(1, 1, 1, cpo)
    q1_ref[...] = jnp.sum(y1 * y1, axis=0).reshape(1, 1, 1, cpo)
    ss_ref[...] = jnp.sum(ys, axis=0).reshape(1, 1, 1, cpo)
    qs_ref[...] = jnp.sum(ys * ys, axis=0).reshape(1, 1, 1, cpo)


def _conv1_phase_kernel(xph_ref, w_ref, y_ref, s_ref, q_ref, *, stride):
    """3x3/stride conv for one output row-tile from the phase-split input slab.

    The three kx taps of each ky are folded into the contraction dim
    (K = 3*Cin_p): 3 MXU matmuls per tile instead of 9.  The per-image slab is
    VMEM-resident across the row-tile grid axis; rows are picked with pl.ds.
    """
    _, th, wo, cpo = y_ref.shape
    cpi = xph_ref.shape[-1]
    row0 = pl.program_id(1) * th
    acc = jnp.zeros((th * wo, cpo), jnp.float32)
    for ky in range(3):
        parts = []
        for kx in range(3):
            p = (ky % stride) * stride + (kx % stride)
            oy, ox = ky // stride, kx // stride
            parts.append(xph_ref[0, p, pl.ds(row0 + oy, th), ox:ox + wo, :])
        lhs = jnp.concatenate(parts, axis=-1).reshape(th * wo, 3 * cpi)
        acc = acc + jnp.dot(lhs, w_ref[ky], preferred_element_type=jnp.float32)
    y_ref[...] = acc.reshape(1, th, wo, cpo).astype(y_ref.dtype)
    s_ref[...] = jnp.sum(acc, axis=0).reshape(1, 1, 1, cpo)
    q_ref[...] = jnp.sum(acc * acc, axis=0).reshape(1, 1, 1, cpo)


def _bnrelu_conv2_kernel(y1_ref, sc_ref, bi_ref, w_ref, y_ref, s_ref, q_ref,
                         hbuf):
    """Fused BN1(scale/bias) + ReLU + 3x3/stride-1 conv + BN2-stats epilogue.

    One output row-tile per grid step.  The normalized hidden rows (tile plus a
    one-row halo above/below) are written once as bf16 into a small VMEM slab;
    the zero column halo is folded into full-width aligned stores, so no full
    slab zeroing and no 1-wide masked column stores are needed.
    """
    _, th, wo, cpo = y_ref.shape
    cph = hbuf.shape[-1]
    r = pl.program_id(1)
    nrt = pl.num_programs(1)
    row0 = r * th

    def bn_relu(rows):                                   # rows: (k, wo, cph)
        return jnp.maximum(rows * sc_ref[...] + bi_ref[...], 0.0).astype(hbuf.dtype)

    def pad_cols(rows):                                  # -> (k, wo + 2, cph)
        zc = jnp.zeros((rows.shape[0], 1, cph), hbuf.dtype)
        return jnp.concatenate([zc, rows, zc], axis=1)

    zero_row = jnp.zeros((1, wo + 2, cph), hbuf.dtype)

    # interior rows of this tile (full-width store, column halo already zero)
    hbuf[1:1 + th, :, :] = pad_cols(bn_relu(y1_ref[0, pl.ds(row0, th), :, :]))

    # one-row halos from the neighbouring tiles; image-border rows stay zero
    @pl.when(r > 0)
    def _():
        hbuf[0:1, :, :] = pad_cols(bn_relu(y1_ref[0, pl.ds(row0 - 1, 1), :, :]))

    @pl.when(r == 0)
    def _():
        hbuf[0:1, :, :] = zero_row

    @pl.when(r < nrt - 1)
    def _():
        hbuf[th + 1:th + 2, :, :] = pad_cols(
            bn_relu(y1_ref[0, pl.ds(row0 + th, 1), :, :]))

    @pl.when(r == nrt - 1)
    def _():
        hbuf[th + 1:th + 2, :, :] = zero_row

    # 3x3 conv as 3 matmuls with the kx taps folded into K = 3*Cp
    acc = jnp.zeros((th * wo, cpo), jnp.float32)
    for ky in range(3):
        lhs = jnp.concatenate(
            [hbuf[ky:ky + th, kx:kx + wo, :] for kx in range(3)],
            axis=-1).reshape(th * wo, 3 * cph)
        acc = acc + jnp.dot(lhs, w_ref[ky], preferred_element_type=jnp.float32)
    y_ref[...] = acc.reshape(1, th, wo, cpo).astype(y_ref.dtype)
    s_ref[...] = jnp.sum(acc, axis=0).reshape(1, 1, 1, cpo)
    q_ref[...] = jnp.sum(acc * acc, axis=0).reshape(1, 1, 1, cpo)


def _bn_add_relu_kernel(y2_ref, sc2_ref, bi2_ref, ys_ref, scs_ref, bis_ref,
                        o_ref):
    """out = relu((y2*scale2 + bias2) + (ys*scale_s + bias_s)) on native tiles."""
    res = y2_ref[...].astype(jnp.float32) * sc2_ref[...] + bi2_ref[...]
    sc = ys_ref[...].astype(jnp.float32) * scs_ref[...] + bis_ref[...]
    o_ref[...] = jnp.maximum(res + sc, 0.0)


# ----------------------------- kernel wrappers -------------------------------

def conv_mm(x4, w, th, out_dtype):
    n, ho, wo, k = x4.shape
    cpo = w.shape[-1]
    nrt = ho // th
    stats = jax.ShapeDtypeStruct((n, nrt, 1, cpo), jnp.float32)
    tile = lambda i, r: (i, r, 0, 0)
    return pl.pallas_call(
        _conv_mm_kernel,
        out_shape=(jax.ShapeDtypeStruct((n, ho, wo, cpo), out_dtype),
                   stats, stats),
        grid_spec=pltpu.PrefetchScalarGridSpec(
            num_scalar_prefetch=0, grid=(n, nrt),
            in_specs=[pl.BlockSpec((1, th, wo, k), tile),
                      pl.BlockSpec((k, cpo), lambda i, r: (0, 0))],
            out_specs=(pl.BlockSpec((1, th, wo, cpo), tile),
                       pl.BlockSpec((1, 1, 1, cpo), tile),
                       pl.BlockSpec((1, 1, 1, cpo), tile))),
        compiler_params=_CP,
    )(x4, w)


def conv1_fold_dual(xcol, wcat, th):
    n, ho, wo, k = xcol.shape
    cpo = wcat.shape[-1] // 2
    nrt = ho // th
    stats = jax.ShapeDtypeStruct((n, nrt, 1, cpo), jnp.float32)
    tile = lambda i, r: (i, r, 0, 0)
    big = pl.BlockSpec((1, th, wo, cpo), tile)
    st = pl.BlockSpec((1, 1, 1, cpo), tile)
    return pl.pallas_call(
        _conv_mm_dual_kernel,
        out_shape=(jax.ShapeDtypeStruct((n, ho, wo, cpo), jnp.bfloat16),  # y1
                   jax.ShapeDtypeStruct((n, ho, wo, cpo), jnp.float32),   # ys
                   stats, stats, stats, stats),
        grid_spec=pltpu.PrefetchScalarGridSpec(
            num_scalar_prefetch=0, grid=(n, nrt),
            in_specs=[pl.BlockSpec((1, th, wo, k), tile),
                      pl.BlockSpec((k, 2 * cpo), lambda i, r: (0, 0))],
            out_specs=(big, big, st, st, st, st)),
        compiler_params=_CP,
    )(xcol, wcat)


def conv1_phase(xph, w1f, stride, ho, wo, th):
    n, ss, hq, wq, cpi = xph.shape
    cpo = w1f.shape[-1]
    nrt = ho // th
    stats = jax.ShapeDtypeStruct((n, nrt, 1, cpo), jnp.float32)
    tile = lambda i, r: (i, r, 0, 0)
    kern = functools.partial(_conv1_phase_kernel, stride=stride)
    return pl.pallas_call(
        kern,
        out_shape=(jax.ShapeDtypeStruct((n, ho, wo, cpo), jnp.bfloat16),
                   stats, stats),
        grid_spec=pltpu.PrefetchScalarGridSpec(
            num_scalar_prefetch=0, grid=(n, nrt),
            in_specs=[
                # whole phase-split image stays VMEM-resident across row tiles
                pl.BlockSpec((1, ss, hq, wq, cpi), lambda i, r: (i, 0, 0, 0, 0)),
                pl.BlockSpec((3, 3 * cpi, cpo), lambda i, r: (0, 0, 0)),
            ],
            out_specs=(pl.BlockSpec((1, th, wo, cpo), tile),
                       pl.BlockSpec((1, 1, 1, cpo), tile),
                       pl.BlockSpec((1, 1, 1, cpo), tile))),
        compiler_params=_CP,
    )(xph, w1f)


def bnrelu_conv2(y1, scale1, bias1, w2f, th):
    n, ho, wo, cpo = y1.shape
    nrt = ho // th
    stats = jax.ShapeDtypeStruct((n, nrt, 1, cpo), jnp.float32)
    tile = lambda i, r: (i, r, 0, 0)
    vec = pl.BlockSpec((1, cpo), lambda i, r: (0, 0))
    return pl.pallas_call(
        _bnrelu_conv2_kernel,
        out_shape=(jax.ShapeDtypeStruct((n, ho, wo, cpo), jnp.float32),
                   stats, stats),
        grid_spec=pltpu.PrefetchScalarGridSpec(
            num_scalar_prefetch=0, grid=(n, nrt),
            in_specs=[pl.BlockSpec((1, ho, wo, cpo), lambda i, r: (i, 0, 0, 0)),
                      vec, vec,
                      pl.BlockSpec((3, 3 * cpo, cpo), lambda i, r: (0, 0, 0))],
            out_specs=(pl.BlockSpec((1, th, wo, cpo), tile),
                       pl.BlockSpec((1, 1, 1, cpo), tile),
                       pl.BlockSpec((1, 1, 1, cpo), tile)),
            scratch_shapes=[pltpu.VMEM((th + 2, wo + 2, cpo), jnp.bfloat16)]),
        compiler_params=_CP,
    )(y1, scale1, bias1, w2f)


def bn_add_relu(y2, sc2, bi2, ys, scs, bis, th):
    n, ho, wo, cpo = y2.shape
    nrt = ho // th
    tile = lambda i, r: (i, r, 0, 0)
    big = pl.BlockSpec((1, th, wo, cpo), tile)
    vec = pl.BlockSpec((1, cpo), lambda i, r: (0, 0))
    return pl.pallas_call(
        _bn_add_relu_kernel,
        out_shape=jax.ShapeDtypeStruct((n, ho, wo, cpo), jnp.float32),
        grid_spec=pltpu.PrefetchScalarGridSpec(
            num_scalar_prefetch=0, grid=(n, nrt),
            in_specs=[big, vec, vec, big, vec, vec],
            out_specs=big),
        compiler_params=_CP,
    )(y2, sc2, bi2, ys, scs, bis)


# -------------------------------- JAX glue -----------------------------------

def _round_up(v, m):
    return ((v + m - 1) // m) * m


def _row_tile(ho, wo, max_rows):
    """Largest divisor of ho whose (rows*wo, Cp) f32 accumulator stays small."""
    best = 1
    for t in range(1, ho + 1):
        if ho % t == 0 and t * wo <= max_rows:
            best = t
    return best


def _pad_vec(v, cp):
    v = v.reshape(1, -1).astype(jnp.float32)
    return jnp.pad(v, ((0, 0), (0, cp - v.shape[1])))


def _fold_w3x3(w, cpi, cpo):
    """(3,3,ci,co) -> (3, 3*cpi, cpo) bf16, kx folded into the contraction dim."""
    kh, kw, ci, co = w.shape
    wp = jnp.pad(w, ((0, 0), (0, 0), (0, cpi - ci), (0, cpo - co)))
    return wp.reshape(kh, kw * cpi, cpo).astype(jnp.bfloat16)


def _fold_w_small(w, k, cpo):
    """(3,3,ci,co) -> (k, cpo) bf16 with all 9 taps folded into K (small Cin)."""
    kh, kw, ci, co = w.shape
    wf = w.reshape(kh * kw * ci, co)
    wf = jnp.pad(wf, ((0, k - kh * kw * ci), (0, cpo - co)))
    return wf.astype(jnp.bfloat16)


def _embed_ws_small(ws, cin, k, cpo):
    """1x1 weight embedded at the centre-tap rows of the folded-K layout."""
    w = ws.reshape(ws.shape[-2], ws.shape[-1])            # (cin, cout)
    co = w.shape[-1]
    w = jnp.pad(w, ((4 * cin, k - 5 * cin), (0, cpo - co)))
    return w.astype(jnp.bfloat16)


def _pad_w1x1(w, cpi, cpo):
    ci, co = w.shape[-2], w.shape[-1]
    wp = jnp.pad(w.reshape(ci, co), ((0, cpi - ci), (0, cpo - co)))
    return wp.astype(jnp.bfloat16)


def _im2col_small(x, stride, ho, wo, k):
    """Lane-dense im2col for small Cin: channels hold the 9 taps (9*Cin -> k)."""
    n, h, w_, cin = x.shape
    xp = jnp.pad(x, ((0, 0), (1, 1), (1, 1), (0, 0)))
    taps = []
    for ky in range(3):
        for kx in range(3):
            taps.append(xp[:, ky:ky + stride * (ho - 1) + 1:stride,
                           kx:kx + stride * (wo - 1) + 1:stride, :])
    col = jnp.concatenate(taps, axis=-1)                   # (n, ho, wo, 9*cin)
    col = jnp.pad(col, ((0, 0), (0, 0), (0, 0), (0, k - 9 * cin)))
    return col.astype(jnp.bfloat16)


def _phase_split(xc, stride):
    """Pad spatially by 1 and split into stride x stride phase planes (bf16)."""
    n, h, w, c = xc.shape
    xp = jnp.pad(xc, ((0, 0), (1, 1), (1, 1), (0, 0)))
    hp, wp = h + 2, w + 2
    hp2, wp2 = _round_up(hp, stride), _round_up(wp, stride)
    xp = jnp.pad(xp, ((0, 0), (0, hp2 - hp), (0, wp2 - wp), (0, 0)))
    hq, wq = hp2 // stride, wp2 // stride
    xph = xp.reshape(n, hq, stride, wq, stride, c)
    xph = xph.transpose(0, 2, 4, 1, 3, 5).reshape(n, stride * stride, hq, wq, c)
    return xph.astype(jnp.bfloat16)


def _bn_scale_bias(sum_p, sq_p, gamma, beta, count):
    """Fold training-mode BN into per-channel scale/bias (tiny (1, C) math)."""
    s = jnp.sum(sum_p, axis=(0, 1, 2)).reshape(1, -1)
    q = jnp.sum(sq_p, axis=(0, 1, 2)).reshape(1, -1)
    mean = s / count
    var = jnp.maximum(q / count - mean * mean, 0.0)        # clamp: no rsqrt(<0)
    scale = gamma * jax.lax.rsqrt(var + EPS)
    bias = beta - mean * scale
    return scale, bias


def residual_block_forward(x_nchw, params, *, stride, max_rows=256):
    x = jnp.transpose(x_nchw, (0, 2, 3, 1)).astype(jnp.float32)   # NCHW -> NHWC
    n, h, w, cin = x.shape
    cout = params["w1"].shape[-1]
    cpi, cpo = _round_up(cin, LANES), _round_up(cout, LANES)

    ho = (h - 1) // stride + 1
    wo = (w - 1) // stride + 1
    th = _row_tile(ho, wo, max_rows)          # output-row tile (divides ho)
    m = n * ho * wo                           # real per-channel count for BN
    has_proj = (stride != 1) or (cin != cout)
    fold_taps = (9 * cin <= LANES)            # small Cin: fold all 9 taps into K

    g1, b1 = _pad_vec(params["g1"], cpo), _pad_vec(params["b1"], cpo)
    g2, b2 = _pad_vec(params["g2"], cpo), _pad_vec(params["b2"], cpo)
    w2f = _fold_w3x3(params["w2"], cpo, cpo)

    # conv1 (3x3, stride, pad 1) with fused BN1 stats (+ fused 1x1 shortcut)
    ys = ss = qs = None
    xc = None
    if fold_taps:
        k = LANES
        xcol = _im2col_small(x, stride, ho, wo, k)
        w1k = _fold_w_small(params["w1"], k, cpo)
        if has_proj:
            wsk = _embed_ws_small(params["ws"], cin, k, cpo)
            wcat = jnp.concatenate([w1k, wsk], axis=1)     # (k, 2*cpo)
            y1, ys, s1, q1, ss, qs = conv1_fold_dual(xcol, wcat, th)
        else:
            y1, s1, q1 = conv_mm(xcol, w1k, th, jnp.bfloat16)
    else:
        xc = jnp.pad(x, ((0, 0), (0, 0), (0, 0), (0, cpi - cin)))
        xph = _phase_split(xc, stride)
        w1f = _fold_w3x3(params["w1"], cpi, cpo)
        y1, s1, q1 = conv1_phase(xph, w1f, stride, ho, wo, th)
        if has_proj:
            # TODO(synk): read the shortcut rows straight out of the centre
            # phase plane inside conv1_phase instead of this wrapper slice.
            ws1 = _pad_w1x1(params["ws"], cpi, cpo)
            xsub = xc if stride == 1 else xc[:, ::stride, ::stride, :]
            ys, ss, qs = conv_mm(xsub, ws1, th, jnp.float32)
    sc1, bi1 = _bn_scale_bias(s1, q1, g1, b1, m)

    # BN1 + ReLU + conv2 (3x3, stride 1, pad 1) with fused BN2 stats
    y2, s2, q2 = bnrelu_conv2(y1, sc1, bi1, w2f, th)
    sc2, bi2 = _bn_scale_bias(s2, q2, g2, b2, m)

    # shortcut BN fold + residual add + ReLU (single fused elementwise pass)
    if has_proj:
        gs, bs = _pad_vec(params["gs"], cpo), _pad_vec(params["bs"], cpo)
        scs, bis = _bn_scale_bias(ss, qs, gs, bs, m)
        ys_in = ys
    else:
        assert stride == 1 and cin == cout and cpi == cpo
        ys_in = xc if xc is not None else jnp.pad(
            x, ((0, 0), (0, 0), (0, 0), (0, cpo - cin)))
        scs = jnp.ones((1, cpo), jnp.float32)
        bis = jnp.zeros((1, cpo), jnp.float32)
    out = bn_add_relu(y2, sc2, bi2, ys_in, scs, bis, th)   # (n, ho, wo, cpo)

    out = out[..., :cout]
    return jnp.transpose(out, (0, 3, 1, 2))                # NHWC -> NCHW


# ---------------------------- pure-JAX reference -----------------------------

def _reference(x_nchw, params, stride):
    # Mirrors the kernel's documented numerics: bf16 MXU operands with f32
    # accumulation, y1 stored as bf16 (stats from the f32 accumulator),
    # y2 / shortcut kept in f32.
    bf = lambda a: a.astype(jnp.bfloat16).astype(jnp.float32)

    def conv(x, w_hwio, s, p):
        w_oihw = jnp.transpose(bf(w_hwio), (3, 2, 0, 1))
        return jax.lax.conv_general_dilated(
            bf(x), w_oihw, (s, s), [(p, p), (p, p)],
            dimension_numbers=("NCHW", "OIHW", "NCHW"),
            precision=jax.lax.Precision.HIGHEST)

    def bn_apply(stats_src, apply_to, g, b):
        mean = jnp.mean(stats_src, axis=(0, 2, 3), keepdims=True)
        var = jnp.var(stats_src, axis=(0, 2, 3), keepdims=True)   # biased
        return ((apply_to - mean) * jax.lax.rsqrt(var + EPS)
                * g.reshape(1, -1, 1, 1) + b.reshape(1, -1, 1, 1))

    cin, cout = params["w1"].shape[2], params["w1"].shape[3]
    y1 = conv(x_nchw, params["w1"], stride, 1)
    h = jnp.maximum(bn_apply(y1, bf(y1), params["g1"], params["b1"]), 0.0)
    y2 = conv(h, params["w2"], 1, 1)
    res = bn_apply(y2, y2, params["g2"], params["b2"])
    if stride != 1 or cin != cout:
        ysc = conv(x_nchw, params["ws"], stride, 0)
        sc = bn_apply(ysc, ysc, params["gs"], params["bs"])
    else:
        sc = x_nchw
    return jnp.maximum(res + sc, 0.0)


# ----------------------------------- main -------------------------------------

def _make_inputs(key, n, cin, cout, hw):
    ks = jax.random.split(key, 10)
    x = jax.random.normal(ks[0], (n, cin, hw, hw), jnp.float32)
    params = {
        "w1": 0.1 * jax.random.normal(ks[1], (3, 3, cin, cout), jnp.float32),
        "g1": 0.5 + jnp.abs(jax.random.normal(ks[2], (cout,), jnp.float32)),
        "b1": 0.1 * jax.random.normal(ks[3], (cout,), jnp.float32),
        "w2": 0.1 * jax.random.normal(ks[4], (3, 3, cout, cout), jnp.float32),
        "g2": 0.5 + jnp.abs(jax.random.normal(ks[5], (cout,), jnp.float32)),
        "b2": 0.1 * jax.random.normal(ks[6], (cout,), jnp.float32),
        "ws": 0.1 * jax.random.normal(ks[7], (1, 1, cin, cout), jnp.float32),
        "gs": 0.5 + jnp.abs(jax.random.normal(ks[8], (cout,), jnp.float32)),
        "bs": 0.1 * jax.random.normal(ks[9], (cout,), jnp.float32),
    }
    return x, params


if __name__ == "__main__":
    key = jax.random.PRNGKey(0)
    k1, k2 = jax.random.split(key)
    # Tolerance: intermediates are intentionally bf16-quantized at documented
    # points (mirrored in the reference); near-tie bf16 rounding of y1/h under
    # different f32 accumulation orders bounds the residual error well below 1e-2.
    TOL = 1e-2

    # Case 1 (primary): stride 2, Cin=4 -> Cout=8, projection shortcut.
    # Small Cin -> folded-K conv1 with the 1x1 shortcut fused into the matmul.
    x1, p1 = _make_inputs(k1, 2, 4, 8, 16)
    fwd1 = jax.jit(functools.partial(residual_block_forward, stride=2))
    out1 = fwd1(x1, p1)
    jax.block_until_ready(out1)
    assert out1.shape == (2, 8, 8, 8), out1.shape
    err1 = float(jnp.max(jnp.abs(out1 - _reference(x1, p1, 2))))
    assert err1 < TOL, f"case1 max abs error {err1}"

    # Case 2: stride 1, Cin=Cout=16, identity shortcut.  Exercises the
    # phase-split conv1 path and multiple output row-tiles per image (halo
    # handling in the fused BN+ReLU+conv2 kernel), forced via max_rows=64.
    x2, p2 = _make_inputs(k2, 2, 16, 16, 16)
    fwd2 = jax.jit(functools.partial(residual_block_forward, stride=1,
                                     max_rows=64))
    out2 = fwd2(x2, p2)
    jax.block_until_ready(out2)
    assert out2.shape == (2, 16, 16, 16), out2.shape
    err2 = float(jnp.max(jnp.abs(out2 - _reference(x2, p2, 1))))
    assert err2 < TOL, f"case2 max abs error {err2}"

    print("KERNEL_OK")
</pallas_src>

<mosaic_0001>
module attributes {stable_mosaic.version = 11 : i64} {
  func.func @_conv_mm_dual_kernel(%arg0: i32, %arg1: i32, %arg2: memref<1x8x8x128xbf16, #tpu.memory_space<vmem>>, %arg3: memref<128x256xbf16, #tpu.memory_space<vmem>>, %arg4: memref<1x8x8x128xbf16, #tpu.memory_space<vmem>>, %arg5: memref<1x8x8x128xf32, #tpu.memory_space<vmem>>, %arg6: memref<1x1x1x128xf32, #tpu.memory_space<vmem>>, %arg7: memref<1x1x1x128xf32, #tpu.memory_space<vmem>>, %arg8: memref<1x1x1x128xf32, #tpu.memory_space<vmem>>, %arg9: memref<1x1x1x128xf32, #tpu.memory_space<vmem>>) attributes {dimension_semantics = [#tpu.dimension_semantics<parallel>, #tpu.dimension_semantics<parallel>], iteration_bounds = array<i64: 2, 1>, scalar_prefetch = 0 : i64, scratch_operands = 0 : i64, tpu.core_type = #tpu.core_type<tc>, window_params = [{transform_indices = @transform_0, window_bounds = array<i64: 1, 8, 8, 128>}, {pipeline_mode = #tpu.pipeline_mode<synchronous>, transform_indices = @transform_1, window_bounds = array<i64: 128, 256>}, {transform_indices = @transform_2, window_bounds = array<i64: 1, 8, 8, 128>}, {transform_indices = @transform_3, window_bounds = array<i64: 1, 8, 8, 128>}, {transform_indices = @transform_4, window_bounds = array<i64: 1, 1, 1, 128>}, {transform_indices = @transform_5, window_bounds = array<i64: 1, 1, 1, 128>}, {transform_indices = @transform_6, window_bounds = array<i64: 1, 1, 1, 128>}, {transform_indices = @transform_7, window_bounds = array<i64: 1, 1, 1, 128>}]} {
    %c0 = arith.constant 0 : index
    %c0_0 = arith.constant 0 : index
    %c0_1 = arith.constant 0 : index
    %c0_2 = arith.constant 0 : index
    %0 = vector.load %arg2[%c0, %c0_0, %c0_1, %c0_2] : memref<1x8x8x128xbf16, #tpu.memory_space<vmem>>, vector<1x8x8x128xbf16>
    %1 = vector.shape_cast %0 : vector<1x8x8x128xbf16> to vector<8x8x128xbf16>
    %2 = vector.shape_cast %1 : vector<8x8x128xbf16> to vector<64x128xbf16>
    %c0_3 = arith.constant 0 : index
    %c0_4 = arith.constant 0 : index
    %3 = vector.load %arg3[%c0_3, %c0_4] : memref<128x256xbf16, #tpu.memory_space<vmem>>, vector<128x256xbf16>
    %cst = arith.constant dense<0.000000e+00> : vector<64x256xf32>
    %4 = tpu.matmul %2, %3, %cst {dimension_numbers = #tpu.dot_dimension_numbers<[1], [0], [0], [1], [0, 0, 1, 1], [], []>} : vector<64x128xbf16>, vector<128x256xbf16>, vector<64x256xf32> -> vector<64x256xf32>
    %5 = vector.extract_strided_slice %4 {offsets = [0, 0], sizes = [64, 128], strides = [1, 1]} : vector<64x256xf32> to vector<64x128xf32>
    %6 = vector.extract_strided_slice %4 {offsets = [0, 128], sizes = [64, 128], strides = [1, 1]} : vector<64x256xf32> to vector<64x128xf32>
    %7 = vector.shape_cast %5 : vector<64x128xf32> to vector<1x8x8x128xf32>
    %8 = arith.truncf %7 : vector<1x8x8x128xf32> to vector<1x8x8x128xbf16>
    %c0_5 = arith.constant 0 : index
    %c0_6 = arith.constant 0 : index
    %c0_7 = arith.constant 0 : index
    %c0_8 = arith.constant 0 : index
    %9 = vector.load %arg4[%c0_5, %c0_6, %c0_7, %c0_8] : memref<1x8x8x128xbf16, #tpu.memory_space<vmem>>, vector<1x8x8x128xbf16>
    tpu.vector_store %arg4[%c0_5, %c0_6, %c0_7, %c0_8], %8 {strides = array<i32>} : memref<1x8x8x128xbf16, #tpu.memory_space<vmem>>, vector<1x8x8x128xbf16>,
    %10 = vector.shape_cast %6 : vector<64x128xf32> to vector<1x8x8x128xf32>
    %c0_9 = arith.constant 0 : index
    %c0_10 = arith.constant 0 : index
    %c0_11 = arith.constant 0 : index
    %c0_12 = arith.constant 0 : index
    %11 = vector.load %arg5[%c0_9, %c0_10, %c0_11, %c0_12] : memref<1x8x8x128xf32, #tpu.memory_space<vmem>>, vector<1x8x8x128xf32>
    tpu.vector_store %arg5[%c0_9, %c0_10, %c0_11, %c0_12], %10 {strides = array<i32>} : memref<1x8x8x128xf32, #tpu.memory_space<vmem>>, vector<1x8x8x128xf32>,
    %cst_13 = arith.constant dense<0.000000e+00> : vector<128xf32>
    %12 = vector.multi_reduction <add>, %5, %cst_13 [0] : vector<64x128xf32> to vector<128xf32>
    %13 = vector.shape_cast %12 : vector<128xf32> to vector<1x1x1x128xf32>
    %c0_14 = arith.constant 0 : index
    %c0_15 = arith.constant 0 : index
    %c0_16 = arith.constant 0 : index
    %c0_17 = arith.constant 0 : index
    %14 = vector.load %arg6[%c0_14, %c0_15, %c0_16, %c0_17] : memref<1x1x1x128xf32, #tpu.memory_space<vmem>>, vector<1x1x1x128xf32>
    tpu.vector_store %arg6[%c0_14, %c0_15, %c0_16, %c0_17], %13 {strides = array<i32>} : memref<1x1x1x128xf32, #tpu.memory_space<vmem>>, vector<1x1x1x128xf32>,
    %15 = arith.mulf %5, %5 : vector<64x128xf32>
    %cst_18 = arith.constant dense<0.000000e+00> : vector<128xf32>
    %16 = vector.multi_reduction <add>, %15, %cst_18 [0] : vector<64x128xf32> to vector<128xf32>
    %17 = vector.shape_cast %16 : vector<128xf32> to vector<1x1x1x128xf32>
    %c0_19 = arith.constant 0 : index
    %c0_20 = arith.constant 0 : index
    %c0_21 = arith.constant 0 : index
    %c0_22 = arith.constant 0 : index
    %18 = vector.load %arg7[%c0_19, %c0_20, %c0_21, %c0_22] : memref<1x1x1x128xf32, #tpu.memory_space<vmem>>, vector<1x1x1x128xf32>
    tpu.vector_store %arg7[%c0_19, %c0_20, %c0_21, %c0_22], %17 {strides = array<i32>} : memref<1x1x1x128xf32, #tpu.memory_space<vmem>>, vector<1x1x1x128xf32>,
    %cst_23 = arith.constant dense<0.000000e+00> : vector<128xf32>
    %19 = vector.multi_reduction <add>, %6, %cst_23 [0] : vector<64x128xf32> to vector<128xf32>
    %20 = vector.shape_cast %19 : vector<128xf32> to vector<1x1x1x128xf32>
    %c0_24 = arith.constant 0 : index
    %c0_25 = arith.constant 0 : index
    %c0_26 = arith.constant 0 : index
    %c0_27 = arith.constant 0 : index
    %21 = vector.load %arg8[%c0_24, %c0_25, %c0_26, %c0_27] : memref<1x1x1x128xf32, #tpu.memory_space<vmem>>, vector<1x1x1x128xf32>
    tpu.vector_store %arg8[%c0_24, %c0_25, %c0_26, %c0_27], %20 {strides = array<i32>} : memref<1x1x1x128xf32, #tpu.memory_space<vmem>>, vector<1x1x1x128xf32>,
    %22 = arith.mulf %6, %6 : vector<64x128xf32>
    %cst_28 = arith.constant dense<0.000000e+00> : vector<128xf32>
    %23 = vector.multi_reduction <add>, %22, %cst_28 [0] : vector<64x128xf32> to vector<128xf32>
    %24 = vector.shape_cast %23 : vector<128xf32> to vector<1x1x1x128xf32>
    %c0_29 = arith.constant 0 : index
    %c0_30 = arith.constant 0 : index
    %c0_31 = arith.constant 0 : index
    %c0_32 = arith.constant 0 : index
    %25 = vector.load %arg9[%c0_29, %c0_30, %c0_31, %c0_32] : memref<1x1x1x128xf32, #tpu.memory_space<vmem>>, vector<1x1x1x128xf32>
    tpu.vector_store %arg9[%c0_29, %c0_30, %c0_31, %c0_32], %24 {strides = array<i32>} : memref<1x1x1x128xf32, #tpu.memory_space<vmem>>, vector<1x1x1x128xf32>,
    return
  }
  func.func @transform_0(%arg0: i32, %arg1: i32) -> (i32, i32, i32, i32) {
    %c0_i32 = arith.constant 0 : i32
    %c0_i32_0 = arith.constant 0 : i32
    %c0_i32_1 = arith.constant 0 : i32
    return %arg0, %arg1, %c0_i32, %c0_i32_0 : i32, i32, i32, i32
  }
  func.func @transform_1(%arg0: i32, %arg1: i32) -> (i32, i32) {
    %c0_i32 = arith.constant 0 : i32
    %c0_i32_0 = arith.constant 0 : i32
    %c0_i32_1 = arith.constant 0 : i32
    return %c0_i32, %c0_i32_0 : i32, i32
  }
  func.func @transform_2(%arg0: i32, %arg1: i32) -> (i32, i32, i32, i32) {
    %c0_i32 = arith.constant 0 : i32
    %c0_i32_0 = arith.constant 0 : i32
    %c0_i32_1 = arith.constant 0 : i32
    return %arg0, %arg1, %c0_i32, %c0_i32_0 : i32, i32, i32, i32
  }
  func.func @transform_3(%arg0: i32, %arg1: i32) -> (i32, i32, i32, i32) {
    %c0_i32 = arith.constant 0 : i32
    %c0_i32_0 = arith.constant 0 : i32
    %c0_i32_1 = arith.constant 0 : i32
    return %arg0, %arg1, %c0_i32, %c0_i32_0 : i32, i32, i32, i32
  }
  func.func @transform_4(%arg0: i32, %arg1: i32) -> (i32, i32, i32, i32) {
    %c0_i32 = arith.constant 0 : i32
    %c0_i32_0 = arith.constant 0 : i32
    %c0_i32_1 = arith.constant 0 : i32
    return %arg0, %arg1, %c0_i32, %c0_i32_0 : i32, i32, i32, i32
  }
  func.func @transform_5(%arg0: i32, %arg1: i32) -> (i32, i32, i32, i32) {
    %c0_i32 = arith.constant 0 : i32
    %c0_i32_0 = arith.constant 0 : i32
    %c0_i32_1 = arith.constant 0 : i32
    return %arg0, %arg1, %c0_i32, %c0_i32_0 : i32, i32, i32, i32
  }
  func.func @transform_6(%arg0: i32, %arg1: i32) -> (i32, i32, i32, i32) {
    %c0_i32 = arith.constant 0 : i32
    %c0_i32_0 = arith.constant 0 : i32
    %c0_i32_1 = arith.constant 0 : i32
    return %arg0, %arg1, %c0_i32, %c0_i32_0 : i32, i32, i32, i32
  }
  func.func @transform_7(%arg0: i32, %arg1: i32) -> (i32, i32, i32, i32) {
    %c0_i32 = arith.constant 0 : i32
    %c0_i32_0 = arith.constant 0 : i32
    %c0_i32_1 = arith.constant 0 : i32
    return %arg0, %arg1, %c0_i32, %c0_i32_0 : i32, i32, i32, i32
  }
}

module attributes {stable_mosaic.version = 11 : i64} {
  func.func @_bnrelu_conv2_kernel(%arg0: i32, %arg1: i32, %arg2: memref<1x8x8x128xbf16, #tpu.memory_space<vmem>>, %arg3: memref<1x128xf32, #tpu.memory_space<vmem>>, %arg4: memref<1x128xf32, #tpu.memory_space<vmem>>, %arg5: memref<3x384x128xbf16, #tpu.memory_space<vmem>>, %arg6: memref<1x8x8x128xf32, #tpu.memory_space<vmem>>, %arg7: memref<1x1x1x128xf32, #tpu.memory_space<vmem>>, %arg8: memref<1x1x1x128xf32, #tpu.memory_space<vmem>>, %arg9: memref<10x10x128xbf16, #tpu.memory_space<vmem>>) attributes {dimension_semantics = [#tpu.dimension_semantics<parallel>, #tpu.dimension_semantics<parallel>], iteration_bounds = array<i64: 2, 1>, scalar_prefetch = 0 : i64, scratch_operands = 1 : i64, tpu.core_type = #tpu.core_type<tc>, window_params = [{transform_indices = @transform_0, window_bounds = array<i64: 1, 8, 8, 128>}, {pipeline_mode = #tpu.pipeline_mode<synchronous>, transform_indices = @transform_1, window_bounds = array<i64: 1, 128>}, {pipeline_mode = #tpu.pipeline_mode<synchronous>, transform_indices = @transform_2, window_bounds = array<i64: 1, 128>}, {pipeline_mode = #tpu.pipeline_mode<synchronous>, transform_indices = @transform_3, window_bounds = array<i64: 3, 384, 128>}, {transform_indices = @transform_4, window_bounds = array<i64: 1, 8, 8, 128>}, {transform_indices = @transform_5, window_bounds = array<i64: 1, 1, 1, 128>}, {transform_indices = @transform_6, window_bounds = array<i64: 1, 1, 1, 128>}]} {
    %c8_i32 = arith.constant 8 : i32
    %0 = arith.muli %arg1, %c8_i32 : i32
    %cst = arith.constant 0.000000e+00 : bf16
    %1 = vector.broadcast %cst : bf16 to vector<1x10x128xbf16>
    %c0 = arith.constant 0 : index
    %2 = arith.index_cast %0 : i32 to index
    %c0_0 = arith.constant 0 : index
    %c0_1 = arith.constant 0 : index
    %3 = vector.load %arg2[%c0, %2, %c0_0, %c0_1] : memref<1x8x8x128xbf16, #tpu.memory_space<vmem>>, vector<1x8x8x128xbf16>
    %4 = vector.shape_cast %3 : vector<1x8x8x128xbf16> to vector<8x8x128xbf16>
    %c0_2 = arith.constant 0 : index
    %c0_3 = arith.constant 0 : index
    %5 = vector.load %arg3[%c0_2, %c0_3] : memref<1x128xf32, #tpu.memory_space<vmem>>, vector<1x128xf32>
    %6 = arith.extf %4 : vector<8x8x128xbf16> to vector<8x8x128xf32>
    %7 = vector.shape_cast %5 : vector<1x128xf32> to vector<1x1x128xf32>
    %8 = vector.broadcast %7 : vector<1x1x128xf32> to vector<8x8x128xf32>
    %9 = arith.mulf %6, %8 : vector<8x8x128xf32>
    %c0_4 = arith.constant 0 : index
    %c0_5 = arith.constant 0 : index
    %10 = vector.load %arg4[%c0_4, %c0_5] : memref<1x128xf32, #tpu.memory_space<vmem>>, vector<1x128xf32>
    %11 = vector.shape_cast %10 : vector<1x128xf32> to vector<1x1x128xf32>
    %12 = vector.broadcast %11 : vector<1x1x128xf32> to vector<8x8x128xf32>
    %13 = arith.addf %9, %12 : vector<8x8x128xf32>
    %cst_6 = arith.constant 0.000000e+00 : f32
    %14 = vector.broadcast %cst_6 : f32 to vector<8x8x128xf32>
    %15 = arith.maximumf %13, %14 : vector<8x8x128xf32>
    %16 = arith.truncf %15 : vector<8x8x128xf32> to vector<8x8x128xbf16>
    %cst_7 = arith.constant 0.000000e+00 : bf16
    %17 = vector.broadcast %cst_7 : bf16 to vector<8x1x128xbf16>
    %18 = tpu.concatenate %17, %16, %17 in 1 : vector<8x1x128xbf16>, vector<8x8x128xbf16>, vector<8x1x128xbf16> -> vector<8x10x128xbf16>
    %c1 = arith.constant 1 : index
    %c0_8 = arith.constant 0 : index
    %c0_9 = arith.constant 0 : index
    %19 = vector.load %arg9[%c1, %c0_8, %c0_9] : memref<10x10x128xbf16, #tpu.memory_space<vmem>>, vector<8x10x128xbf16>
    tpu.vector_store %arg9[%c1, %c0_8, %c0_9], %18 {strides = array<i32>} : memref<10x10x128xbf16, #tpu.memory_space<vmem>>, vector<8x10x128xbf16>,
    %c0_i32 = arith.constant 0 : i32
    %20 = arith.cmpi sgt, %arg1, %c0_i32 : i32
    %21 = arith.extui %20 : i1 to i32
    %c0_i32_10 = arith.constant 0 : i32
    %22 = arith.cmpi ne, %21, %c0_i32_10 : i32
    scf.if %22 {
      %c1_i32 = arith.constant 1 : i32
      %69 = arith.subi %0, %c1_i32 : i32
      %c0_70 = arith.constant 0 : index
      %70 = arith.index_cast %69 : i32 to index
      %c0_71 = arith.constant 0 : index
      %c0_72 = arith.constant 0 : index
      %71 = vector.load %arg2[%c0_70, %70, %c0_71, %c0_72] : memref<1x8x8x128xbf16, #tpu.memory_space<vmem>>, vector<1x1x8x128xbf16>
      %72 = vector.shape_cast %71 : vector<1x1x8x128xbf16> to vector<1x8x128xbf16>
      %c0_73 = arith.constant 0 : index
      %c0_74 = arith.constant 0 : index
      %73 = vector.load %arg3[%c0_73, %c0_74] : memref<1x128xf32, #tpu.memory_space<vmem>>, vector<1x128xf32>
      %74 = arith.extf %72 : vector<1x8x128xbf16> to vector<1x8x128xf32>
      %75 = vector.shape_cast %73 : vector<1x128xf32> to vector<1x1x128xf32>
      %76 = vector.broadcast %75 : vector<1x1x128xf32> to vector<1x8x128xf32>
      %77 = arith.mulf %74, %76 : vector<1x8x128xf32>
      %c0_75 = arith.constant 0 : index
      %c0_76 = arith.constant 0 : index
      %78 = vector.load %arg4[%c0_75, %c0_76] : memref<1x128xf32, #tpu.memory_space<vmem>>, vector<1x128xf32>
      %79 = vector.shape_cast %78 : vector<1x128xf32> to vector<1x1x128xf32>
      %80 = vector.broadcast %79 : vector<1x1x128xf32> to vector<1x8x128xf32>
      %81 = arith.addf %77, %80 : vector<1x8x128xf32>
      %cst_77 = arith.constant 0.000000e+00 : f32
      %82 = vector.broadcast %cst_77 : f32 to vector<1x8x128xf32>
      %83 = arith.maximumf %81, %82 : vector<1x8x128xf32>
      %84 = arith.truncf %83 : vector<1x8x128xf32> to vector<1x8x128xbf16>
      %cst_78 = arith.constant 0.000000e+00 : bf16
      %85 = vector.broadcast %cst_78 : bf16 to vector<1x1x128xbf16>
      %86 = tpu.concatenate %85, %84, %85 in 1 : vector<1x1x128xbf16>, vector<1x8x128xbf16>, vector<1x1x128xbf16> -> vector<1x10x128xbf16>
      %c0_79 = arith.constant 0 : index
      %c0_80 = arith.constant 0 : index
      %c0_81 = arith.constant 0 : index
      %87 = vector.load %arg9[%c0_79, %c0_80, %c0_81] : memref<10x10x128xbf16, #tpu.memory_space<vmem>>, vector<1x10x128xbf16>
      tpu.vector_store %arg9[%c0_79, %c0_80, %c0_81], %86 {strides = array<i32>} : memref<10x10x128xbf16, #tpu.memory_space<vmem>>, vector<1x10x128xbf16>,
    } else {
    }
    %c0_i32_11 = arith.constant 0 : i32
    %23 = arith.cmpi eq, %arg1, %c0_i32_11 : i32
    %24 = arith.extui %23 : i1 to i32
    %c0_i32_12 = arith.constant 0 : i32
    %25 = arith.cmpi ne, %24, %c0_i32_12 : i32
    scf.if %25 {
      %c0_70 = arith.constant 0 : index
      %c0_71 = arith.constant 0 : index
      %c0_72 = arith.constant 0 : index
      %69 = vector.load %arg9[%c0_70, %c0_71, %c0_72] : memref<10x10x128xbf16, #tpu.memory_space<vmem>>, vector<1x10x128xbf16>
      tpu.vector_store %arg9[%c0_70, %c0_71, %c0_72], %1 {strides = array<i32>} : memref<10x10x128xbf16, #tpu.memory_space<vmem>>, vector<1x10x128xbf16>,
    } else {
    }
    %c0_i32_13 = arith.constant 0 : i32
    %26 = arith.cmpi slt, %arg1, %c0_i32_13 : i32
    %27 = arith.extui %26 : i1 to i32
    %c0_i32_14 = arith.constant 0 : i32
    %28 = arith.cmpi ne, %27, %c0_i32_14 : i32
    scf.if %28 {
      %c8_i32_70 = arith.constant 8 : i32
      %69 = arith.addi %0, %c8_i32_70 : i32
      %c0_71 = arith.constant 0 : index
      %70 = arith.index_cast %69 : i32 to index
      %c0_72 = arith.constant 0 : index
      %c0_73 = arith.constant 0 : index
      %71 = vector.load %arg2[%c0_71, %70, %c0_72, %c0_73] : memref<1x8x8x128xbf16, #tpu.memory_space<vmem>>, vector<1x1x8x128xbf16>
      %72 = vector.shape_cast %71 : vector<1x1x8x128xbf16> to vector<1x8x128xbf16>
      %c0_74 = arith.constant 0 : index
      %c0_75 = arith.constant 0 : index
      %73 = vector.load %arg3[%c0_74, %c0_75] : memref<1x128xf32, #tpu.memory_space<vmem>>, vector<1x128xf32>
      %74 = arith.extf %72 : vector<1x8x128xbf16> to vector<1x8x128xf32>
      %75 = vector.shape_cast %73 : vector<1x128xf32> to vector<1x1x128xf32>
      %76 = vector.broadcast %75 : vector<1x1x128xf32> to vector<1x8x128xf32>
      %77 = arith.mulf %74, %76 : vector<1x8x128xf32>
      %c0_76 = arith.constant 0 : index
      %c0_77 = arith.constant 0 : index
      %78 = vector.load %arg4[%c0_76, %c0_77] : memref<1x128xf32, #tpu.memory_space<vmem>>, vector<1x128xf32>
      %79 = vector.shape_cast %78 : vector<1x128xf32> to vector<1x1x128xf32>
      %80 = vector.broadcast %79 : vector<1x1x128xf32> to vector<1x8x128xf32>
      %81 = arith.addf %77, %80 : vector<1x8x128xf32>
      %cst_78 = arith.constant 0.000000e+00 : f32
      %82 = vector.broadcast %cst_78 : f32 to vector<1x8x128xf32>
      %83 = arith.maximumf %81, %82 : vector<1x8x128xf32>
      %84 = arith.truncf %83 : vector<1x8x128xf32> to vector<1x8x128xbf16>
      %cst_79 = arith.constant 0.000000e+00 : bf16
      %85 = vector.broadcast %cst_79 : bf16 to vector<1x1x128xbf16>
      %86 = tpu.concatenate %85, %84, %85 in 1 : vector<1x1x128xbf16>, vector<1x8x128xbf16>, vector<1x1x128xbf16> -> vector<1x10x128xbf16>
      %c9 = arith.constant 9 : index
      %c0_80 = arith.constant 0 : index
      %c0_81 = arith.constant 0 : index
      %87 = vector.load %arg9[%c9, %c0_80, %c0_81] : memref<10x10x128xbf16, #tpu.memory_space<vmem>>, vector<1x10x128xbf16>
      tpu.vector_store %arg9[%c9, %c0_80, %c0_81], %86 {strides = array<i32>} : memref<10x10x128xbf16, #tpu.memory_space<vmem>>, vector<1x10x128xbf16>,
    } else {
    }
    %c0_i32_15 = arith.constant 0 : i32
    %29 = arith.cmpi eq, %arg1, %c0_i32_15 : i32
    %30 = arith.extui %29 : i1 to i32
    %c0_i32_16 = arith.constant 0 : i32
    %31 = arith.cmpi ne, %30, %c0_i32_16 : i32
    scf.if %31 {
      %c9 = arith.constant 9 : index
      %c0_70 = arith.constant 0 : index
      %c0_71 = arith.constant 0 : index
      %69 = vector.load %arg9[%c9, %c0_70, %c0_71] : memref<10x10x128xbf16, #tpu.memory_space<vmem>>, vector<1x10x128xbf16>
      tpu.vector_store %arg9[%c9, %c0_70, %c0_71], %1 {strides = array<i32>} : memref<10x10x128xbf16, #tpu.memory_space<vmem>>, vector<1x10x128xbf16>,
    } else {
    }
    %cst_17 = arith.constant 0.000000e+00 : f32
    %32 = vector.broadcast %cst_17 : f32 to vector<64x128xf32>
    %c0_18 = arith.constant 0 : index
    %c0_19 = arith.constant 0 : index
    %c0_20 = arith.constant 0 : index
    %33 = vector.load %arg9[%c0_18, %c0_19, %c0_20] : memref<10x10x128xbf16, #tpu.memory_space<vmem>>, vector<8x8x128xbf16>
    %c0_21 = arith.constant 0 : index
    %c1_22 = arith.constant 1 : index
    %c0_23 = arith.constant 0 : index
    %34 = vector.load %arg9[%c0_21, %c1_22, %c0_23] : memref<10x10x128xbf16, #tpu.memory_space<vmem>>, vector<8x8x128xbf16>
    %c0_24 = arith.constant 0 : index
    %c2 = arith.constant 2 : index
    %c0_25 = arith.constant 0 : index
    %35 = vector.load %arg9[%c0_24, %c2, %c0_25] : memref<10x10x128xbf16, #tpu.memory_space<vmem>>, vector<8x8x128xbf16>
    %36 = tpu.concatenate %33, %34, %35 in 2 : vector<8x8x128xbf16>, vector<8x8x128xbf16>, vector<8x8x128xbf16> -> vector<8x8x384xbf16>
    %37 = vector.shape_cast %36 : vector<8x8x384xbf16> to vector<64x384xbf16>
    %c0_26 = arith.constant 0 : index
    %c0_27 = arith.constant 0 : index
    %c0_28 = arith.constant 0 : index
    %38 = vector.load %arg5[%c0_26, %c0_27, %c0_28] : memref<3x384x128xbf16, #tpu.memory_space<vmem>>, vector<1x384x128xbf16>
    %39 = vector.shape_cast %38 : vector<1x384x128xbf16> to vector<384x128xbf16>
    %cst_29 = arith.constant dense<0.000000e+00> : vector<64x128xf32>
    %40 = tpu.matmul %37, %39, %cst_29 {dimension_numbers = #tpu.dot_dimension_numbers<[1], [0], [0], [1], [0, 0, 1, 1], [], []>} : vector<64x384xbf16>, vector<384x128xbf16>, vector<64x128xf32> -> vector<64x128xf32>
    %41 = arith.addf %32, %40 : vector<64x128xf32>
    %c1_30 = arith.constant 1 : index
    %c0_31 = arith.constant 0 : index
    %c0_32 = arith.constant 0 : index
    %42 = vector.load %arg9[%c1_30, %c0_31, %c0_32] : memref<10x10x128xbf16, #tpu.memory_space<vmem>>, vector<8x8x128xbf16>
    %c1_33 = arith.constant 1 : index
    %c1_34 = arith.constant 1 : index
    %c0_35 = arith.constant 0 : index
    %43 = vector.load %arg9[%c1_33, %c1_34, %c0_35] : memref<10x10x128xbf16, #tpu.memory_space<vmem>>, vector<8x8x128xbf16>
    %c1_36 = arith.constant 1 : index
    %c2_37 = arith.constant 2 : index
    %c0_38 = arith.constant 0 : index
    %44 = vector.load %arg9[%c1_36, %c2_37, %c0_38] : memref<10x10x128xbf16, #tpu.memory_space<vmem>>, vector<8x8x128xbf16>
    %45 = tpu.concatenate %42, %43, %44 in 2 : vector<8x8x128xbf16>, vector<8x8x128xbf16>, vector<8x8x128xbf16> -> vector<8x8x384xbf16>
    %46 = vector.shape_cast %45 : vector<8x8x384xbf16> to vector<64x384xbf16>
    %c1_39 = arith.constant 1 : index
    %c0_40 = arith.constant 0 : index
    %c0_41 = arith.constant 0 : index
    %47 = vector.load %arg5[%c1_39, %c0_40, %c0_41] : memref<3x384x128xbf16, #tpu.memory_space<vmem>>, vector<1x384x128xbf16>
    %48 = vector.shape_cast %47 : vector<1x384x128xbf16> to vector<384x128xbf16>
    %cst_42 = arith.constant dense<0.000000e+00> : vector<64x128xf32>
    %49 = tpu.matmul %46, %48, %cst_42 {dimension_numbers = #tpu.dot_dimension_numbers<[1], [0], [0], [1], [0, 0, 1, 1], [], []>} : vector<64x384xbf16>, vector<384x128xbf16>, vector<64x128xf32> -> vector<64x128xf32>
    %50 = arith.addf %41, %49 : vector<64x128xf32>
    %c2_43 = arith.constant 2 : index
    %c0_44 = arith.constant 0 : index
    %c0_45 = arith.constant 0 : index
    %51 = vector.load %arg9[%c2_43, %c0_44, %c0_45] : memref<10x10x128xbf16, #tpu.memory_space<vmem>>, vector<8x8x128xbf16>
    %c2_46 = arith.constant 2 : index
    %c1_47 = arith.constant 1 : index
    %c0_48 = arith.constant 0 : index
    %52 = vector.load %arg9[%c2_46, %c1_47, %c0_48] : memref<10x10x128xbf16, #tpu.memory_space<vmem>>, vector<8x8x128xbf16>
    %c2_49 = arith.constant 2 : index
    %c2_50 = arith.constant 2 : index
    %c0_51 = arith.constant 0 : index
    %53 = vector.load %arg9[%c2_49, %c2_50, %c0_51] : memref<10x10x128xbf16, #tpu.memory_space<vmem>>, vector<8x8x128xbf16>
    %54 = tpu.concatenate %51, %52, %53 in 2 : vector<8x8x128xbf16>, vector<8x8x128xbf16>, vector<8x8x128xbf16> -> vector<8x8x384xbf16>
    %55 = vector.shape_cast %54 : vector<8x8x384xbf16> to vector<64x384xbf16>
    %c2_52 = arith.constant 2 : index
    %c0_53 = arith.constant 0 : index
    %c0_54 = arith.constant 0 : index
    %56 = vector.load %arg5[%c2_52, %c0_53, %c0_54] : memref<3x384x128xbf16, #tpu.memory_space<vmem>>, vector<1x384x128xbf16>
    %57 = vector.shape_cast %56 : vector<1x384x128xbf16> to vector<384x128xbf16>
    %cst_55 = arith.constant dense<0.000000e+00> : vector<64x128xf32>
    %58 = tpu.matmul %55, %57, %cst_55 {dimension_numbers = #tpu.dot_dimension_numbers<[1], [0], [0], [1], [0, 0, 1, 1], [], []>} : vector<64x384xbf16>, vector<384x128xbf16>, vector<64x128xf32> -> vector<64x128xf32>
    %59 = arith.addf %50, %58 : vector<64x128xf32>
    %60 = vector.shape_cast %59 : vector<64x128xf32> to vector<1x8x8x128xf32>
    %c0_56 = arith.constant 0 : index
    %c0_57 = arith.constant 0 : index
    %c0_58 = arith.constant 0 : index
    %c0_59 = arith.constant 0 : index
    %61 = vector.load %arg6[%c0_56, %c0_57, %c0_58, %c0_59] : memref<1x8x8x128xf32, #tpu.memory_space<vmem>>, vector<1x8x8x128xf32>
    tpu.vector_store %arg6[%c0_56, %c0_57, %c0_58, %c0_59], %60 {strides = array<i32>} : memref<1x8x8x128xf32, #tpu.memory_space<vmem>>, vector<1x8x8x128xf32>,
    %cst_60 = arith.constant dense<0.000000e+00> : vector<128xf32>
    %62 = vector.multi_reduction <add>, %59, %cst_60 [0] : vector<64x128xf32> to vector<128xf32>
    %63 = vector.shape_cast %62 : vector<128xf32> to vector<1x1x1x128xf32>
    %c0_61 = arith.constant 0 : index
    %c0_62 = arith.constant 0 : index
    %c0_63 = arith.constant 0 : index
    %c0_64 = arith.constant 0 : index
    %64 = vector.load %arg7[%c0_61, %c0_62, %c0_63, %c0_64] : memref<1x1x1x128xf32, #tpu.memory_space<vmem>>, vector<1x1x1x128xf32>
    tpu.vector_store %arg7[%c0_61, %c0_62, %c0_63, %c0_64], %63 {strides = array<i32>} : memref<1x1x1x128xf32, #tpu.memory_space<vmem>>, vector<1x1x1x128xf32>,
    %65 = arith.mulf %59, %59 : vector<64x128xf32>
    %cst_65 = arith.constant dense<0.000000e+00> : vector<128xf32>
    %66 = vector.multi_reduction <add>, %65, %cst_65 [0] : vector<64x128xf32> to vector<128xf32>
    %67 = vector.shape_cast %66 : vector<128xf32> to vector<1x1x1x128xf32>
    %c0_66 = arith.constant 0 : index
    %c0_67 = arith.constant 0 : index
    %c0_68 = arith.constant 0 : index
    %c0_69 = arith.constant 0 : index
    %68 = vector.load %arg8[%c0_66, %c0_67, %c0_68, %c0_69] : memref<1x1x1x128xf32, #tpu.memory_space<vmem>>, vector<1x1x1x128xf32>
    tpu.vector_store %arg8[%c0_66, %c0_67, %c0_68, %c0_69], %67 {strides = array<i32>} : memref<1x1x1x128xf32, #tpu.memory_space<vmem>>, vector<1x1x1x128xf32>,
    return
  }
  func.func @transform_0(%arg0: i32, %arg1: i32) -> (i32, i32, i32, i32) {
    %c0_i32 = arith.constant 0 : i32
    %c0_i32_0 = arith.constant 0 : i32
    %c0_i32_1 = arith.constant 0 : i32
    %c0_i32_2 = arith.constant 0 : i32
    return %arg0, %c0_i32, %c0_i32_0, %c0_i32_1 : i32, i32, i32, i32
  }
  func.func @transform_1(%arg0: i32, %arg1: i32) -> (i32, i32) {
    %c0_i32 = arith.constant 0 : i32
    %c0_i32_0 = arith.constant 0 : i32
    %c0_i32_1 = arith.constant 0 : i32
    return %c0_i32, %c0_i32_0 : i32, i32
  }
  func.func @transform_2(%arg0: i32, %arg1: i32) -> (i32, i32) {
    %c0_i32 = arith.constant 0 : i32
    %c0_i32_0 = arith.constant 0 : i32
    %c0_i32_1 = arith.constant 0 : i32
    return %c0_i32, %c0_i32_0 : i32, i32
  }
  func.func @transform_3(%arg0: i32, %arg1: i32) -> (i32, i32, i32) {
    %c0_i32 = arith.constant 0 : i32
    %c0_i32_0 = arith.constant 0 : i32
    %c0_i32_1 = arith.constant 0 : i32
    %c0_i32_2 = arith.constant 0 : i32
    return %c0_i32, %c0_i32_0, %c0_i32_1 : i32, i32, i32
  }
  func.func @transform_4(%arg0: i32, %arg1: i32) -> (i32, i32, i32, i32) {
    %c0_i32 = arith.constant 0 : i32
    %c0_i32_0 = arith.constant 0 : i32
    %c0_i32_1 = arith.constant 0 : i32
    return %arg0, %arg1, %c0_i32, %c0_i32_0 : i32, i32, i32, i32
  }
  func.func @transform_5(%arg0: i32, %arg1: i32) -> (i32, i32, i32, i32) {
    %c0_i32 = arith.constant 0 : i32
    %c0_i32_0 = arith.constant 0 : i32
    %c0_i32_1 = arith.constant 0 : i32
    return %arg0, %arg1, %c0_i32, %c0_i32_0 : i32, i32, i32, i32
  }
  func.func @transform_6(%arg0: i32, %arg1: i32) -> (i32, i32, i32, i32) {
    %c0_i32 = arith.constant 0 : i32
    %c0_i32_0 = arith.constant 0 : i32
    %c0_i32_1 = arith.constant 0 : i32
    return %arg0, %arg1, %c0_i32, %c0_i32_0 : i32, i32, i32, i32
  }
}

module attributes {stable_mosaic.version = 11 : i64} {
  func.func @_bn_add_relu_kernel(%arg0: i32, %arg1: i32, %arg2: memref<1x8x8x128xf32, #tpu.memory_space<vmem>>, %arg3: memref<1x128xf32, #tpu.memory_space<vmem>>, %arg4: memref<1x128xf32, #tpu.memory_space<vmem>>, %arg5: memref<1x8x8x128xf32, #tpu.memory_space<vmem>>, %arg6: memref<1x128xf32, #tpu.memory_space<vmem>>, %arg7: memref<1x128xf32, #tpu.memory_space<vmem>>, %arg8: memref<1x8x8x128xf32, #tpu.memory_space<vmem>>) attributes {dimension_semantics = [#tpu.dimension_semantics<parallel>, #tpu.dimension_semantics<parallel>], iteration_bounds = array<i64: 2, 1>, scalar_prefetch = 0 : i64, scratch_operands = 0 : i64, tpu.core_type = #tpu.core_type<tc>, window_params = [{transform_indices = @transform_0, window_bounds = array<i64: 1, 8, 8, 128>}, {pipeline_mode = #tpu.pipeline_mode<synchronous>, transform_indices = @transform_1, window_bounds = array<i64: 1, 128>}, {pipeline_mode = #tpu.pipeline_mode<synchronous>, transform_indices = @transform_2, window_bounds = array<i64: 1, 128>}, {transform_indices = @transform_3, window_bounds = array<i64: 1, 8, 8, 128>}, {pipeline_mode = #tpu.pipeline_mode<synchronous>, transform_indices = @transform_4, window_bounds = array<i64: 1, 128>}, {pipeline_mode = #tpu.pipeline_mode<synchronous>, transform_indices = @transform_5, window_bounds = array<i64: 1, 128>}, {transform_indices = @transform_6, window_bounds = array<i64: 1, 8, 8, 128>}]} {
    %c0 = arith.constant 0 : index
    %c0_0 = arith.constant 0 : index
    %c0_1 = arith.constant 0 : index
    %c0_2 = arith.constant 0 : index
    %0 = vector.load %arg2[%c0, %c0_0, %c0_1, %c0_2] : memref<1x8x8x128xf32, #tpu.memory_space<vmem>>, vector<1x8x8x128xf32>
    %c0_3 = arith.constant 0 : index
    %c0_4 = arith.constant 0 : index
    %1 = vector.load %arg3[%c0_3, %c0_4] : memref<1x128xf32, #tpu.memory_space<vmem>>, vector<1x128xf32>
    %2 = vector.shape_cast %1 : vector<1x128xf32> to vector<1x1x1x128xf32>
    %3 = vector.broadcast %2 : vector<1x1x1x128xf32> to vector<1x8x8x128xf32>
    %4 = arith.mulf %0, %3 : vector<1x8x8x128xf32>
    %c0_5 = arith.constant 0 : index
    %c0_6 = arith.constant 0 : index
    %5 = vector.load %arg4[%c0_5, %c0_6] : memref<1x128xf32, #tpu.memory_space<vmem>>, vector<1x128xf32>
    %6 = vector.shape_cast %5 : vector<1x128xf32> to vector<1x1x1x128xf32>
    %7 = vector.broadcast %6 : vector<1x1x1x128xf32> to vector<1x8x8x128xf32>
    %8 = arith.addf %4, %7 : vector<1x8x8x128xf32>
    %c0_7 = arith.constant 0 : index
    %c0_8 = arith.constant 0 : index
    %c0_9 = arith.constant 0 : index
    %c0_10 = arith.constant 0 : index
    %9 = vector.load %arg5[%c0_7, %c0_8, %c0_9, %c0_10] : memref<1x8x8x128xf32, #tpu.memory_space<vmem>>, vector<1x8x8x128xf32>
    %c0_11 = arith.constant 0 : index
    %c0_12 = arith.constant 0 : index
    %10 = vector.load %arg6[%c0_11, %c0_12] : memref<1x128xf32, #tpu.memory_space<vmem>>, vector<1x128xf32>
    %11 = vector.shape_cast %10 : vector<1x128xf32> to vector<1x1x1x128xf32>
    %12 = vector.broadcast %11 : vector<1x1x1x128xf32> to vector<1x8x8x128xf32>
    %13 = arith.mulf %9, %12 : vector<1x8x8x128xf32>
    %c0_13 = arith.constant 0 : index
    %c0_14 = arith.constant 0 : index
    %14 = vector.load %arg7[%c0_13, %c0_14] : memref<1x128xf32, #tpu.memory_space<vmem>>, vector<1x128xf32>
    %15 = vector.shape_cast %14 : vector<1x128xf32> to vector<1x1x1x128xf32>
    %16 = vector.broadcast %15 : vector<1x1x1x128xf32> to vector<1x8x8x128xf32>
    %17 = arith.addf %13, %16 : vector<1x8x8x128xf32>
    %18 = arith.addf %8, %17 : vector<1x8x8x128xf32>
    %cst = arith.constant 0.000000e+00 : f32
    %19 = vector.broadcast %cst : f32 to vector<1x8x8x128xf32>
    %20 = arith.maximumf %18, %19 : vector<1x8x8x128xf32>
    %c0_15 = arith.constant 0 : index
    %c0_16 = arith.constant 0 : index
    %c0_17 = arith.constant 0 : index
    %c0_18 = arith.constant 0 : index
    %21 = vector.load %arg8[%c0_15, %c0_16, %c0_17, %c0_18] : memref<1x8x8x128xf32, #tpu.memory_space<vmem>>, vector<1x8x8x128xf32>
    tpu.vector_store %arg8[%c0_15, %c0_16, %c0_17, %c0_18], %20 {strides = array<i32>} : memref<1x8x8x128xf32, #tpu.memory_space<vmem>>, vector<1x8x8x128xf32>,
    return
  }
  func.func @transform_0(%arg0: i32, %arg1: i32) -> (i32, i32, i32, i32) {
    %c0_i32 = arith.constant 0 : i32
    %c0_i32_0 = arith.constant 0 : i32
    %c0_i32_1 = arith.constant 0 : i32
    return %arg0, %arg1, %c0_i32, %c0_i32_0 : i32, i32, i32, i32
  }
  func.func @transform_1(%arg0: i32, %arg1: i32) -> (i32, i32) {
    %c0_i32 = arith.constant 0 : i32
    %c0_i32_0 = arith.constant 0 : i32
    %c0_i32_1 = arith.constant 0 : i32
    return %c0_i32, %c0_i32_0 : i32, i32
  }
  func.func @transform_2(%arg0: i32, %arg1: i32) -> (i32, i32) {
    %c0_i32 = arith.constant 0 : i32
    %c0_i32_0 = arith.constant 0 : i32
    %c0_i32_1 = arith.constant 0 : i32
    return %c0_i32, %c0_i32_0 : i32, i32
  }
  func.func @transform_3(%arg0: i32, %arg1: i32) -> (i32, i32, i32, i32) {
    %c0_i32 = arith.constant 0 : i32
    %c0_i32_0 = arith.constant 0 : i32
    %c0_i32_1 = arith.constant 0 : i32
    return %arg0, %arg1, %c0_i32, %c0_i32_0 : i32, i32, i32, i32
  }
  func.func @transform_4(%arg0: i32, %arg1: i32) -> (i32, i32) {
    %c0_i32 = arith.constant 0 : i32
    %c0_i32_0 = arith.constant 0 : i32
    %c0_i32_1 = arith.constant 0 : i32
    return %c0_i32, %c0_i32_0 : i32, i32
  }
  func.func @transform_5(%arg0: i32, %arg1: i32) -> (i32, i32) {
    %c0_i32 = arith.constant 0 : i32
    %c0_i32_0 = arith.constant 0 : i32
    %c0_i32_1 = arith.constant 0 : i32
    return %c0_i32, %c0_i32_0 : i32, i32
  }
  func.func @transform_6(%arg0: i32, %arg1: i32) -> (i32, i32, i32, i32) {
    %c0_i32 = arith.constant 0 : i32
    %c0_i32_0 = arith.constant 0 : i32
    %c0_i32_1 = arith.constant 0 : i32
    return %arg0, %arg1, %c0_i32, %c0_i32_0 : i32, i32, i32, i32
  }
}

</mosaic_0001>

<llo_original>
// kernel: residual_block_forward.3
$region0: #{residual_block_forward.3}
  #allocation0 [shape = 'u32[]', space=smem, size = 0x4, offset = 0x4, fixed_abs, tag = 'smem constant byte address 0x4 - core index']
  #allocation1 [shape = 'u32[144,128]{1,0:T(1,128)}', space=vmem, size = 0x12000, scoped, tag = 'internal scratch']
  %s0 = inlined_call_operand.vmem [shape: bf16[2,8,8,128], index: 0, kind: input, shape index: {}]
  %s1 = inlined_call_operand.vmem [shape: bf16[128,256], index: 1, kind: input, shape index: {}]
  %s2 = inlined_call_operand.vmem [shape: bf16[2,8,8,128], index: 2, kind: output, shape index: {0}]
  %s3 = inlined_call_operand.vmem [shape: f32[2,8,8,128], index: 3, kind: output, shape index: {1}]
  %s4 = inlined_call_operand.vmem [shape: f32[2,1,1,128], index: 4, kind: output, shape index: {2}]
  %s5 = inlined_call_operand.vmem [shape: f32[2,1,1,128], index: 5, kind: output, shape index: {3}]
  %s6 = inlined_call_operand.vmem [shape: f32[2,1,1,128], index: 6, kind: output, shape index: {4}]
  %s7 = inlined_call_operand.vmem [shape: f32[2,1,1,128], index: 7, kind: output, shape index: {5}]
  %8 = xla_tuple %s2, %s3, %s4, %s5, %s6, %s7
  %s9 = sld [smem:[#allocation0]]
  $region81: #{residual_block_forward.3} parent=0
    _
  %s11 = ssub.s32 1, %s9
  %s12 = scalar_select 0, %s11, %s9
  loop: start=0, step=1, limit=4
  $region2: #{residual_block_forward.3} parent=0 // loop_pre_header
    _
  $region3: #{residual_block_forward.3} parent=0 // loop_header
    %s14 = sphi 0, %s18
    %p15 = scmp.ge.s32.totalorder %s14, 4
    %s21 = sphi 0, %s33
    %s22 = sphi 0, %s29
    %s23 = sphi 0, %s21
    %s24 = sphi 0, %s22
    %s25 = sphi 0, %s23
    %s26 = sphi 0, %s24
    %s38 = sphi 0, %s40
    %s41 = sphi 0, %s38
    %s42 = sphi 0, %s41
    %s58 = sphi 0, %s42
    %s62 = sphi 0, %s62
    %s64 = sphi 0, %s62
    %s65 = sphi 0, %s64
    %s79 = sphi 0, %s65
    %s87 = sphi 0, %s89
    %s90 = sphi 0, %s87
    %s91 = sphi 0, %s90
    %s107 = sphi 0, %s91
    %s115 = sphi 0, %s117
    %s118 = sphi 0, %s115
    %s119 = sphi 0, %s118
    %s135 = sphi 0, %s119
    %s143 = sphi 0, %s145
    %s146 = sphi 0, %s143
    %s147 = sphi 0, %s146
    %s163 = sphi 0, %s147
    %s171 = sphi 0, %s173
    %s174 = sphi 0, %s171
    %s175 = sphi 0, %s174
    %s191 = sphi 0, %s175
    %s199 = sphi 0, %s201
    %s202 = sphi 0, %s199
    %s203 = sphi 0, %s202
    %s219 = sphi 0, %s203
    %s227 = sphi 0, %s229
    %s230 = sphi 0, %s227
    %s231 = sphi 0, %s230
    %s247 = sphi 0, %s231
  $region4: #{residual_block_forward.3} parent=0 // loop_header_branch
    %17 = sbr.rel (%p15) target = $region8
  $region5: #{residual_block_forward.3} parent=0 // loop_body
    %s19 = ssub.s32 %s14, 1
    %s20 = ssub.s32 %s14, 2
    %s27 = sadd.s32 1, %s22
    %p28 = scmp.ge.s32.totalorder %s27, 1
    %s29 = scalar_select %p28, 0, %s27
    %s30 = sadd.s32 1, %s21
    %s31 = scalar_select %p28, %s30, %s21
    %p32 = scmp.ge.s32.totalorder %s31, 2
    %s33 = scalar_select %p32, 0, %s31
    %s34 = ssub.s32 %s21, %s33
    %s35 = ssub.s32 %s22, %s29
    %s36 = sor.u32 %s34, %s35
    %p37 = scmp.eq.s32.totalorder %s36, 0
    %s39 = sadd.s32 %s38, 1
    %s40 = scalar_select %p37, %s38, %s39
    %p43 = pneg %p37
    %p44 = scmp.eq.s32.totalorder %s14, 1
    %p45 = por %p43, %p44
    %p46 = scmp.ne.s32.totalorder %s38, %s41
    %p47 = scmp.eq.s32.totalorder %s14, 0
    %p48 = por %p46, %p47
    %p49 = scmp.ne.s32.totalorder %s38, %s41
    %p50 = scmp.eq.s32.totalorder %s19, 1
    %p51 = por %p49, %p50
    %p52 = scmp.ne.s32.totalorder %s41, %s42
    %p53 = scmp.eq.s32.totalorder %s19, 0
    %p54 = por %p52, %p53
    %p55 = scmp.ne.s32.totalorder %s41, %s42
    %p56 = scmp.eq.s32.totalorder %s20, 1
    %p57 = por %p55, %p56
    %p59 = scmp.ne.s32.totalorder %s42, %s58
    %p60 = scmp.eq.s32.totalorder %s20, 0
    %p61 = por %p59, %p60
    %s63 = sadd.s32 %s62, 1
    %p66 = scmp.eq.s32.totalorder %s14, 1
    %p67 = scmp.ne.s32.totalorder %s62, %s64
    %p68 = scmp.eq.s32.totalorder %s14, 0
    %p69 = por %p67, %p68
    %p70 = scmp.ne.s32.totalorder %s62, %s64
    %p71 = scmp.eq.s32.totalorder %s19, 1
    %p72 = por %p70, %p71
    %p73 = scmp.ne.s32.totalorder %s64, %s65
    %p74 = scmp.eq.s32.totalorder %s19, 0
    %p75 = por %p73, %p74
    %p76 = scmp.ne.s32.totalorder %s64, %s65
    %p77 = scmp.eq.s32.totalorder %s20, 1
    %p78 = por %p76, %p77
    %p80 = scmp.ne.s32.totalorder %s65, %s79
    %p81 = scmp.eq.s32.totalorder %s20, 0
    %p82 = por %p80, %p81
    %s83 = ssub.s32 %s21, %s33
    %s84 = ssub.s32 %s22, %s29
    %s85 = sor.u32 %s83, %s84
    %p86 = scmp.eq.s32.totalorder %s85, 0
    %s88 = sadd.s32 %s87, 1
    %s89 = scalar_select %p86, %s87, %s88
    %p92 = pneg %p86
    %p93 = scmp.eq.s32.totalorder %s14, 1
    %p94 = por %p92, %p93
    %p95 = scmp.ne.s32.totalorder %s87, %s90
    %p96 = scmp.eq.s32.totalorder %s14, 0
    %p97 = por %p95, %p96
    %p98 = scmp.ne.s32.totalorder %s87, %s90
    %p99 = scmp.eq.s32.totalorder %s19, 1
    %p100 = por %p98, %p99
    %p101 = scmp.ne.s32.totalorder %s90, %s91
    %p102 = scmp.eq.s32.totalorder %s19, 0
    %p103 = por %p101, %p102
    %p104 = scmp.ne.s32.totalorder %s90, %s91
    %p105 = scmp.eq.s32.totalorder %s20, 1
    %p106 = por %p104, %p105
    %p108 = scmp.ne.s32.totalorder %s91, %s107
    %p109 = scmp.eq.s32.totalorder %s20, 0
    %p110 = por %p108, %p109
    %s111 = ssub.s32 %s21, %s33
    %s112 = ssub.s32 %s22, %s29
    %s113 = sor.u32 %s111, %s112
    %p114 = scmp.eq.s32.totalorder %s113, 0
    %s116 = sadd.s32 %s115, 1
    %s117 = scalar_select %p114, %s115, %s116
    %p120 = pneg %p114
    %p121 = scmp.eq.s32.totalorder %s14, 1
    %p122 = por %p120, %p121
    %p123 = scmp.ne.s32.totalorder %s115, %s118
    %p124 = scmp.eq.s32.totalorder %s14, 0
    %p125 = por %p123, %p124
    %p126 = scmp.ne.s32.totalorder %s115, %s118
    %p127 = scmp.eq.s32.totalorder %s19, 1
    %p128 = por %p126, %p127
    %p129 = scmp.ne.s32.totalorder %s118, %s119
    %p130 = scmp.eq.s32.totalorder %s19, 0
    %p131 = por %p129, %p130
    %p132 = scmp.ne.s32.totalorder %s118, %s119
    %p133 = scmp.eq.s32.totalorder %s20, 1
    %p134 = por %p132, %p133
    %p136 = scmp.ne.s32.totalorder %s119, %s135
    %p137 = scmp.eq.s32.totalorder %s20, 0
    %p138 = por %p136, %p137
    %s139 = ssub.s32 %s21, %s33
    %s140 = ssub.s32 %s22, %s29
    %s141 = sor.u32 %s139, %s140
    %p142 = scmp.eq.s32.totalorder %s141, 0
    %s144 = sadd.s32 %s143, 1
    %s145 = scalar_select %p142, %s143, %s144
    %p148 = pneg %p142
    %p149 = scmp.eq.s32.totalorder %s14, 1
    %p150 = por %p148, %p149
    %p151 = scmp.ne.s32.totalorder %s143, %s146
    %p152 = scmp.eq.s32.totalorder %s14, 0
    %p153 = por %p151, %p152
    %p154 = scmp.ne.s32.totalorder %s143, %s146
    %p155 = scmp.eq.s32.totalorder %s19, 1
    %p156 = por %p154, %p155
    %p157 = scmp.ne.s32.totalorder %s146, %s147
    %p158 = scmp.eq.s32.totalorder %s19, 0
    %p159 = por %p157, %p158
    %p160 = scmp.ne.s32.totalorder %s146, %s147
    %p161 = scmp.eq.s32.totalorder %s20, 1
    %p162 = por %p160, %p161
    %p164 = scmp.ne.s32.totalorder %s147, %s163
    %p165 = scmp.eq.s32.totalorder %s20, 0
    %p166 = por %p164, %p165
    %s167 = ssub.s32 %s21, %s33
    %s168 = ssub.s32 %s22, %s29
    %s169 = sor.u32 %s167, %s168
    %p170 = scmp.eq.s32.totalorder %s169, 0
    %s172 = sadd.s32 %s171, 1
    %s173 = scalar_select %p170, %s171, %s172
    %p176 = pneg %p170
    %p177 = scmp.eq.s32.totalorder %s14, 1
    %p178 = por %p176, %p177
    %p179 = scmp.ne.s32.totalorder %s171, %s174
    %p180 = scmp.eq.s32.totalorder %s14, 0
    %p181 = por %p179, %p180
    %p182 = scmp.ne.s32.totalorder %s171, %s174
    %p183 = scmp.eq.s32.totalorder %s19, 1
    %p184 = por %p182, %p183
    %p185 = scmp.ne.s32.totalorder %s174, %s175
    %p186 = scmp.eq.s32.totalorder %s19, 0
    %p187 = por %p185, %p186
    %p188 = scmp.ne.s32.totalorder %s174, %s175
    %p189 = scmp.eq.s32.totalorder %s20, 1
    %p190 = por %p188, %p189
    %p192 = scmp.ne.s32.totalorder %s175, %s191
    %p193 = scmp.eq.s32.totalorder %s20, 0
    %p194 = por %p192, %p193
    %s195 = ssub.s32 %s21, %s33
    %s196 = ssub.s32 %s22, %s29
    %s197 = sor.u32 %s195, %s196
    %p198 = scmp.eq.s32.totalorder %s197, 0
    %s200 = sadd.s32 %s199, 1
    %s201 = scalar_select %p198, %s199, %s200
    %p204 = pneg %p198
    %p205 = scmp.eq.s32.totalorder %s14, 1
    %p206 = por %p204, %p205
    %p207 = scmp.ne.s32.totalorder %s199, %s202
    %p208 = scmp.eq.s32.totalorder %s14, 0
    %p209 = por %p207, %p208
    %p210 = scmp.ne.s32.totalorder %s199, %s202
    %p211 = scmp.eq.s32.totalorder %s19, 1
    %p212 = por %p210, %p211
    %p213 = scmp.ne.s32.totalorder %s202, %s203
    %p214 = scmp.eq.s32.totalorder %s19, 0
    %p215 = por %p213, %p214
    %p216 = scmp.ne.s32.totalorder %s202, %s203
    %p217 = scmp.eq.s32.totalorder %s20, 1
    %p218 = por %p216, %p217
    %p220 = scmp.ne.s32.totalorder %s203, %s219
    %p221 = scmp.eq.s32.totalorder %s20, 0
    %p222 = por %p220, %p221
    %s223 = ssub.s32 %s21, %s33
    %s224 = ssub.s32 %s22, %s29
    %s225 = sor.u32 %s223, %s224
    %p226 = scmp.eq.s32.totalorder %s225, 0
    %s228 = sadd.s32 %s227, 1
    %s229 = scalar_select %p226, %s227, %s228
    %p232 = pneg %p226
    %p233 = scmp.eq.s32.totalorder %s14, 1
    %p234 = por %p232, %p233
    %p235 = scmp.ne.s32.totalorder %s227, %s230
    %p236 = scmp.eq.s32.totalorder %s14, 0
    %p237 = por %p235, %p236
    %p238 = scmp.ne.s32.totalorder %s227, %s230
    %p239 = scmp.eq.s32.totalorder %s19, 1
    %p240 = por %p238, %p239
    %p241 = scmp.ne.s32.totalorder %s230, %s231
    %p242 = scmp.eq.s32.totalorder %s19, 0
    %p243 = por %p241, %p242
    %p244 = scmp.ne.s32.totalorder %s230, %s231
    %p245 = scmp.eq.s32.totalorder %s20, 1
    %p246 = por %p244, %p245
    %p248 = scmp.ne.s32.totalorder %s231, %s247
    %p249 = scmp.eq.s32.totalorder %s20, 0
    %p250 = por %p248, %p249
    %p251 = scmp.le.s32.totalorder 1, %s14
    %p252 = scmp.lt.s32.totalorder %s14, 3
    %p253 = pnand %p251, %p252
    %p254 = pneg %p253
    // Predicated region
    $region9: #{residual_block_forward.3} parent=5 // pred_check
      _
    $region10: #{residual_block_forward.3} parent=5 // pred_check_branch
      %256 = sbr.rel (%p253) target = $region12
    $region11: #{residual_block_forward.3} parent=5 // pred_region
      %s257 = ssub.s32 %s14, 1
      // Predicated region
      $region13: #{residual_block_forward.3} parent=11 // pred_check
        %p258 = pneg %p75
      $region14: #{residual_block_forward.3} parent=11 // pred_check_branch
        %260 = sbr.rel (%p258) target = $region16
      $region15: #{residual_block_forward.3} parent=11 // pred_region
        _
      $region16: #{residual_block_forward.3} parent=11 // pred_fallthru
        _
    $region12: #{residual_block_forward.3} parent=5 // pred_fallthru
      _
    %p261 = scmp.lt.s32.totalorder %s14, 2
    // Predicated region
    $region17: #{residual_block_forward.3} parent=5 // pred_check
      %p262 = pneg %p261
    $region18: #{residual_block_forward.3} parent=5 // pred_check_branch
      %264 = sbr.rel (%p262) target = $region20
    $region19: #{residual_block_forward.3} parent=5 // pred_region
      // Predicated region
      $region21: #{residual_block_forward.3} parent=19 // pred_check
        %p265 = pneg %p48
      $region22: #{residual_block_forward.3} parent=19 // pred_check_branch
        %267 = sbr.rel (%p265) target = $region24
      $region23: #{residual_block_forward.3} parent=19 // pred_region
        %s268 = smul.u32 8, %s22
        %p269 = scmp.lt.s32.totalorder %s21, 1
        %s270 = scalar_select %p269, %s21, 1
        %p271 = scmp.lt.s32.totalorder %s268, 7
        %s272 = scalar_select %p271, %s268, 7
        %s273 = smul.addr %s270, 8
        %s274 = sadd.s32 %s272, %s273
        %s275 = smul.addr %s274, 4
        %s276 = scalar_lea.vmem %s0, %s275
        %s277 = smul.u32 8, %s22
      $region24: #{residual_block_forward.3} parent=19 // pred_fallthru
        _
    $region20: #{residual_block_forward.3} parent=5 // pred_fallthru
      _
    %p278 = scmp.le.s32.totalorder 1, %s14
    %p279 = scmp.lt.s32.totalorder %s14, 3
    %p280 = pnand %p278, %p279
    %p281 = pneg %p280
    // Predicated region
    $region25: #{residual_block_forward.3} parent=5 // pred_check
      _
    $region26: #{residual_block_forward.3} parent=5 // pred_check_branch
      %283 = sbr.rel (%p280) target = $region28
    $region27: #{residual_block_forward.3} parent=5 // pred_region
      %s284 = ssub.s32 %s14, 1
      %s285 = smul.u32 8, %s24
      %p286 = scmp.lt.s32.totalorder %s23, 1
      %s287 = scalar_select %p286, %s23, 1
      %p288 = scmp.lt.s32.totalorder %s285, 7
      %s289 = scalar_select %p288, %s285, 7
      %s290 = smul.addr %s287, 8
      %s291 = sadd.s32 %s289, %s290
      %s292 = smul.addr %s291, 4
      %s293 = scalar_lea.vmem %s0, %s292
      %p294 = pneg %p54
      %p295 = pneg %p51
      %p296 = pneg %p75
      %p297 = pneg %p72
      %p298 = pneg %p103
      %p299 = pneg %p100
      %s300 = smul.u32 8, %s24
      %p301 = scmp.lt.s32.totalorder %s23, 1
      %s302 = scalar_select %p301, %s23, 1
      %p303 = scmp.lt.s32.totalorder %s300, 7
      %s304 = scalar_select %p303, %s300, 7
      %s305 = smul.addr %s302, 8
      %s306 = sadd.s32 %s304, %s305
      %s307 = smul.addr %s306, 4
      %s308 = scalar_lea.vmem %s2, %s307
      %p309 = pneg %p131
      %p310 = pneg %p128
      %s311 = smul.u32 8, %s24
      %p312 = scmp.lt.s32.totalorder %s23, 1
      %s313 = scalar_select %p312, %s23, 1
      %p314 = scmp.lt.s32.totalorder %s311, 7
      %s315 = scalar_select %p314, %s311, 7
      %s316 = smul.addr %s313, 8
      %s317 = sadd.s32 %s315, %s316
      %s318 = smul.addr %s317, 8
      %s319 = scalar_lea.vmem %s3, %s318
      %p320 = pneg %p159
      %p321 = pneg %p156
      %p322 = scmp.lt.s32.totalorder %s23, 1
      %s323 = scalar_select %p322, %s23, 1
      %p324 = scmp.lt.s32.totalorder %s24, 0
      %s325 = scalar_select %p324, %s24, 0
      %s326 = sadd.s32 %s325, %s323
      %s327 = scalar_lea.vmem %s4, %s326
      %p328 = pneg %p187
      %p329 = pneg %p184
      %p330 = scmp.lt.s32.totalorder %s23, 1
      %s331 = scalar_select %p330, %s23, 1
      %p332 = scmp.lt.s32.totalorder %s24, 0
      %s333 = scalar_select %p332, %s24, 0
      %s334 = sadd.s32 %s333, %s331
      %s335 = scalar_lea.vmem %s5, %s334
      %p336 = pneg %p215
      %p337 = pneg %p212
      %p338 = scmp.lt.s32.totalorder %s23, 1
      %s339 = scalar_select %p338, %s23, 1
      %p340 = scmp.lt.s32.totalorder %s24, 0
      %s341 = scalar_select %p340, %s24, 0
      %s342 = sadd.s32 %s341, %s339
      %s343 = scalar_lea.vmem %s6, %s342
      %p344 = pneg %p243
      %p345 = pneg %p240
      %p346 = scmp.lt.s32.totalorder %s23, 1
      %s347 = scalar_select %p346, %s23, 1
      %p348 = scmp.lt.s32.totalorder %s24, 0
      %s349 = scalar_select %p348, %s24, 0
      %s350 = sadd.s32 %s349, %s347
      %s351 = scalar_lea.vmem %s7, %s350
      %s352 = smul.u32 8, %s24
      %p353 = scmp.lt.s32.totalorder %s23, 1
      %s354 = scalar_select %p353, %s23, 1
      %p355 = scmp.lt.s32.totalorder %s352, 7
      %s356 = scalar_select %p355, %s352, 7
      %s357 = smul.addr %s354, 8
      %s358 = sadd.s32 %s356, %s357
      %s359 = smul.addr %s358, 4
      %s360 = scalar_lea.vmem %s0, %s359
      %s361 = smul.u32 8, %s24
      %s362 = smul.u32 8, %s24
      %p363 = scmp.lt.s32.totalorder %s23, 1
      %s364 = scalar_select %p363, %s23, 1
      %p365 = scmp.lt.s32.totalorder %s362, 7
      %s366 = scalar_select %p365, %s362, 7
      %s367 = smul.addr %s364, 8
      %s368 = sadd.s32 %s366, %s367
      %s369 = smul.addr %s368, 4
      %s370 = scalar_lea.vmem %s2, %s369
      %s371 = smul.u32 8, %s24
      %s372 = smul.u32 8, %s24
      %p373 = scmp.lt.s32.totalorder %s23, 1
      %s374 = scalar_select %p373, %s23, 1
      %p375 = scmp.lt.s32.totalorder %s372, 7
      %s376 = scalar_select %p375, %s372, 7
      %s377 = smul.addr %s374, 8
      %s378 = sadd.s32 %s376, %s377
      %s379 = smul.addr %s378, 8
      %s380 = scalar_lea.vmem %s3, %s379
      %s381 = smul.u32 8, %s24
      %p382 = scmp.lt.s32.totalorder %s23, 1
      %s383 = scalar_select %p382, %s23, 1
      %p384 = scmp.lt.s32.totalorder %s24, 0
      %s385 = scalar_select %p384, %s24, 0
      %s386 = sadd.s32 %s385, %s383
      %s387 = scalar_lea.vmem %s4, %s386
      %p388 = scmp.lt.s32.totalorder %s23, 1
      %s389 = scalar_select %p388, %s23, 1
      %p390 = scmp.lt.s32.totalorder %s24, 0
      %s391 = scalar_select %p390, %s24, 0
      %s392 = sadd.s32 %s391, %s389
      %s393 = scalar_lea.vmem %s5, %s392
      %p394 = scmp.lt.s32.totalorder %s23, 1
      %s395 = scalar_select %p394, %s23, 1
      %p396 = scmp.lt.s32.totalorder %s24, 0
      %s397 = scalar_select %p396, %s24, 0
      %s398 = sadd.s32 %s397, %s395
      %s399 = scalar_lea.vmem %s6, %s398
      %p400 = scmp.lt.s32.totalorder %s23, 1
      %s401 = scalar_select %p400, %s23, 1
      %p402 = scmp.lt.s32.totalorder %s24, 0
      %s403 = scalar_select %p402, %s24, 0
      %s404 = sadd.s32 %s403, %s401
      %s405 = scalar_lea.vmem %s7, %s404
      %v407 = vld [vmem:[%s360] sm:$0xf]
      %v408 = vld [vmem:[%s360 + $0x4] sm:$0xf]
      %v409 = vld [vmem:[%s360 + $0x8] sm:$0xf]
      %v410 = vld [vmem:[%s360 + $0xc] sm:$0xf]
      %v411 = vld [vmem:[%s360 + $0x10] sm:$0xf]
      %v412 = vld [vmem:[%s360 + $0x14] sm:$0xf]
      %v413 = vld [vmem:[%s360 + $0x18] sm:$0xf]
      %v414 = vld [vmem:[%s360 + $0x1c] sm:$0xf]
      %v415 = vld [vmem:[%s1] sm:$0xff]
      %v416 = vld [vmem:[%s1 + $0x8] sm:$0xff]
      %v417 = vld [vmem:[%s1 + $0x10] sm:$0xff]
      %v418 = vld [vmem:[%s1 + $0x18] sm:$0xff]
      %v419 = vld [vmem:[%s1 + $0x20] sm:$0xff]
      %v420 = vld [vmem:[%s1 + $0x28] sm:$0xff]
      %v421 = vld [vmem:[%s1 + $0x30] sm:$0xff]
      %v422 = vld [vmem:[%s1 + $0x38] sm:$0xff]
      %v423 = vld [vmem:[%s1 + $0x40] sm:$0xff]
      %v424 = vld [vmem:[%s1 + $0x48] sm:$0xff]
      %v425 = vld [vmem:[%s1 + $0x50] sm:$0xff]
      %v426 = vld [vmem:[%s1 + $0x58] sm:$0xff]
      %v427 = vld [vmem:[%s1 + $0x60] sm:$0xff]
      %v428 = vld [vmem:[%s1 + $0x68] sm:$0xff]
      %v429 = vld [vmem:[%s1 + $0x70] sm:$0xff]
      %v430 = vld [vmem:[%s1 + $0x78] sm:$0xff]
      %v439 = vunpack.c.l.b16 %v407
      %v440 = vunpack.c.l.b16 %v408
      %v441 = vunpack.c.l.b16 %v409
      %v442 = vunpack.c.l.b16 %v410
      %v443 = vunpack.c.l.b16 %v411
      %v444 = vunpack.c.l.b16 %v412
      %v445 = vunpack.c.l.b16 %v413
      %v446 = vunpack.c.l.b16 %v414
      %v447 = vpack.c.b16 %v440, %v439
      %v448 = vpack.c.b16 %v442, %v441
      %v449 = vpack.c.b16 %v444, %v443
      %v450 = vpack.c.b16 %v446, %v445
      %v471 = vunpack.c.l.b16 %v415
      %v472 = vunpack.c.h.b16 %v415
      %v473 = vunpack.c.l.b16 %v416
      %v474 = vunpack.c.h.b16 %v416
      %v475 = vunpack.c.l.b16 %v417
      %v476 = vunpack.c.h.b16 %v417
      %v477 = vunpack.c.l.b16 %v418
      %v478 = vunpack.c.h.b16 %v418
      %v479 = vunpack.c.l.b16 %v419
      %v480 = vunpack.c.h.b16 %v419
      %v481 = vunpack.c.l.b16 %v420
      %v482 = vunpack.c.h.b16 %v420
      %v483 = vunpack.c.l.b16 %v421
      %v484 = vunpack.c.h.b16 %v421
      %v485 = vunpack.c.l.b16 %v422
      %v486 = vunpack.c.h.b16 %v422
      %v487 = vunpack.c.l.b16 %v423
      %v488 = vunpack.c.h.b16 %v423
      %v489 = vunpack.c.l.b16 %v424
      %v490 = vunpack.c.h.b16 %v424
      %v491 = vunpack.c.l.b16 %v425
      %v492 = vunpack.c.h.b16 %v425
      %v493 = vunpack.c.l.b16 %v426
      %v494 = vunpack.c.h.b16 %v426
      %v495 = vunpack.c.l.b16 %v427
      %v496 = vunpack.c.h.b16 %v427
      %v497 = vunpack.c.l.b16 %v428
      %v498 = vunpack.c.h.b16 %v428
      %v499 = vunpack.c.l.b16 %v429
      %v500 = vunpack.c.h.b16 %v429
      %v501 = vunpack.c.l.b16 %v430
      %v502 = vunpack.c.h.b16 %v430
      %v503 = vpack.c.b16 %v473, %v471
      %v504 = vpack.c.b16 %v474, %v472
      %v505 = vpack.c.b16 %v477, %v475
      %v506 = vpack.c.b16 %v478, %v476
      %v507 = vpack.c.b16 %v481, %v479
      %v508 = vpack.c.b16 %v482, %v480
      %v509 = vpack.c.b16 %v485, %v483
      %v510 = vpack.c.b16 %v486, %v484
      %v511 = vpack.c.b16 %v489, %v487
      %v512 = vpack.c.b16 %v490, %v488
      %v513 = vpack.c.b16 %v493, %v491
      %v514 = vpack.c.b16 %v494, %v492
      %v515 = vpack.c.b16 %v497, %v495
      %v516 = vpack.c.b16 %v498, %v496
      %v517 = vpack.c.b16 %v501, %v499
      %v518 = vpack.c.b16 %v502, %v500
      %535 = vmatprep.subr.bf16.mxu0 %v504
      %536 = vmatpush1.bf16.msra.mxu0 %v503
      %537 = vmatprep.subr.bf16.mxu0 %v506
      %538 = vmatpush1.bf16.msra.mxu0 %v505
      %539 = vmatprep.subr.bf16.mxu0 %v508
      %540 = vmatpush1.bf16.msra.mxu0 %v507
      %541 = vmatprep.subr.bf16.mxu0 %v510
      %542 = vmatpush1.bf16.msra.mxu0 %v509
      %543 = vmatprep.subr.bf16.mxu0 %v512
      %544 = vmatpush1.bf16.msra.mxu0 %v511
      %545 = vmatprep.subr.bf16.mxu0 %v514
      %546 = vmatpush1.bf16.msra.mxu0 %v513
      %547 = vmatprep.subr.bf16.mxu0 %v516
      %548 = vmatpush1.bf16.msra.mxu0 %v515
      %549 = vmatprep.subr.bf16.mxu0 %v518
      %550 = vmatpush1.bf16.msra.mxu0 %v517
      %551 = vmatprep.subr.bf16.mxu0 0
      %552 = vmatpush1.bf16.msra.mxu0 0
      %553 = vmatprep.subr.bf16.mxu0 0
      %554 = vmatpush1.bf16.msra.mxu0 0
      %555 = vmatprep.subr.bf16.mxu0 0
      %556 = vmatpush1.bf16.msra.mxu0 0
      %557 = vmatprep.subr.bf16.mxu0 0
      %558 = vmatpush1.bf16.msra.mxu0 0
      %559 = vmatprep.subr.bf16.mxu0 0
      %560 = vmatpush1.bf16.msra.mxu0 0
      %561 = vmatprep.subr.bf16.mxu0 0
      %562 = vmatpush1.bf16.msra.mxu0 0
      %563 = vmatprep.subr.bf16.mxu0 0
      %564 = vmatpush1.bf16.msra.mxu0 0
      %565 = vmatprep.subr.bf16.mxu0 0
      %566 = vmatpush1.bf16.msra.mxu0 0
      %567 = vmatprep.mubr.bf16.mxu0 0
      %568 = vmatmul.mubr.bf16.gmra.mrb[0].mxu0 %v447
      %v569 = vpop.f32.mrb[0].mxu0
      %v570 = vadd.f32 0.0, %v569
      %v571 = vpop.f32.mrb[0].mxu0
      %v572 = vadd.f32 0.0, %v571
      %v573 = vpop.f32.mrb[0].mxu0
      %v574 = vadd.f32 0.0, %v573
      %v575 = vpop.f32.mrb[0].mxu0
      %v576 = vadd.f32 0.0, %v575
      %577 = vmatprep.mubr.bf16.mxu0 0
      %578 = vmatmul.mubr.bf16.gmra.mrb[0].mxu0 %v448
      %v579 = vpop.f32.mrb[0].mxu0
      %v580 = vadd.f32 0.0, %v579
      %v581 = vpop.f32.mrb[0].mxu0
      %v582 = vadd.f32 0.0, %v581
      %v583 = vpop.f32.mrb[0].mxu0
      %v584 = vadd.f32 0.0, %v583
      %v585 = vpop.f32.mrb[0].mxu0
      %v586 = vadd.f32 0.0, %v585
      %587 = vmatprep.mubr.bf16.mxu0 0
      %588 = vmatmul.mubr.bf16.gmra.mrb[0].mxu0 %v449
      %v589 = vpop.f32.mrb[0].mxu0
      %v590 = vadd.f32 0.0, %v589
      %v591 = vpop.f32.mrb[0].mxu0
      %v592 = vadd.f32 0.0, %v591
      %v593 = vpop.f32.mrb[0].mxu0
      %v594 = vadd.f32 0.0, %v593
      %v595 = vpop.f32.mrb[0].mxu0
      %v596 = vadd.f32 0.0, %v595
      %597 = vmatprep.mubr.bf16.mxu0 0
      %598 = vmatmul.mubr.bf16.gmra.mrb[0].mxu0 %v450
      %v599 = vpop.f32.mrb[0].mxu0
      %v600 = vadd.f32 0.0, %v599
      %v601 = vpop.f32.mrb[0].mxu0
      %v602 = vadd.f32 0.0, %v601
      %v603 = vpop.f32.mrb[0].mxu0
      %v604 = vadd.f32 0.0, %v603
      %v605 = vpop.f32.mrb[0].mxu0
      %v606 = vadd.f32 0.0, %v605
      %607 = vdwg.mxu0
      %v608 = vpack.c.bf16 %v570, %v570
      %v609 = vpack.c.bf16 %v574, %v574
      %v610 = vpack.c.bf16 %v580, %v580
      %v611 = vpack.c.bf16 %v584, %v584
      %v612 = vpack.c.bf16 %v590, %v590
      %v613 = vpack.c.bf16 %v594, %v594
      %v614 = vpack.c.bf16 %v600, %v600
      %v615 = vpack.c.bf16 %v604, %v604
      %616 = vst [vmem:[%s370] sm:$0xf] %v608
      %617 = vst [vmem:[%s370 + $0x4] sm:$0xf] %v609
      %618 = vst [vmem:[%s370 + $0x8] sm:$0xf] %v610
      %619 = vst [vmem:[%s370 + $0xc] sm:$0xf] %v611
      %620 = vst [vmem:[%s370 + $0x10] sm:$0xf] %v612
      %621 = vst [vmem:[%s370 + $0x14] sm:$0xf] %v613
      %622 = vst [vmem:[%s370 + $0x18] sm:$0xf] %v614
      %623 = vst [vmem:[%s370 + $0x1c] sm:$0xf] %v615
      %624 = vst [vmem:[%s380] sm:$0xff] %v572
      %625 = vst [vmem:[%s380 + $0x8] sm:$0xff] %v576
      %626 = vst [vmem:[%s380 + $0x10] sm:$0xff] %v582
      %627 = vst [vmem:[%s380 + $0x18] sm:$0xff] %v586
      %628 = vst [vmem:[%s380 + $0x20] sm:$0xff] %v592
      %629 = vst [vmem:[%s380 + $0x28] sm:$0xff] %v596
      %630 = vst [vmem:[%s380 + $0x30] sm:$0xff] %v602
      %631 = vst [vmem:[%s380 + $0x38] sm:$0xff] %v606
      %v632 = vadd.f32 %v570, %v574
      %v633 = vadd.f32 %v632, %v580
      %v634 = vadd.f32 %v633, %v584
      %v635 = vadd.f32 %v634, %v590
      %v636 = vadd.f32 %v635, %v594
      %v637 = vadd.f32 %v636, %v600
      %v638 = vadd.f32 %v637, %v604
      %v639 = vrot.slane %v638, 4
      %v640 = vadd.f32 %v638, %v639
      %v641 = vrot.slane %v640, 2
      %v642 = vadd.f32 %v640, %v641
      %v643 = vrot.slane %v642, 1
      %v644 = vadd.f32 %v642, %v643
      %645 = vst [vmem:[%s387] sm:$0x1] %v644
      %v646 = vmul.f32 %v570, %v570
      %v647 = vmul.f32 %v574, %v574
      %v648 = vmul.f32 %v580, %v580
      %v649 = vmul.f32 %v584, %v584
      %v650 = vmul.f32 %v590, %v590
      %v651 = vmul.f32 %v594, %v594
      %v652 = vmul.f32 %v600, %v600
      %v653 = vmul.f32 %v604, %v604
      %v654 = vadd.f32 %v646, %v647
      %v655 = vadd.f32 %v654, %v648
      %v656 = vadd.f32 %v655, %v649
      %v657 = vadd.f32 %v656, %v650
      %v658 = vadd.f32 %v657, %v651
      %v659 = vadd.f32 %v658, %v652
      %v660 = vadd.f32 %v659, %v653
      %v661 = vrot.slane %v660, 4
      %v662 = vadd.f32 %v660, %v661
      %v663 = vrot.slane %v662, 2
      %v664 = vadd.f32 %v662, %v663
      %v665 = vrot.slane %v664, 1
      %v666 = vadd.f32 %v664, %v665
      %667 = vst [vmem:[%s393] sm:$0x1] %v666
      %v668 = vadd.f32 %v572, %v576
      %v669 = vadd.f32 %v668, %v582
      %v670 = vadd.f32 %v669, %v586
      %v671 = vadd.f32 %v670, %v592
      %v672 = vadd.f32 %v671, %v596
      %v673 = vadd.f32 %v672, %v602
      %v674 = vadd.f32 %v673, %v606
      %v675 = vrot.slane %v674, 4
      %v676 = vadd.f32 %v674, %v675
      %v677 = vrot.slane %v676, 2
      %v678 = vadd.f32 %v676, %v677
      %v679 = vrot.slane %v678, 1
      %v680 = vadd.f32 %v678, %v679
      %681 = vst [vmem:[%s399] sm:$0x1] %v680
      %v682 = vmul.f32 %v572, %v572
      %v683 = vmul.f32 %v576, %v576
      %v684 = vmul.f32 %v582, %v582
      %v685 = vmul.f32 %v586, %v586
      %v686 = vmul.f32 %v592, %v592
      %v687 = vmul.f32 %v596, %v596
      %v688 = vmul.f32 %v602, %v602
      %v689 = vmul.f32 %v606, %v606
      %v690 = vadd.f32 %v682, %v683
      %v691 = vadd.f32 %v690, %v684
      %v692 = vadd.f32 %v691, %v685
      %v693 = vadd.f32 %v692, %v686
      %v694 = vadd.f32 %v693, %v687
      %v695 = vadd.f32 %v694, %v688
      %v696 = vadd.f32 %v695, %v689
      %v697 = vrot.slane %v696, 4
      %v698 = vadd.f32 %v696, %v697
      %v699 = vrot.slane %v698, 2
      %v700 = vadd.f32 %v698, %v699
      %v701 = vrot.slane %v700, 1
      %v702 = vadd.f32 %v700, %v701
      %703 = vst [vmem:[%s405] sm:$0x1] %v702
      %s704 = smul.u32 8, %s24
      %p705 = scmp.lt.s32.totalorder %s23, 1
      %s706 = scalar_select %p705, %s23, 1
      %p707 = scmp.lt.s32.totalorder %s704, 7
      %s708 = scalar_select %p707, %s704, 7
      %s709 = smul.addr %s706, 8
      %s710 = sadd.s32 %s708, %s709
      %s711 = smul.addr %s710, 4
      %s712 = scalar_lea.vmem %s2, %s711
      %s713 = smul.u32 8, %s24
      %p714 = scmp.lt.s32.totalorder %s23, 1
      %s715 = scalar_select %p714, %s23, 1
      %p716 = scmp.lt.s32.totalorder %s713, 7
      %s717 = scalar_select %p716, %s713, 7
      %s718 = smul.addr %s715, 8
      %s719 = sadd.s32 %s717, %s718
      %s720 = smul.addr %s719, 8
      %s721 = scalar_lea.vmem %s3, %s720
      %p722 = scmp.lt.s32.totalorder %s23, 1
      %s723 = scalar_select %p722, %s23, 1
      %p724 = scmp.lt.s32.totalorder %s24, 0
      %s725 = scalar_select %p724, %s24, 0
      %s726 = sadd.s32 %s725, %s723
      %s727 = scalar_lea.vmem %s4, %s726
      %p728 = scmp.lt.s32.totalorder %s23, 1
      %s729 = scalar_select %p728, %s23, 1
      %p730 = scmp.lt.s32.totalorder %s24, 0
      %s731 = scalar_select %p730, %s24, 0
      %s732 = sadd.s32 %s731, %s729
      %s733 = scalar_lea.vmem %s5, %s732
      %p734 = scmp.lt.s32.totalorder %s23, 1
      %s735 = scalar_select %p734, %s23, 1
      %p736 = scmp.lt.s32.totalorder %s24, 0
      %s737 = scalar_select %p736, %s24, 0
      %s738 = sadd.s32 %s737, %s735
      %s739 = scalar_lea.vmem %s6, %s738
      %p740 = scmp.lt.s32.totalorder %s23, 1
      %s741 = scalar_select %p740, %s23, 1
      %p742 = scmp.lt.s32.totalorder %s24, 0
      %s743 = scalar_select %p742, %s24, 0
      %s744 = sadd.s32 %s743, %s741
      %s745 = scalar_lea.vmem %s7, %s744
      // Predicated region
      $region29: #{residual_block_forward.3} parent=27 // pred_check
        %p746 = pneg %p100
      $region30: #{residual_block_forward.3} parent=27 // pred_check_branch
        %748 = sbr.rel (%p746) target = $region32
      $region31: #{residual_block_forward.3} parent=27 // pred_region
        %s749 = smul.u32 8, %s24
      $region32: #{residual_block_forward.3} parent=27 // pred_fallthru
        _
      // Predicated region
      $region33: #{residual_block_forward.3} parent=27 // pred_check
        %p750 = pneg %p128
      $region34: #{residual_block_forward.3} parent=27 // pred_check_branch
        %752 = sbr.rel (%p750) target = $region36
      $region35: #{residual_block_forward.3} parent=27 // pred_region
        %s753 = smul.u32 8, %s24
      $region36: #{residual_block_forward.3} parent=27 // pred_fallthru
        _
      // Predicated region
      $region37: #{residual_block_forward.3} parent=27 // pred_check
        %p754 = pneg %p156
      $region38: #{residual_block_forward.3} parent=27 // pred_check_branch
        %756 = sbr.rel (%p754) target = $region40
      $region39: #{residual_block_forward.3} parent=27 // pred_region
        _
      $region40: #{residual_block_forward.3} parent=27 // pred_fallthru
        _
      // Predicated region
      $region41: #{residual_block_forward.3} parent=27 // pred_check
        %p757 = pneg %p184
      $region42: #{residual_block_forward.3} parent=27 // pred_check_branch
        %759 = sbr.rel (%p757) target = $region44
      $region43: #{residual_block_forward.3} parent=27 // pred_region
        _
      $region44: #{residual_block_forward.3} parent=27 // pred_fallthru
        _
      // Predicated region
      $region45: #{residual_block_forward.3} parent=27 // pred_check
        %p760 = pneg %p212
      $region46: #{residual_block_forward.3} parent=27 // pred_check_branch
        %762 = sbr.rel (%p760) target = $region48
      $region47: #{residual_block_forward.3} parent=27 // pred_region
        _
      $region48: #{residual_block_forward.3} parent=27 // pred_fallthru
        _
      // Predicated region
      $region49: #{residual_block_forward.3} parent=27 // pred_check
        %p763 = pneg %p240
      $region50: #{residual_block_forward.3} parent=27 // pred_check_branch
        %765 = sbr.rel (%p763) target = $region52
      $region51: #{residual_block_forward.3} parent=27 // pred_region
        _
      $region52: #{residual_block_forward.3} parent=27 // pred_fallthru
        _
    $region28: #{residual_block_forward.3} parent=5 // pred_fallthru
      _
    %p766 = scmp.le.s32.totalorder 2, %s14
    // Predicated region
    $region53: #{residual_block_forward.3} parent=5 // pred_check
      %p767 = pneg %p766
    $region54: #{residual_block_forward.3} parent=5 // pred_check_branch
      %769 = sbr.rel (%p767) target = $region56
    $region55: #{residual_block_forward.3} parent=5 // pred_region
      %s770 = ssub.s32 %s14, 2
      // Predicated region
      $region57: #{residual_block_forward.3} parent=55 // pred_check
        %p771 = pneg %p106
      $region58: #{residual_block_forward.3} parent=55 // pred_check_branch
        %773 = sbr.rel (%p771) target = $region60
      $region59: #{residual_block_forward.3} parent=55 // pred_region
        %s774 = smul.u32 8, %s26
        %p775 = scmp.lt.s32.totalorder %s25, 1
        %s776 = scalar_select %p775, %s25, 1
        %p777 = scmp.lt.s32.totalorder %s774, 7
        %s778 = scalar_select %p777, %s774, 7
        %s779 = smul.addr %s776, 8
        %s780 = sadd.s32 %s778, %s779
        %s781 = smul.addr %s780, 4
        %s782 = scalar_lea.vmem %s2, %s781
      $region60: #{residual_block_forward.3} parent=55 // pred_fallthru
        _
      // Predicated region
      $region61: #{residual_block_forward.3} parent=55 // pred_check
        %p783 = pneg %p134
      $region62: #{residual_block_forward.3} parent=55 // pred_check_branch
        %785 = sbr.rel (%p783) target = $region64
      $region63: #{residual_block_forward.3} parent=55 // pred_region
        %s786 = smul.u32 8, %s26
        %p787 = scmp.lt.s32.totalorder %s25, 1
        %s788 = scalar_select %p787, %s25, 1
        %p789 = scmp.lt.s32.totalorder %s786, 7
        %s790 = scalar_select %p789, %s786, 7
        %s791 = smul.addr %s788, 8
        %s792 = sadd.s32 %s790, %s791
        %s793 = smul.addr %s792, 8
        %s794 = scalar_lea.vmem %s3, %s793
      $region64: #{residual_block_forward.3} parent=55 // pred_fallthru
        _
      // Predicated region
      $region65: #{residual_block_forward.3} parent=55 // pred_check
        %p795 = pneg %p162
      $region66: #{residual_block_forward.3} parent=55 // pred_check_branch
        %797 = sbr.rel (%p795) target = $region68
      $region67: #{residual_block_forward.3} parent=55 // pred_region
        %p798 = scmp.lt.s32.totalorder %s25, 1
        %s799 = scalar_select %p798, %s25, 1
        %p800 = scmp.lt.s32.totalorder %s26, 0
        %s801 = scalar_select %p800, %s26, 0
        %s802 = sadd.s32 %s801, %s799
        %s803 = scalar_lea.vmem %s4, %s802
      $region68: #{residual_block_forward.3} parent=55 // pred_fallthru
        _
      // Predicated region
      $region69: #{residual_block_forward.3} parent=55 // pred_check
        %p804 = pneg %p190
      $region70: #{residual_block_forward.3} parent=55 // pred_check_branch
        %806 = sbr.rel (%p804) target = $region72
      $region71: #{residual_block_forward.3} parent=55 // pred_region
        %p807 = scmp.lt.s32.totalorder %s25, 1
        %s808 = scalar_select %p807, %s25, 1
        %p809 = scmp.lt.s32.totalorder %s26, 0
        %s810 = scalar_select %p809, %s26, 0
        %s811 = sadd.s32 %s810, %s808
        %s812 = scalar_lea.vmem %s5, %s811
      $region72: #{residual_block_forward.3} parent=55 // pred_fallthru
        _
      // Predicated region
      $region73: #{residual_block_forward.3} parent=55 // pred_check
        %p813 = pneg %p218
      $region74: #{residual_block_forward.3} parent=55 // pred_check_branch
        %815 = sbr.rel (%p813) target = $region76
      $region75: #{residual_block_forward.3} parent=55 // pred_region
        %p816 = scmp.lt.s32.totalorder %s25, 1
        %s817 = scalar_select %p816, %s25, 1
        %p818 = scmp.lt.s32.totalorder %s26, 0
        %s819 = scalar_select %p818, %s26, 0
        %s820 = sadd.s32 %s819, %s817
        %s821 = scalar_lea.vmem %s6, %s820
      $region76: #{residual_block_forward.3} parent=55 // pred_fallthru
        _
      // Predicated region
      $region77: #{residual_block_forward.3} parent=55 // pred_check
        %p822 = pneg %p246
      $region78: #{residual_block_forward.3} parent=55 // pred_check_branch
        %824 = sbr.rel (%p822) target = $region80
      $region79: #{residual_block_forward.3} parent=55 // pred_region
        %p825 = scmp.lt.s32.totalorder %s25, 1
        %s826 = scalar_select %p825, %s25, 1
        %p827 = scmp.lt.s32.totalorder %s26, 0
        %s828 = scalar_select %p827, %s26, 0
        %s829 = sadd.s32 %s828, %s826
        %s830 = scalar_lea.vmem %s7, %s829
      $region80: #{residual_block_forward.3} parent=55 // pred_fallthru
        _
    $region56: #{residual_block_forward.3} parent=5 // pred_fallthru
      _
  $region6: #{residual_block_forward.3} parent=0 // loop_footer
    %s18 = sadd.s32 1, %s14
  $region7: #{residual_block_forward.3} parent=0 // loop_footer_branch
    %13 = sbr.rel target = $region3
  $region8: #{residual_block_forward.3} parent=0 // loop_exit
    _

// kernel: residual_block_forward.5
$region0: #{residual_block_forward.5}
  #allocation0 [shape = 'u32[]', space=smem, size = 0x4, offset = 0x4, fixed_abs, tag = 'smem constant byte address 0x4 - core index']
  #allocation1 [shape = 'u32[144,128]{1,0:T(1,128)}', space=vmem, size = 0x12000, scoped, tag = 'internal scratch']
  %s0 = inlined_call_operand.vmem [shape: f32[2,8,8,128], index: 0, kind: input, shape index: {}]
  %s1 = inlined_call_operand.vmem [shape: f32[1,128], index: 1, kind: input, shape index: {}]
  %s2 = inlined_call_operand.vmem [shape: f32[1,128], index: 2, kind: input, shape index: {}]
  %s3 = inlined_call_operand.vmem [shape: f32[2,8,8,128], index: 3, kind: input, shape index: {}]
  %s4 = inlined_call_operand.vmem [shape: f32[1,128], index: 4, kind: input, shape index: {}]
  %s5 = inlined_call_operand.vmem [shape: f32[1,128], index: 5, kind: input, shape index: {}]
  %s6 = inlined_call_operand.vmem [shape: f32[2,8,8,128], index: 6, kind: output, shape index: {}]
  %s7 = sld [smem:[#allocation0]]
  $region57: #{residual_block_forward.5} parent=0
    _
  %s9 = ssub.s32 1, %s7
  %s10 = scalar_select 0, %s9, %s7
  loop: start=0, step=1, limit=4
  $region2: #{residual_block_forward.5} parent=0 // loop_pre_header
    _
  $region3: #{residual_block_forward.5} parent=0 // loop_header
    %s12 = sphi 0, %s16
    %p13 = scmp.ge.s32.totalorder %s12, 4
    %s19 = sphi 0, %s31
    %s20 = sphi 0, %s27
    %s21 = sphi 0, %s19
    %s22 = sphi 0, %s20
    %s23 = sphi 0, %s21
    %s24 = sphi 0, %s22
    %s36 = sphi 0, %s38
    %s39 = sphi 0, %s36
    %s40 = sphi 0, %s39
    %s56 = sphi 0, %s40
    %s60 = sphi 0, %s60
    %s62 = sphi 0, %s60
    %s63 = sphi 0, %s62
    %s77 = sphi 0, %s63
    %s81 = sphi 0, %s81
    %s83 = sphi 0, %s81
    %s84 = sphi 0, %s83
    %s98 = sphi 0, %s84
    %s106 = sphi 0, %s108
    %s109 = sphi 0, %s106
    %s110 = sphi 0, %s109
    %s126 = sphi 0, %s110
    %s130 = sphi 0, %s130
    %s132 = sphi 0, %s130
    %s133 = sphi 0, %s132
    %s147 = sphi 0, %s133
    %s151 = sphi 0, %s151
    %s153 = sphi 0, %s151
    %s154 = sphi 0, %s153
    %s168 = sphi 0, %s154
    %s176 = sphi 0, %s178
    %s179 = sphi 0, %s176
    %s180 = sphi 0, %s179
    %s196 = sphi 0, %s180
  $region4: #{residual_block_forward.5} parent=0 // loop_header_branch
    %15 = sbr.rel (%p13) target = $region8
  $region5: #{residual_block_forward.5} parent=0 // loop_body
    %s17 = ssub.s32 %s12, 1
    %s18 = ssub.s32 %s12, 2
    %s25 = sadd.s32 1, %s20
    %p26 = scmp.ge.s32.totalorder %s25, 1
    %s27 = scalar_select %p26, 0, %s25
    %s28 = sadd.s32 1, %s19
    %s29 = scalar_select %p26, %s28, %s19
    %p30 = scmp.ge.s32.totalorder %s29, 2
    %s31 = scalar_select %p30, 0, %s29
    %s32 = ssub.s32 %s19, %s31
    %s33 = ssub.s32 %s20, %s27
    %s34 = sor.u32 %s32, %s33
    %p35 = scmp.eq.s32.totalorder %s34, 0
    %s37 = sadd.s32 %s36, 1
    %s38 = scalar_select %p35, %s36, %s37
    %p41 = pneg %p35
    %p42 = scmp.eq.s32.totalorder %s12, 1
    %p43 = por %p41, %p42
    %p44 = scmp.ne.s32.totalorder %s36, %s39
    %p45 = scmp.eq.s32.totalorder %s12, 0
    %p46 = por %p44, %p45
    %p47 = scmp.ne.s32.totalorder %s36, %s39
    %p48 = scmp.eq.s32.totalorder %s17, 1
    %p49 = por %p47, %p48
    %p50 = scmp.ne.s32.totalorder %s39, %s40
    %p51 = scmp.eq.s32.totalorder %s17, 0
    %p52 = por %p50, %p51
    %p53 = scmp.ne.s32.totalorder %s39, %s40
    %p54 = scmp.eq.s32.totalorder %s18, 1
    %p55 = por %p53, %p54
    %p57 = scmp.ne.s32.totalorder %s40, %s56
    %p58 = scmp.eq.s32.totalorder %s18, 0
    %p59 = por %p57, %p58
    %s61 = sadd.s32 %s60, 1
    %p64 = scmp.eq.s32.totalorder %s12, 1
    %p65 = scmp.ne.s32.totalorder %s60, %s62
    %p66 = scmp.eq.s32.totalorder %s12, 0
    %p67 = por %p65, %p66
    %p68 = scmp.ne.s32.totalorder %s60, %s62
    %p69 = scmp.eq.s32.totalorder %s17, 1
    %p70 = por %p68, %p69
    %p71 = scmp.ne.s32.totalorder %s62, %s63
    %p72 = scmp.eq.s32.totalorder %s17, 0
    %p73 = por %p71, %p72
    %p74 = scmp.ne.s32.totalorder %s62, %s63
    %p75 = scmp.eq.s32.totalorder %s18, 1
    %p76 = por %p74, %p75
    %p78 = scmp.ne.s32.totalorder %s63, %s77
    %p79 = scmp.eq.s32.totalorder %s18, 0
    %p80 = por %p78, %p79
    %s82 = sadd.s32 %s81, 1
    %p85 = scmp.eq.s32.totalorder %s12, 1
    %p86 = scmp.ne.s32.totalorder %s81, %s83
    %p87 = scmp.eq.s32.totalorder %s12, 0
    %p88 = por %p86, %p87
    %p89 = scmp.ne.s32.totalorder %s81, %s83
    %p90 = scmp.eq.s32.totalorder %s17, 1
    %p91 = por %p89, %p90
    %p92 = scmp.ne.s32.totalorder %s83, %s84
    %p93 = scmp.eq.s32.totalorder %s17, 0
    %p94 = por %p92, %p93
    %p95 = scmp.ne.s32.totalorder %s83, %s84
    %p96 = scmp.eq.s32.totalorder %s18, 1
    %p97 = por %p95, %p96
    %p99 = scmp.ne.s32.totalorder %s84, %s98
    %p100 = scmp.eq.s32.totalorder %s18, 0
    %p101 = por %p99, %p100
    %s102 = ssub.s32 %s19, %s31
    %s103 = ssub.s32 %s20, %s27
    %s104 = sor.u32 %s102, %s103
    %p105 = scmp.eq.s32.totalorder %s104, 0
    %s107 = sadd.s32 %s106, 1
    %s108 = scalar_select %p105, %s106, %s107
    %p111 = pneg %p105
    %p112 = scmp.eq.s32.totalorder %s12, 1
    %p113 = por %p111, %p112
    %p114 = scmp.ne.s32.totalorder %s106, %s109
    %p115 = scmp.eq.s32.totalorder %s12, 0
    %p116 = por %p114, %p115
    %p117 = scmp.ne.s32.totalorder %s106, %s109
    %p118 = scmp.eq.s32.totalorder %s17, 1
    %p119 = por %p117, %p118
    %p120 = scmp.ne.s32.totalorder %s109, %s110
    %p121 = scmp.eq.s32.totalorder %s17, 0
    %p122 = por %p120, %p121
    %p123 = scmp.ne.s32.totalorder %s109, %s110
    %p124 = scmp.eq.s32.totalorder %s18, 1
    %p125 = por %p123, %p124
    %p127 = scmp.ne.s32.totalorder %s110, %s126
    %p128 = scmp.eq.s32.totalorder %s18, 0
    %p129 = por %p127, %p128
    %s131 = sadd.s32 %s130, 1
    %p134 = scmp.eq.s32.totalorder %s12, 1
    %p135 = scmp.ne.s32.totalorder %s130, %s132
    %p136 = scmp.eq.s32.totalorder %s12, 0
    %p137 = por %p135, %p136
    %p138 = scmp.ne.s32.totalorder %s130, %s132
    %p139 = scmp.eq.s32.totalorder %s17, 1
    %p140 = por %p138, %p139
    %p141 = scmp.ne.s32.totalorder %s132, %s133
    %p142 = scmp.eq.s32.totalorder %s17, 0
    %p143 = por %p141, %p142
    %p144 = scmp.ne.s32.totalorder %s132, %s133
    %p145 = scmp.eq.s32.totalorder %s18, 1
    %p146 = por %p144, %p145
    %p148 = scmp.ne.s32.totalorder %s133, %s147
    %p149 = scmp.eq.s32.totalorder %s18, 0
    %p150 = por %p148, %p149
    %s152 = sadd.s32 %s151, 1
    %p155 = scmp.eq.s32.totalorder %s12, 1
    %p156 = scmp.ne.s32.totalorder %s151, %s153
    %p157 = scmp.eq.s32.totalorder %s12, 0
    %p158 = por %p156, %p157
    %p159 = scmp.ne.s32.totalorder %s151, %s153
    %p160 = scmp.eq.s32.totalorder %s17, 1
    %p161 = por %p159, %p160
    %p162 = scmp.ne.s32.totalorder %s153, %s154
    %p163 = scmp.eq.s32.totalorder %s17, 0
    %p164 = por %p162, %p163
    %p165 = scmp.ne.s32.totalorder %s153, %s154
    %p166 = scmp.eq.s32.totalorder %s18, 1
    %p167 = por %p165, %p166
    %p169 = scmp.ne.s32.totalorder %s154, %s168
    %p170 = scmp.eq.s32.totalorder %s18, 0
    %p171 = por %p169, %p170
    %s172 = ssub.s32 %s19, %s31
    %s173 = ssub.s32 %s20, %s27
    %s174 = sor.u32 %s172, %s173
    %p175 = scmp.eq.s32.totalorder %s174, 0
    %s177 = sadd.s32 %s176, 1
    %s178 = scalar_select %p175, %s176, %s177
    %p181 = pneg %p175
    %p182 = scmp.eq.s32.totalorder %s12, 1
    %p183 = por %p181, %p182
    %p184 = scmp.ne.s32.totalorder %s176, %s179
    %p185 = scmp.eq.s32.totalorder %s12, 0
    %p186 = por %p184, %p185
    %p187 = scmp.ne.s32.totalorder %s176, %s179
    %p188 = scmp.eq.s32.totalorder %s17, 1
    %p189 = por %p187, %p188
    %p190 = scmp.ne.s32.totalorder %s179, %s180
    %p191 = scmp.eq.s32.totalorder %s17, 0
    %p192 = por %p190, %p191
    %p193 = scmp.ne.s32.totalorder %s179, %s180
    %p194 = scmp.eq.s32.totalorder %s18, 1
    %p195 = por %p193, %p194
    %p197 = scmp.ne.s32.totalorder %s180, %s196
    %p198 = scmp.eq.s32.totalorder %s18, 0
    %p199 = por %p197, %p198
    %p200 = scmp.le.s32.totalorder 1, %s12
    %p201 = scmp.lt.s32.totalorder %s12, 3
    %p202 = pnand %p200, %p201
    %p203 = pneg %p202
    // Predicated region
    $region9: #{residual_block_forward.5} parent=5 // pred_check
      _
    $region10: #{residual_block_forward.5} parent=5 // pred_check_branch
      %205 = sbr.rel (%p202) target = $region12
    $region11: #{residual_block_forward.5} parent=5 // pred_region
      %s206 = ssub.s32 %s12, 1
      // Predicated region
      $region13: #{residual_block_forward.5} parent=11 // pred_check
        %p207 = pneg %p73
      $region14: #{residual_block_forward.5} parent=11 // pred_check_branch
        %209 = sbr.rel (%p207) target = $region16
      $region15: #{residual_block_forward.5} parent=11 // pred_region
        _
      $region16: #{residual_block_forward.5} parent=11 // pred_fallthru
        _
      // Predicated region
      $region17: #{residual_block_forward.5} parent=11 // pred_check
        %p210 = pneg %p94
      $region18: #{residual_block_forward.5} parent=11 // pred_check_branch
        %212 = sbr.rel (%p210) target = $region20
      $region19: #{residual_block_forward.5} parent=11 // pred_region
        _
      $region20: #{residual_block_forward.5} parent=11 // pred_fallthru
        _
      // Predicated region
      $region21: #{residual_block_forward.5} parent=11 // pred_check
        %p213 = pneg %p143
      $region22: #{residual_block_forward.5} parent=11 // pred_check_branch
        %215 = sbr.rel (%p213) target = $region24
      $region23: #{residual_block_forward.5} parent=11 // pred_region
        _
      $region24: #{residual_block_forward.5} parent=11 // pred_fallthru
        _
      // Predicated region
      $region25: #{residual_block_forward.5} parent=11 // pred_check
        %p216 = pneg %p164
      $region26: #{residual_block_forward.5} parent=11 // pred_check_branch
        %218 = sbr.rel (%p216) target = $region28
      $region27: #{residual_block_forward.5} parent=11 // pred_region
        _
      $region28: #{residual_block_forward.5} parent=11 // pred_fallthru
        _
    $region12: #{residual_block_forward.5} parent=5 // pred_fallthru
      _
    %p219 = scmp.lt.s32.totalorder %s12, 2
    // Predicated region
    $region29: #{residual_block_forward.5} parent=5 // pred_check
      %p220 = pneg %p219
    $region30: #{residual_block_forward.5} parent=5 // pred_check_branch
      %222 = sbr.rel (%p220) target = $region32
    $region31: #{residual_block_forward.5} parent=5 // pred_region
      // Predicated region
      $region33: #{residual_block_forward.5} parent=31 // pred_check
        %p223 = pneg %p46
      $region34: #{residual_block_forward.5} parent=31 // pred_check_branch
        %225 = sbr.rel (%p223) target = $region36
      $region35: #{residual_block_forward.5} parent=31 // pred_region
        %s226 = smul.u32 8, %s20
        %p227 = scmp.lt.s32.totalorder %s19, 1
        %s228 = scalar_select %p227, %s19, 1
        %p229 = scmp.lt.s32.totalorder %s226, 7
        %s230 = scalar_select %p229, %s226, 7
        %s231 = smul.addr %s228, 8
        %s232 = sadd.s32 %s230, %s231
        %s233 = smul.addr %s232, 8
        %s234 = scalar_lea.vmem %s0, %s233
        %s235 = smul.u32 8, %s20
      $region36: #{residual_block_forward.5} parent=31 // pred_fallthru
        _
      // Predicated region
      $region37: #{residual_block_forward.5} parent=31 // pred_check
        %p236 = pneg %p116
      $region38: #{residual_block_forward.5} parent=31 // pred_check_branch
        %238 = sbr.rel (%p236) target = $region40
      $region39: #{residual_block_forward.5} parent=31 // pred_region
        %s239 = smul.u32 8, %s20
        %p240 = scmp.lt.s32.totalorder %s19, 1
        %s241 = scalar_select %p240, %s19, 1
        %p242 = scmp.lt.s32.totalorder %s239, 7
        %s243 = scalar_select %p242, %s239, 7
        %s244 = smul.addr %s241, 8
        %s245 = sadd.s32 %s243, %s244
        %s246 = smul.addr %s245, 8
        %s247 = scalar_lea.vmem %s3, %s246
        %s248 = smul.u32 8, %s20
      $region40: #{residual_block_forward.5} parent=31 // pred_fallthru
        _
    $region32: #{residual_block_forward.5} parent=5 // pred_fallthru
      _
    %p249 = scmp.le.s32.totalorder 1, %s12
    %p250 = scmp.lt.s32.totalorder %s12, 3
    %p251 = pnand %p249, %p250
    %p252 = pneg %p251
    // Predicated region
    $region41: #{residual_block_forward.5} parent=5 // pred_check
      _
    $region42: #{residual_block_forward.5} parent=5 // pred_check_branch
      %254 = sbr.rel (%p251) target = $region44
    $region43: #{residual_block_forward.5} parent=5 // pred_region
      %s255 = ssub.s32 %s12, 1
      %s256 = smul.u32 8, %s22
      %p257 = scmp.lt.s32.totalorder %s21, 1
      %s258 = scalar_select %p257, %s21, 1
      %p259 = scmp.lt.s32.totalorder %s256, 7
      %s260 = scalar_select %p259, %s256, 7
      %s261 = smul.addr %s258, 8
      %s262 = sadd.s32 %s260, %s261
      %s263 = smul.addr %s262, 8
      %s264 = scalar_lea.vmem %s0, %s263
      %p265 = pneg %p52
      %p266 = pneg %p49
      %p267 = pneg %p73
      %p268 = pneg %p70
      %p269 = pneg %p94
      %p270 = pneg %p91
      %s271 = smul.u32 8, %s22
      %p272 = scmp.lt.s32.totalorder %s21, 1
      %s273 = scalar_select %p272, %s21, 1
      %p274 = scmp.lt.s32.totalorder %s271, 7
      %s275 = scalar_select %p274, %s271, 7
      %s276 = smul.addr %s273, 8
      %s277 = sadd.s32 %s275, %s276
      %s278 = smul.addr %s277, 8
      %s279 = scalar_lea.vmem %s3, %s278
      %p280 = pneg %p122
      %p281 = pneg %p119
      %p282 = pneg %p143
      %p283 = pneg %p140
      %p284 = pneg %p164
      %p285 = pneg %p161
      %p286 = pneg %p192
      %p287 = pneg %p189
      %s288 = smul.u32 8, %s22
      %p289 = scmp.lt.s32.totalorder %s21, 1
      %s290 = scalar_select %p289, %s21, 1
      %p291 = scmp.lt.s32.totalorder %s288, 7
      %s292 = scalar_select %p291, %s288, 7
      %s293 = smul.addr %s290, 8
      %s294 = sadd.s32 %s292, %s293
      %s295 = smul.addr %s294, 8
      %s296 = scalar_lea.vmem %s6, %s295
      %s297 = smul.u32 8, %s22
      %p298 = scmp.lt.s32.totalorder %s21, 1
      %s299 = scalar_select %p298, %s21, 1
      %p300 = scmp.lt.s32.totalorder %s297, 7
      %s301 = scalar_select %p300, %s297, 7
      %s302 = smul.addr %s299, 8
      %s303 = sadd.s32 %s301, %s302
      %s304 = smul.addr %s303, 8
      %s305 = scalar_lea.vmem %s0, %s304
      %s306 = smul.u32 8, %s22
      %s307 = smul.u32 8, %s22
      %p308 = scmp.lt.s32.totalorder %s21, 1
      %s309 = scalar_select %p308, %s21, 1
      %p310 = scmp.lt.s32.totalorder %s307, 7
      %s311 = scalar_select %p310, %s307, 7
      %s312 = smul.addr %s309, 8
      %s313 = sadd.s32 %s311, %s312
      %s314 = smul.addr %s313, 8
      %s315 = scalar_lea.vmem %s3, %s314
      %s316 = smul.u32 8, %s22
      %s317 = smul.u32 8, %s22
      %p318 = scmp.lt.s32.totalorder %s21, 1
      %s319 = scalar_select %p318, %s21, 1
      %p320 = scmp.lt.s32.totalorder %s317, 7
      %s321 = scalar_select %p320, %s317, 7
      %s322 = smul.addr %s319, 8
      %s323 = sadd.s32 %s321, %s322
      %s324 = smul.addr %s323, 8
      %s325 = scalar_lea.vmem %s6, %s324
      %s326 = smul.u32 8, %s22
      %v327 = vld [vmem:[%s305] sm:$0xff]
      %v328 = vld [vmem:[%s305 + $0x8] sm:$0xff]
      %v329 = vld [vmem:[%s305 + $0x10] sm:$0xff]
      %v330 = vld [vmem:[%s305 + $0x18] sm:$0xff]
      %v331 = vld [vmem:[%s305 + $0x20] sm:$0xff]
      %v332 = vld [vmem:[%s305 + $0x28] sm:$0xff]
      %v333 = vld [vmem:[%s305 + $0x30] sm:$0xff]
      %v334 = vld [vmem:[%s305 + $0x38] sm:$0xff]
      %v335 = vld [vmem:[%s1] sm:$0x1]
      %v337 = vlaneseq
      %v338 = vshrl.u32 %v337, 7
      %v339 = vsub.s32 0, %v338
      %v340 = vrot.slane %v335, %v339
      %v342 = vmul.f32 %v327, %v340
      %v343 = vmul.f32 %v328, %v340
      %v344 = vmul.f32 %v329, %v340
      %v345 = vmul.f32 %v330, %v340
      %v346 = vmul.f32 %v331, %v340
      %v347 = vmul.f32 %v332, %v340
      %v348 = vmul.f32 %v333, %v340
      %v349 = vmul.f32 %v334, %v340
      %v350 = vld [vmem:[%s2] sm:$0x1]
      %v352 = vlaneseq
      %v353 = vshrl.u32 %v352, 7
      %v354 = vsub.s32 0, %v353
      %v355 = vrot.slane %v350, %v354
      %v357 = vadd.f32 %v342, %v355
      %v358 = vadd.f32 %v343, %v355
      %v359 = vadd.f32 %v344, %v355
      %v360 = vadd.f32 %v345, %v355
      %v361 = vadd.f32 %v346, %v355
      %v362 = vadd.f32 %v347, %v355
      %v363 = vadd.f32 %v348, %v355
      %v364 = vadd.f32 %v349, %v355
      %v365 = vld [vmem:[%s315] sm:$0xff]
      %v366 = vld [vmem:[%s315 + $0x8] sm:$0xff]
      %v367 = vld [vmem:[%s315 + $0x10] sm:$0xff]
      %v368 = vld [vmem:[%s315 + $0x18] sm:$0xff]
      %v369 = vld [vmem:[%s315 + $0x20] sm:$0xff]
      %v370 = vld [vmem:[%s315 + $0x28] sm:$0xff]
      %v371 = vld [vmem:[%s315 + $0x30] sm:$0xff]
      %v372 = vld [vmem:[%s315 + $0x38] sm:$0xff]
      %v373 = vld [vmem:[%s4] sm:$0x1]
      %v375 = vlaneseq
      %v376 = vshrl.u32 %v375, 7
      %v377 = vsub.s32 0, %v376
      %v378 = vrot.slane %v373, %v377
      %v380 = vmul.f32 %v365, %v378
      %v381 = vmul.f32 %v366, %v378
      %v382 = vmul.f32 %v367, %v378
      %v383 = vmul.f32 %v368, %v378
      %v384 = vmul.f32 %v369, %v378
      %v385 = vmul.f32 %v370, %v378
      %v386 = vmul.f32 %v371, %v378
      %v387 = vmul.f32 %v372, %v378
      %v388 = vld [vmem:[%s5] sm:$0x1]
      %v390 = vlaneseq
      %v391 = vshrl.u32 %v390, 7
      %v392 = vsub.s32 0, %v391
      %v393 = vrot.slane %v388, %v392
      %v395 = vadd.f32 %v380, %v393
      %v396 = vadd.f32 %v381, %v393
      %v397 = vadd.f32 %v382, %v393
      %v398 = vadd.f32 %v383, %v393
      %v399 = vadd.f32 %v384, %v393
      %v400 = vadd.f32 %v385, %v393
      %v401 = vadd.f32 %v386, %v393
      %v402 = vadd.f32 %v387, %v393
      %v403 = vadd.f32 %v357, %v395
      %v404 = vadd.f32 %v358, %v396
      %v405 = vadd.f32 %v359, %v397
      %v406 = vadd.f32 %v360, %v398
      %v407 = vadd.f32 %v361, %v399
      %v408 = vadd.f32 %v362, %v400
      %v409 = vadd.f32 %v363, %v401
      %v410 = vadd.f32 %v364, %v402
      %v411 = vmax.f32 %v403, 0.0
      %v412 = vmax.f32 %v404, 0.0
      %v413 = vmax.f32 %v405, 0.0
      %v414 = vmax.f32 %v406, 0.0
      %v415 = vmax.f32 %v407, 0.0
      %v416 = vmax.f32 %v408, 0.0
      %v417 = vmax.f32 %v409, 0.0
      %v418 = vmax.f32 %v410, 0.0
      %419 = vst [vmem:[%s325] sm:$0xff] %v411
      %420 = vst [vmem:[%s325 + $0x8] sm:$0xff] %v412
      %421 = vst [vmem:[%s325 + $0x10] sm:$0xff] %v413
      %422 = vst [vmem:[%s325 + $0x18] sm:$0xff] %v414
      %423 = vst [vmem:[%s325 + $0x20] sm:$0xff] %v415
      %424 = vst [vmem:[%s325 + $0x28] sm:$0xff] %v416
      %425 = vst [vmem:[%s325 + $0x30] sm:$0xff] %v417
      %426 = vst [vmem:[%s325 + $0x38] sm:$0xff] %v418
      %s427 = smul.u32 8, %s22
      %p428 = scmp.lt.s32.totalorder %s21, 1
      %s429 = scalar_select %p428, %s21, 1
      %p430 = scmp.lt.s32.totalorder %s427, 7
      %s431 = scalar_select %p430, %s427, 7
      %s432 = smul.addr %s429, 8
      %s433 = sadd.s32 %s431, %s432
      %s434 = smul.addr %s433, 8
      %s435 = scalar_lea.vmem %s6, %s434
      // Predicated region
      $region45: #{residual_block_forward.5} parent=43 // pred_check
        %p436 = pneg %p189
      $region46: #{residual_block_forward.5} parent=43 // pred_check_branch
        %438 = sbr.rel (%p436) target = $region48
      $region47: #{residual_block_forward.5} parent=43 // pred_region
        %s439 = smul.u32 8, %s22
      $region48: #{residual_block_forward.5} parent=43 // pred_fallthru
        _
    $region44: #{residual_block_forward.5} parent=5 // pred_fallthru
      _
    %p440 = scmp.le.s32.totalorder 2, %s12
    // Predicated region
    $region49: #{residual_block_forward.5} parent=5 // pred_check
      %p441 = pneg %p440
    $region50: #{residual_block_forward.5} parent=5 // pred_check_branch
      %443 = sbr.rel (%p441) target = $region52
    $region51: #{residual_block_forward.5} parent=5 // pred_region
      %s444 = ssub.s32 %s12, 2
      // Predicated region
      $region53: #{residual_block_forward.5} parent=51 // pred_check
        %p445 = pneg %p195
      $region54: #{residual_block_forward.5} parent=51 // pred_check_branch
        %447 = sbr.rel (%p445) target = $region56
      $region55: #{residual_block_forward.5} parent=51 // pred_region
        %s448 = smul.u32 8, %s24
        %p449 = scmp.lt.s32.totalorder %s23, 1
        %s450 = scalar_select %p449, %s23, 1
        %p451 = scmp.lt.s32.totalorder %s448, 7
        %s452 = scalar_select %p451, %s448, 7
        %s453 = smul.addr %s450, 8
        %s454 = sadd.s32 %s452, %s453
        %s455 = smul.addr %s454, 8
        %s456 = scalar_lea.vmem %s6, %s455
      $region56: #{residual_block_forward.5} parent=51 // pred_fallthru
        _
    $region52: #{residual_block_forward.5} parent=5 // pred_fallthru
      _
  $region6: #{residual_block_forward.5} parent=0 // loop_footer
    %s16 = sadd.s32 1, %s12
  $region7: #{residual_block_forward.5} parent=0 // loop_footer_branch
    %11 = sbr.rel target = $region3
  $region8: #{residual_block_forward.5} parent=0 // loop_exit
    _

// kernel: residual_block_forward.4
$region0: #{residual_block_forward.4}
  #allocation0 [shape = 'u32[]', space=smem, size = 0x4, offset = 0x4, fixed_abs, tag = 'smem constant byte address 0x4 - core index']
  #allocation1 [shape = 'u32[144,128]{1,0:T(1,128)}', space=vmem, size = 0x12000, scoped, tag = 'internal scratch']
  #allocation2 [shape = 'bf16[10,10,128]{2,1,0:T(8,128)(2,1)}', space=vmem, size = 0xa000, scoped, tag = 'scratch operand']
  %s0 = inlined_call_operand.vmem [shape: bf16[2,8,8,128], index: 0, kind: input, shape index: {}]
  %s1 = inlined_call_operand.vmem [shape: f32[1,128], index: 1, kind: input, shape index: {}]
  %s2 = inlined_call_operand.vmem [shape: f32[1,128], index: 2, kind: input, shape index: {}]
  %s3 = inlined_call_operand.vmem [shape: bf16[3,384,128], index: 3, kind: input, shape index: {}]
  %s4 = inlined_call_operand.vmem [shape: f32[2,8,8,128], index: 4, kind: output, shape index: {0}]
  %s5 = inlined_call_operand.vmem [shape: f32[2,1,1,128], index: 5, kind: output, shape index: {1}]
  %s6 = inlined_call_operand.vmem [shape: f32[2,1,1,128], index: 6, kind: output, shape index: {2}]
  %7 = xla_tuple %s4, %s5, %s6
  %s8 = sld [smem:[#allocation0]]
  $region81: #{residual_block_forward.4} parent=0
    _
  %s10 = ssub.s32 1, %s8
  %s11 = scalar_select 0, %s10, %s8
  loop: start=0, step=1, limit=4
  $region2: #{residual_block_forward.4} parent=0 // loop_pre_header
    _
  $region3: #{residual_block_forward.4} parent=0 // loop_header
    %s13 = sphi 0, %s17
    %p14 = scmp.ge.s32.totalorder %s13, 4
    %s20 = sphi 0, %s32
    %s21 = sphi 0, %s28
    %s22 = sphi 0, %s20
    %s23 = sphi 0, %s21
    %s24 = sphi 0, %s22
    %s25 = sphi 0, %s23
    %s35 = sphi 0, %s37
    %s38 = sphi 0, %s35
    %s39 = sphi 0, %s38
    %s55 = sphi 0, %s39
    %s59 = sphi 0, %s59
    %s61 = sphi 0, %s59
    %s62 = sphi 0, %s61
    %s76 = sphi 0, %s62
    %s80 = sphi 0, %s80
    %s82 = sphi 0, %s80
    %s83 = sphi 0, %s82
    %s97 = sphi 0, %s83
    %s101 = sphi 0, %s101
    %s103 = sphi 0, %s101
    %s104 = sphi 0, %s103
    %s118 = sphi 0, %s104
    %s126 = sphi 0, %s128
    %s129 = sphi 0, %s126
    %s130 = sphi 0, %s129
    %s146 = sphi 0, %s130
    %s154 = sphi 0, %s156
    %s157 = sphi 0, %s154
    %s158 = sphi 0, %s157
    %s174 = sphi 0, %s158
    %s182 = sphi 0, %s184
    %s185 = sphi 0, %s182
    %s186 = sphi 0, %s185
    %s202 = sphi 0, %s186
  $region4: #{residual_block_forward.4} parent=0 // loop_header_branch
    %16 = sbr.rel (%p14) target = $region8
  $region5: #{residual_block_forward.4} parent=0 // loop_body
    %s18 = ssub.s32 %s13, 1
    %s19 = ssub.s32 %s13, 2
    %s26 = sadd.s32 1, %s21
    %p27 = scmp.ge.s32.totalorder %s26, 1
    %s28 = scalar_select %p27, 0, %s26
    %s29 = sadd.s32 1, %s20
    %s30 = scalar_select %p27, %s29, %s20
    %p31 = scmp.ge.s32.totalorder %s30, 2
    %s32 = scalar_select %p31, 0, %s30
    %s33 = ssub.s32 %s20, %s32
    %p34 = scmp.eq.s32.totalorder %s33, 0
    %s36 = sadd.s32 %s35, 1
    %s37 = scalar_select %p34, %s35, %s36
    %p40 = pneg %p34
    %p41 = scmp.eq.s32.totalorder %s13, 1
    %p42 = por %p40, %p41
    %p43 = scmp.ne.s32.totalorder %s35, %s38
    %p44 = scmp.eq.s32.totalorder %s13, 0
    %p45 = por %p43, %p44
    %p46 = scmp.ne.s32.totalorder %s35, %s38
    %p47 = scmp.eq.s32.totalorder %s18, 1
    %p48 = por %p46, %p47
    %p49 = scmp.ne.s32.totalorder %s38, %s39
    %p50 = scmp.eq.s32.totalorder %s18, 0
    %p51 = por %p49, %p50
    %p52 = scmp.ne.s32.totalorder %s38, %s39
    %p53 = scmp.eq.s32.totalorder %s19, 1
    %p54 = por %p52, %p53
    %p56 = scmp.ne.s32.totalorder %s39, %s55
    %p57 = scmp.eq.s32.totalorder %s19, 0
    %p58 = por %p56, %p57
    %s60 = sadd.s32 %s59, 1
    %p63 = scmp.eq.s32.totalorder %s13, 1
    %p64 = scmp.ne.s32.totalorder %s59, %s61
    %p65 = scmp.eq.s32.totalorder %s13, 0
    %p66 = por %p64, %p65
    %p67 = scmp.ne.s32.totalorder %s59, %s61
    %p68 = scmp.eq.s32.totalorder %s18, 1
    %p69 = por %p67, %p68
    %p70 = scmp.ne.s32.totalorder %s61, %s62
    %p71 = scmp.eq.s32.totalorder %s18, 0
    %p72 = por %p70, %p71
    %p73 = scmp.ne.s32.totalorder %s61, %s62
    %p74 = scmp.eq.s32.totalorder %s19, 1
    %p75 = por %p73, %p74
    %p77 = scmp.ne.s32.totalorder %s62, %s76
    %p78 = scmp.eq.s32.totalorder %s19, 0
    %p79 = por %p77, %p78
    %s81 = sadd.s32 %s80, 1
    %p84 = scmp.eq.s32.totalorder %s13, 1
    %p85 = scmp.ne.s32.totalorder %s80, %s82
    %p86 = scmp.eq.s32.totalorder %s13, 0
    %p87 = por %p85, %p86
    %p88 = scmp.ne.s32.totalorder %s80, %s82
    %p89 = scmp.eq.s32.totalorder %s18, 1
    %p90 = por %p88, %p89
    %p91 = scmp.ne.s32.totalorder %s82, %s83
    %p92 = scmp.eq.s32.totalorder %s18, 0
    %p93 = por %p91, %p92
    %p94 = scmp.ne.s32.totalorder %s82, %s83
    %p95 = scmp.eq.s32.totalorder %s19, 1
    %p96 = por %p94, %p95
    %p98 = scmp.ne.s32.totalorder %s83, %s97
    %p99 = scmp.eq.s32.totalorder %s19, 0
    %p100 = por %p98, %p99
    %s102 = sadd.s32 %s101, 1
    %p105 = scmp.eq.s32.totalorder %s13, 1
    %p106 = scmp.ne.s32.totalorder %s101, %s103
    %p107 = scmp.eq.s32.totalorder %s13, 0
    %p108 = por %p106, %p107
    %p109 = scmp.ne.s32.totalorder %s101, %s103
    %p110 = scmp.eq.s32.totalorder %s18, 1
    %p111 = por %p109, %p110
    %p112 = scmp.ne.s32.totalorder %s103, %s104
    %p113 = scmp.eq.s32.totalorder %s18, 0
    %p114 = por %p112, %p113
    %p115 = scmp.ne.s32.totalorder %s103, %s104
    %p116 = scmp.eq.s32.totalorder %s19, 1
    %p117 = por %p115, %p116
    %p119 = scmp.ne.s32.totalorder %s104, %s118
    %p120 = scmp.eq.s32.totalorder %s19, 0
    %p121 = por %p119, %p120
    %s122 = ssub.s32 %s20, %s32
    %s123 = ssub.s32 %s21, %s28
    %s124 = sor.u32 %s122, %s123
    %p125 = scmp.eq.s32.totalorder %s124, 0
    %s127 = sadd.s32 %s126, 1
    %s128 = scalar_select %p125, %s126, %s127
    %p131 = pneg %p125
    %p132 = scmp.eq.s32.totalorder %s13, 1
    %p133 = por %p131, %p132
    %p134 = scmp.ne.s32.totalorder %s126, %s129
    %p135 = scmp.eq.s32.totalorder %s13, 0
    %p136 = por %p134, %p135
    %p137 = scmp.ne.s32.totalorder %s126, %s129
    %p138 = scmp.eq.s32.totalorder %s18, 1
    %p139 = por %p137, %p138
    %p140 = scmp.ne.s32.totalorder %s129, %s130
    %p141 = scmp.eq.s32.totalorder %s18, 0
    %p142 = por %p140, %p141
    %p143 = scmp.ne.s32.totalorder %s129, %s130
    %p144 = scmp.eq.s32.totalorder %s19, 1
    %p145 = por %p143, %p144
    %p147 = scmp.ne.s32.totalorder %s130, %s146
    %p148 = scmp.eq.s32.totalorder %s19, 0
    %p149 = por %p147, %p148
    %s150 = ssub.s32 %s20, %s32
    %s151 = ssub.s32 %s21, %s28
    %s152 = sor.u32 %s150, %s151
    %p153 = scmp.eq.s32.totalorder %s152, 0
    %s155 = sadd.s32 %s154, 1
    %s156 = scalar_select %p153, %s154, %s155
    %p159 = pneg %p153
    %p160 = scmp.eq.s32.totalorder %s13, 1
    %p161 = por %p159, %p160
    %p162 = scmp.ne.s32.totalorder %s154, %s157
    %p163 = scmp.eq.s32.totalorder %s13, 0
    %p164 = por %p162, %p163
    %p165 = scmp.ne.s32.totalorder %s154, %s157
    %p166 = scmp.eq.s32.totalorder %s18, 1
    %p167 = por %p165, %p166
    %p168 = scmp.ne.s32.totalorder %s157, %s158
    %p169 = scmp.eq.s32.totalorder %s18, 0
    %p170 = por %p168, %p169
    %p171 = scmp.ne.s32.totalorder %s157, %s158
    %p172 = scmp.eq.s32.totalorder %s19, 1
    %p173 = por %p171, %p172
    %p175 = scmp.ne.s32.totalorder %s158, %s174
    %p176 = scmp.eq.s32.totalorder %s19, 0
    %p177 = por %p175, %p176
    %s178 = ssub.s32 %s20, %s32
    %s179 = ssub.s32 %s21, %s28
    %s180 = sor.u32 %s178, %s179
    %p181 = scmp.eq.s32.totalorder %s180, 0
    %s183 = sadd.s32 %s182, 1
    %s184 = scalar_select %p181, %s182, %s183
    %p187 = pneg %p181
    %p188 = scmp.eq.s32.totalorder %s13, 1
    %p189 = por %p187, %p188
    %p190 = scmp.ne.s32.totalorder %s182, %s185
    %p191 = scmp.eq.s32.totalorder %s13, 0
    %p192 = por %p190, %p191
    %p193 = scmp.ne.s32.totalorder %s182, %s185
    %p194 = scmp.eq.s32.totalorder %s18, 1
    %p195 = por %p193, %p194
    %p196 = scmp.ne.s32.totalorder %s185, %s186
    %p197 = scmp.eq.s32.totalorder %s18, 0
    %p198 = por %p196, %p197
    %p199 = scmp.ne.s32.totalorder %s185, %s186
    %p200 = scmp.eq.s32.totalorder %s19, 1
    %p201 = por %p199, %p200
    %p203 = scmp.ne.s32.totalorder %s186, %s202
    %p204 = scmp.eq.s32.totalorder %s19, 0
    %p205 = por %p203, %p204
    %p206 = scmp.le.s32.totalorder 1, %s13
    %p207 = scmp.lt.s32.totalorder %s13, 3
    %p208 = pnand %p206, %p207
    %p209 = pneg %p208
    // Predicated region
    $region9: #{residual_block_forward.4} parent=5 // pred_check
      _
    $region10: #{residual_block_forward.4} parent=5 // pred_check_branch
      %211 = sbr.rel (%p208) target = $region12
    $region11: #{residual_block_forward.4} parent=5 // pred_region
      %s212 = ssub.s32 %s13, 1
      // Predicated region
      $region13: #{residual_block_forward.4} parent=11 // pred_check
        %p213 = pneg %p72
      $region14: #{residual_block_forward.4} parent=11 // pred_check_branch
        %215 = sbr.rel (%p213) target = $region16
      $region15: #{residual_block_forward.4} parent=11 // pred_region
        _
      $region16: #{residual_block_forward.4} parent=11 // pred_fallthru
        _
      // Predicated region
      $region17: #{residual_block_forward.4} parent=11 // pred_check
        %p216 = pneg %p93
      $region18: #{residual_block_forward.4} parent=11 // pred_check_branch
        %218 = sbr.rel (%p216) target = $region20
      $region19: #{residual_block_forward.4} parent=11 // pred_region
        _
      $region20: #{residual_block_forward.4} parent=11 // pred_fallthru
        _
      // Predicated region
      $region21: #{residual_block_forward.4} parent=11 // pred_check
        %p219 = pneg %p114
      $region22: #{residual_block_forward.4} parent=11 // pred_check_branch
        %221 = sbr.rel (%p219) target = $region24
      $region23: #{residual_block_forward.4} parent=11 // pred_region
        _
      $region24: #{residual_block_forward.4} parent=11 // pred_fallthru
        _
    $region12: #{residual_block_forward.4} parent=5 // pred_fallthru
      _
    %p222 = scmp.lt.s32.totalorder %s13, 2
    // Predicated region
    $region25: #{residual_block_forward.4} parent=5 // pred_check
      %p223 = pneg %p222
    $region26: #{residual_block_forward.4} parent=5 // pred_check_branch
      %225 = sbr.rel (%p223) target = $region28
    $region27: #{residual_block_forward.4} parent=5 // pred_region
      // Predicated region
      $region29: #{residual_block_forward.4} parent=27 // pred_check
        %p226 = pneg %p45
      $region30: #{residual_block_forward.4} parent=27 // pred_check_branch
        %228 = sbr.rel (%p226) target = $region32
      $region31: #{residual_block_forward.4} parent=27 // pred_region
        %p229 = scmp.lt.s32.totalorder %s20, 1
        %s230 = scalar_select %p229, %s20, 1
        %s231 = smul.addr %s230, 8
        %s232 = smul.addr %s231, 4
        %s233 = scalar_lea.vmem %s0, %s232
      $region32: #{residual_block_forward.4} parent=27 // pred_fallthru
        _
    $region28: #{residual_block_forward.4} parent=5 // pred_fallthru
      _
    %p234 = scmp.le.s32.totalorder 1, %s13
    %p235 = scmp.lt.s32.totalorder %s13, 3
    %p236 = pnand %p234, %p235
    %p237 = pneg %p236
    // Predicated region
    $region33: #{residual_block_forward.4} parent=5 // pred_check
      _
    $region34: #{residual_block_forward.4} parent=5 // pred_check_branch
      %239 = sbr.rel (%p236) target = $region36
    $region35: #{residual_block_forward.4} parent=5 // pred_region
      %s240 = ssub.s32 %s13, 1
      %p241 = scmp.lt.s32.totalorder %s22, 1
      %s242 = scalar_select %p241, %s22, 1
      %s243 = smul.addr %s242, 8
      %s244 = smul.addr %s243, 4
      %s245 = scalar_lea.vmem %s0, %s244
      %p246 = pneg %p51
      %p247 = pneg %p48
      %p248 = pneg %p72
      %p249 = pneg %p69
      %p250 = pneg %p93
      %p251 = pneg %p90
      %p252 = pneg %p114
      %p253 = pneg %p111
      %p254 = pneg %p142
      %p255 = pneg %p139
      %s256 = smul.u32 8, %s23
      %p257 = scmp.lt.s32.totalorder %s22, 1
      %s258 = scalar_select %p257, %s22, 1
      %p259 = scmp.lt.s32.totalorder %s256, 7
      %s260 = scalar_select %p259, %s256, 7
      %s261 = smul.addr %s258, 8
      %s262 = sadd.s32 %s260, %s261
      %s263 = smul.addr %s262, 8
      %s264 = scalar_lea.vmem %s4, %s263
      %p265 = pneg %p170
      %p266 = pneg %p167
      %p267 = scmp.lt.s32.totalorder %s22, 1
      %s268 = scalar_select %p267, %s22, 1
      %p269 = scmp.lt.s32.totalorder %s23, 0
      %s270 = scalar_select %p269, %s23, 0
      %s271 = sadd.s32 %s270, %s268
      %s272 = scalar_lea.vmem %s5, %s271
      %p273 = pneg %p198
      %p274 = pneg %p195
      %p275 = scmp.lt.s32.totalorder %s22, 1
      %s276 = scalar_select %p275, %s22, 1
      %p277 = scmp.lt.s32.totalorder %s23, 0
      %s278 = scalar_select %p277, %s23, 0
      %s279 = sadd.s32 %s278, %s276
      %s280 = scalar_lea.vmem %s6, %s279
      %p281 = scmp.lt.s32.totalorder %s22, 1
      %s282 = scalar_select %p281, %s22, 1
      %s283 = smul.addr %s282, 8
      %s284 = smul.addr %s283, 4
      %s285 = scalar_lea.vmem %s0, %s284
      %s286 = smul.u32 8, %s23
      %p287 = scmp.lt.s32.totalorder %s22, 1
      %s288 = scalar_select %p287, %s22, 1
      %p289 = scmp.lt.s32.totalorder %s286, 7
      %s290 = scalar_select %p289, %s286, 7
      %s291 = smul.addr %s288, 8
      %s292 = sadd.s32 %s290, %s291
      %s293 = smul.addr %s292, 8
      %s294 = scalar_lea.vmem %s4, %s293
      %s295 = smul.u32 8, %s23
      %p296 = scmp.lt.s32.totalorder %s22, 1
      %s297 = scalar_select %p296, %s22, 1
      %p298 = scmp.lt.s32.totalorder %s23, 0
      %s299 = scalar_select %p298, %s23, 0
      %s300 = sadd.s32 %s299, %s297
      %s301 = scalar_lea.vmem %s5, %s300
      %p302 = scmp.lt.s32.totalorder %s22, 1
      %s303 = scalar_select %p302, %s22, 1
      %p304 = scmp.lt.s32.totalorder %s23, 0
      %s305 = scalar_select %p304, %s23, 0
      %s306 = sadd.s32 %s305, %s303
      %s307 = scalar_lea.vmem %s6, %s306
      %s309 = smul.u32 %s23, 8
      %s310 = smul.addr %s309, 4
      %s311 = scalar_lea.vmem %s285, %s310
      %v312 = vld [vmem:[%s311] sm:$0xf]
      %v313 = vld [vmem:[%s311 + $0x4] sm:$0xf]
      %v314 = vld [vmem:[%s311 + $0x8] sm:$0xf]
      %v315 = vld [vmem:[%s311 + $0xc] sm:$0xf]
      %v316 = vld [vmem:[%s311 + $0x10] sm:$0xf]
      %v317 = vld [vmem:[%s311 + $0x14] sm:$0xf]
      %v318 = vld [vmem:[%s311 + $0x18] sm:$0xf]
      %v319 = vld [vmem:[%s311 + $0x1c] sm:$0xf]
      %v320 = vld [vmem:[%s1] sm:$0x1]
      %v321 = vunpack.c.l.bf16 %v312
      %v322 = vunpack.c.l.bf16 %v313
      %v323 = vunpack.c.l.bf16 %v314
      %v324 = vunpack.c.l.bf16 %v315
      %v325 = vunpack.c.l.bf16 %v316
      %v326 = vunpack.c.l.bf16 %v317
      %v327 = vunpack.c.l.bf16 %v318
      %v328 = vunpack.c.l.bf16 %v319
      %v330 = vlaneseq
      %v331 = vshrl.u32 %v330, 7
      %v332 = vsub.s32 0, %v331
      %v333 = vrot.slane %v320, %v332
      %v335 = vmul.f32 %v321, %v333
      %v336 = vmul.f32 %v322, %v333
      %v337 = vmul.f32 %v323, %v333
      %v338 = vmul.f32 %v324, %v333
      %v339 = vmul.f32 %v325, %v333
      %v340 = vmul.f32 %v326, %v333
      %v341 = vmul.f32 %v327, %v333
      %v342 = vmul.f32 %v328, %v333
      %v343 = vld [vmem:[%s2] sm:$0x1]
      %v345 = vlaneseq
      %v346 = vshrl.u32 %v345, 7
      %v347 = vsub.s32 0, %v346
      %v348 = vrot.slane %v343, %v347
      %v350 = vadd.f32 %v335, %v348
      %v351 = vadd.f32 %v336, %v348
      %v352 = vadd.f32 %v337, %v348
      %v353 = vadd.f32 %v338, %v348
      %v354 = vadd.f32 %v339, %v348
      %v355 = vadd.f32 %v340, %v348
      %v356 = vadd.f32 %v341, %v348
      %v357 = vadd.f32 %v342, %v348
      %v358 = vmax.f32 %v350, 0.0
      %v359 = vmax.f32 %v351, 0.0
      %v360 = vmax.f32 %v352, 0.0
      %v361 = vmax.f32 %v353, 0.0
      %v362 = vmax.f32 %v354, 0.0
      %v363 = vmax.f32 %v355, 0.0
      %v364 = vmax.f32 %v356, 0.0
      %v365 = vmax.f32 %v357, 0.0
      %v366 = vpack.c.bf16 %v358, %v358
      %v367 = vpack.c.bf16 %v359, %v359
      %v368 = vpack.c.bf16 %v360, %v360
      %v369 = vpack.c.bf16 %v361, %v361
      %v370 = vpack.c.bf16 %v362, %v362
      %v371 = vpack.c.bf16 %v363, %v363
      %v372 = vpack.c.bf16 %v364, %v364
      %v373 = vpack.c.bf16 %v365, %v365
      %v375 = vshrl.u32 %v366, 16
      %v377 = vrot.slane %v375, 7
      %v378 = vshll.u32 %v366, 16
      %v380 = vor.u32 %v377, %v378
      %v382 = vshrl.u32 %v367, 16
      %v384 = vrot.slane %v382, 7
      %v385 = vshll.u32 %v367, 16
      %v387 = vor.u32 %v384, %v385
      %v389 = vshrl.u32 %v368, 16
      %v391 = vrot.slane %v389, 7
      %v392 = vshll.u32 %v368, 16
      %v394 = vor.u32 %v391, %v392
      %v396 = vshrl.u32 %v369, 16
      %v398 = vrot.slane %v396, 7
      %v399 = vshll.u32 %v369, 16
      %v401 = vor.u32 %v398, %v399
      %v403 = vshrl.u32 %v370, 16
      %v405 = vrot.slane %v403, 7
      %v406 = vshll.u32 %v370, 16
      %v408 = vor.u32 %v405, %v406
      %v410 = vshrl.u32 %v371, 16
      %v412 = vrot.slane %v410, 7
      %v413 = vshll.u32 %v371, 16
      %v415 = vor.u32 %v412, %v413
      %v417 = vshrl.u32 %v372, 16
      %v419 = vrot.slane %v417, 7
      %v420 = vshll.u32 %v372, 16
      %v422 = vor.u32 %v419, %v420
      %v424 = vshrl.u32 %v373, 16
      %v426 = vrot.slane %v424, 7
      %v427 = vshll.u32 %v373, 16
      %v429 = vor.u32 %v426, %v427
      %vm438 = vcmask 1040384
      %vm439 = vsmask.f32 256
      %vm440 = vmand %vm438, %vm439
      %v441 = vsel %vm440, 0, %v380
      %v442 = vsel %vm440, 0, %v387
      %v443 = vsel %vm440, 0, %v394
      %v444 = vsel %vm440, 0, %v401
      %v445 = vsel %vm440, 0, %v408
      %v446 = vsel %vm440, 0, %v415
      %v447 = vsel %vm440, 0, %v422
      %v448 = vsel %vm440, 0, %v429
      %vm449 = vcmask 1044480
      %vm450 = vsmask.f32 4352
      %vm451 = vmand %vm449, %vm450
      %v452 = vsel %vm451, %v441, 0
      %v453 = vsel %vm451, %v442, 0
      %v454 = vsel %vm451, %v443, 0
      %v455 = vsel %vm451, %v444, 0
      %v456 = vsel %vm451, %v445, 0
      %v457 = vsel %vm451, %v446, 0
      %v458 = vsel %vm451, %v447, 0
      %v459 = vsel %vm451, %v448, 0
      %v468 = vunpack.c.l.b16 %v452
      %v469 = vunpack.c.h.b16 %v452
      %v470 = vunpack.c.l.b16 %v453
      %v471 = vunpack.c.h.b16 %v453
      %v472 = vunpack.c.l.b16 %v454
      %v473 = vunpack.c.h.b16 %v454
      %v474 = vunpack.c.l.b16 %v455
      %v475 = vunpack.c.h.b16 %v455
      %v476 = vunpack.c.l.b16 %v456
      %v477 = vunpack.c.h.b16 %v456
      %v478 = vunpack.c.l.b16 %v457
      %v479 = vunpack.c.h.b16 %v457
      %v480 = vunpack.c.l.b16 %v458
      %v481 = vunpack.c.h.b16 %v458
      %v482 = vunpack.c.l.b16 %v459
      %v483 = vunpack.c.h.b16 %v459
      %v484 = vpack.c.b16 %v468, %v468
      %v485 = vpack.c.b16 %v469, %v469
      %v486 = vpack.c.b16 %v470, %v470
      %v487 = vpack.c.b16 %v471, %v471
      %v488 = vpack.c.b16 %v472, %v472
      %v489 = vpack.c.b16 %v473, %v473
      %v490 = vpack.c.b16 %v474, %v474
      %v491 = vpack.c.b16 %v475, %v475
      %v492 = vpack.c.b16 %v476, %v476
      %v493 = vpack.c.b16 %v477, %v477
      %v494 = vpack.c.b16 %v478, %v478
      %v495 = vpack.c.b16 %v479, %v479
      %v496 = vpack.c.b16 %v480, %v480
      %v497 = vpack.c.b16 %v481, %v481
      %v498 = vpack.c.b16 %v482, %v482
      %v499 = vpack.c.b16 %v483, %v483
      %s516 = scalar_lea.vmem [#allocation2], 8
      %517 = vst [vmem:[%s516] sm:$0xf] %v484
      %518 = vst [vmem:[%s516 + $0x4] sm:$0x1] %v485
      %519 = vst [vmem:[%s516 + $0x8] sm:$0xf] %v486
      %520 = vst [vmem:[%s516 + $0xc] sm:$0x1] %v487
      %521 = vst [vmem:[%s516 + $0x10] sm:$0xf] %v488
      %522 = vst [vmem:[%s516 + $0x14] sm:$0x1] %v489
      %523 = vst [vmem:[%s516 + $0x18] sm:$0xf] %v490
      %524 = vst [vmem:[%s516 + $0x1c] sm:$0x1] %v491
      %525 = vst [vmem:[%s516 + $0x20] sm:$0xf] %v492
      %526 = vst [vmem:[%s516 + $0x24] sm:$0x1] %v493
      %527 = vst [vmem:[%s516 + $0x28] sm:$0xf] %v494
      %528 = vst [vmem:[%s516 + $0x2c] sm:$0x1] %v495
      %529 = vst [vmem:[%s516 + $0x30] sm:$0xf] %v496
      %530 = vst [vmem:[%s516 + $0x34] sm:$0x1] %v497
      %531 = vst [vmem:[%s516 + $0x38] sm:$0xf] %v498
      %532 = vst [vmem:[%s516 + $0x3c] sm:$0x1] %v499
      %p533 = scmp.gt.s32.totalorder %s23, 0
      // Predicated region
      $region37: #{residual_block_forward.4} parent=35 // pred_check
        %p534 = pneg %p533
      $region38: #{residual_block_forward.4} parent=35 // pred_check_branch
        %536 = sbr.rel (%p534) target = $region40
      $region39: #{residual_block_forward.4} parent=35 // pred_region
        %s537 = ssub.s32 %s309, 1
        %s538 = smul.addr %s537, 4
        %s539 = scalar_lea.vmem %s285, %s538
        %v540 = vld [vmem:[%s539] sm:$0xf]
        %v541 = vld [vmem:[%s1] sm:$0x1]
        %v542 = vunpack.c.l.bf16 %v540
        %v544 = vlaneseq
        %v545 = vshrl.u32 %v544, 7
        %v546 = vsub.s32 0, %v545
        %v547 = vrot.slane %v541, %v546
        %v549 = vmul.f32 %v542, %v547
        %v550 = vld [vmem:[%s2] sm:$0x1]
        %v552 = vlaneseq
        %v553 = vshrl.u32 %v552, 7
        %v554 = vsub.s32 0, %v553
        %v555 = vrot.slane %v550, %v554
        %v557 = vadd.f32 %v549, %v555
        %v558 = vmax.f32 %v557, 0.0
        %v559 = vpack.c.bf16 %v558, %v558
        %v561 = vshrl.u32 %v559, 16
        %v563 = vrot.slane %v561, 7
        %v564 = vshll.u32 %v559, 16
        %v566 = vor.u32 %v563, %v564
        %v568 = vsel %vm440, 0, %v566
        %v569 = vsel %vm451, %v568, 0
        %v571 = vunpack.c.l.b16 %v569
        %v572 = vunpack.c.h.b16 %v569
        %v573 = vpack.c.b16 %v571, %v571
        %v574 = vpack.c.b16 %v572, %v572
        %577 = vst [vmem:[#allocation2] sm:$0xf] %v573
        %578 = vst [vmem:[#allocation2 + $0x4] sm:$0x1] %v574
      $region40: #{residual_block_forward.4} parent=35 // pred_fallthru
        _
      %p579 = scmp.eq.s32.totalorder %s23, 0
      // Predicated region
      $region41: #{residual_block_forward.4} parent=35 // pred_check
        %p580 = pneg %p579
      $region42: #{residual_block_forward.4} parent=35 // pred_check_branch
        %582 = sbr.rel (%p580) target = $region44
      $region43: #{residual_block_forward.4} parent=35 // pred_region
        %583 = vst [vmem:[#allocation2] sm:$0xf] 0
        %584 = vst [vmem:[#allocation2 + $0x4] sm:$0x1] 0
      $region44: #{residual_block_forward.4} parent=35 // pred_fallthru
        _
      %p585 = scmp.lt.s32.totalorder %s23, 0
      // Predicated region
      $region45: #{residual_block_forward.4} parent=35 // pred_check
        %p586 = pneg %p585
      $region46: #{residual_block_forward.4} parent=35 // pred_check_branch
        %588 = sbr.rel (%p586) target = $region48
      $region47: #{residual_block_forward.4} parent=35 // pred_region
        %s589 = sadd.s32 %s309, 8
        %s590 = smul.addr %s589, 4
        %s591 = scalar_lea.vmem %s285, %s590
        %v592 = vld [vmem:[%s591] sm:$0xf]
        %v593 = vld [vmem:[%s1] sm:$0x1]
        %v594 = vunpack.c.l.bf16 %v592
        %v596 = vlaneseq
        %v597 = vshrl.u32 %v596, 7
        %v598 = vsub.s32 0, %v597
        %v599 = vrot.slane %v593, %v598
        %v601 = vmul.f32 %v594, %v599
        %v602 = vld [vmem:[%s2] sm:$0x1]
        %v604 = vlaneseq
        %v605 = vshrl.u32 %v604, 7
        %v606 = vsub.s32 0, %v605
        %v607 = vrot.slane %v602, %v606
        %v609 = vadd.f32 %v601, %v607
        %v610 = vmax.f32 %v609, 0.0
        %v611 = vpack.c.bf16 %v610, %v610
        %v613 = vshrl.u32 %v611, 16
        %v615 = vrot.slane %v613, 7
        %v616 = vshll.u32 %v611, 16
        %v618 = vor.u32 %v615, %v616
        %v620 = vsel %vm440, 0, %v618
        %v621 = vsel %vm451, %v620, 0
        %v623 = vunpack.c.l.b16 %v621
        %v624 = vunpack.c.h.b16 %v621
        %v625 = vpack.c.b16 %v623, %v623
        %v626 = vpack.c.b16 %v624, %v624
        %s629 = scalar_lea.vmem [#allocation2], 72
        %630 = vst [vmem:[%s629] sm:$0xf] %v625
        %631 = vst [vmem:[%s629 + $0x4] sm:$0x1] %v626
      $region48: #{residual_block_forward.4} parent=35 // pred_fallthru
        _
      // Predicated region
      $region49: #{residual_block_forward.4} parent=35 // pred_check
        %p632 = pneg %p579
      $region50: #{residual_block_forward.4} parent=35 // pred_check_branch
        %634 = sbr.rel (%p632) target = $region52
      $region51: #{residual_block_forward.4} parent=35 // pred_region
        %s635 = scalar_lea.vmem [#allocation2], 72
        %636 = vst [vmem:[%s635] sm:$0xf] 0
        %637 = vst [vmem:[%s635 + $0x4] sm:$0x1] 0
      $region52: #{residual_block_forward.4} parent=35 // pred_fallthru
        _
      %v638 = vld [vmem:[#allocation2] sm:$0xf]
      %v639 = vld [vmem:[#allocation2 + $0x8] sm:$0xf]
      %v640 = vld [vmem:[#allocation2 + $0x10] sm:$0xf]
      %v641 = vld [vmem:[#allocation2 + $0x18] sm:$0xf]
      %v642 = vld [vmem:[#allocation2 + $0x20] sm:$0xf]
      %v643 = vld [vmem:[#allocation2 + $0x28] sm:$0xf]
      %v644 = vld [vmem:[#allocation2 + $0x30] sm:$0xf]
      %v645 = vld [vmem:[#allocation2 + $0x38] sm:$0xf]
      %v646 = vld [vmem:[#allocation2 + $0x4] sm:$0x1]
      %v647 = vld [vmem:[#allocation2 + $0xc] sm:$0x1]
      %v648 = vld [vmem:[#allocation2 + $0x14] sm:$0x1]
      %v649 = vld [vmem:[#allocation2 + $0x1c] sm:$0x1]
      %v650 = vld [vmem:[#allocation2 + $0x24] sm:$0x1]
      %v651 = vld [vmem:[#allocation2 + $0x2c] sm:$0x1]
      %v652 = vld [vmem:[#allocation2 + $0x34] sm:$0x1]
      %v653 = vld [vmem:[#allocation2 + $0x3c] sm:$0x1]
      %v654 = vld [vmem:[#allocation2] sm:$0xe]
      %v655 = vld [vmem:[#allocation2 + $0x8] sm:$0xe]
      %v656 = vld [vmem:[#allocation2 + $0x10] sm:$0xe]
      %v657 = vld [vmem:[#allocation2 + $0x18] sm:$0xe]
      %v658 = vld [vmem:[#allocation2 + $0x20] sm:$0xe]
      %v659 = vld [vmem:[#allocation2 + $0x28] sm:$0xe]
      %v660 = vld [vmem:[#allocation2 + $0x30] sm:$0xe]
      %v661 = vld [vmem:[#allocation2 + $0x38] sm:$0xe]
      %v678 = vunpack.c.l.b16 %v638
      %v679 = vunpack.c.l.b16 %v646
      %v680 = vunpack.c.l.b16 %v639
      %v681 = vunpack.c.l.b16 %v647
      %v682 = vunpack.c.l.b16 %v640
      %v683 = vunpack.c.l.b16 %v648
      %v684 = vunpack.c.l.b16 %v641
      %v685 = vunpack.c.l.b16 %v649
      %v686 = vunpack.c.l.b16 %v642
      %v687 = vunpack.c.l.b16 %v650
      %v688 = vunpack.c.l.b16 %v643
      %v689 = vunpack.c.l.b16 %v651
      %v690 = vunpack.c.l.b16 %v644
      %v691 = vunpack.c.l.b16 %v652
      %v692 = vunpack.c.l.b16 %v645
      %v693 = vunpack.c.l.b16 %v653
      %v694 = vpack.c.b16 %v679, %v678
      %v695 = vpack.c.b16 %v681, %v680
      %v696 = vpack.c.b16 %v683, %v682
      %v697 = vpack.c.b16 %v685, %v684
      %v698 = vpack.c.b16 %v687, %v686
      %v699 = vpack.c.b16 %v689, %v688
      %v700 = vpack.c.b16 %v691, %v690
      %v701 = vpack.c.b16 %v693, %v692
      %v703 = vshrl.u32 %v694, 16
      %v705 = vshll.u32 %v694, 16
      %v707 = vrot.slane %v705, 1
      %v708 = vor.u32 %v703, %v707
      %v710 = vshrl.u32 %v695, 16
      %v712 = vshll.u32 %v695, 16
      %v714 = vrot.slane %v712, 1
      %v715 = vor.u32 %v710, %v714
      %v717 = vshrl.u32 %v696, 16
      %v719 = vshll.u32 %v696, 16
      %v721 = vrot.slane %v719, 1
      %v722 = vor.u32 %v717, %v721
      %v724 = vshrl.u32 %v697, 16
      %v726 = vshll.u32 %v697, 16
      %v728 = vrot.slane %v726, 1
      %v729 = vor.u32 %v724, %v728
      %v731 = vshrl.u32 %v698, 16
      %v733 = vshll.u32 %v698, 16
      %v735 = vrot.slane %v733, 1
      %v736 = vor.u32 %v731, %v735
      %v738 = vshrl.u32 %v699, 16
      %v740 = vshll.u32 %v699, 16
      %v742 = vrot.slane %v740, 1
      %v743 = vor.u32 %v738, %v742
      %v745 = vshrl.u32 %v700, 16
      %v747 = vshll.u32 %v700, 16
      %v749 = vrot.slane %v747, 1
      %v750 = vor.u32 %v745, %v749
      %v752 = vshrl.u32 %v701, 16
      %v754 = vshll.u32 %v701, 16
      %v756 = vrot.slane %v754, 1
      %v757 = vor.u32 %v752, %v756
      %v766 = vunpack.c.l.b16 %v654
      %v767 = vunpack.c.l.b16 %v655
      %v768 = vunpack.c.l.b16 %v656
      %v769 = vunpack.c.l.b16 %v657
      %v770 = vunpack.c.l.b16 %v658
      %v771 = vunpack.c.l.b16 %v659
      %v772 = vunpack.c.l.b16 %v660
      %v773 = vunpack.c.l.b16 %v661
      %v774 = vpack.c.b16 %v679, %v766
      %v775 = vpack.c.b16 %v681, %v767
      %v776 = vpack.c.b16 %v683, %v768
      %v777 = vpack.c.b16 %v685, %v769
      %v778 = vpack.c.b16 %v687, %v770
      %v779 = vpack.c.b16 %v689, %v771
      %v780 = vpack.c.b16 %v691, %v772
      %v781 = vpack.c.b16 %v693, %v773
      %v782 = vrot.slane %v774, 1
      %v783 = vrot.slane %v775, 1
      %v784 = vrot.slane %v776, 1
      %v785 = vrot.slane %v777, 1
      %v786 = vrot.slane %v778, 1
      %v787 = vrot.slane %v779, 1
      %v788 = vrot.slane %v780, 1
      %v789 = vrot.slane %v781, 1
      %v790 = vunpack.c.l.b16 %v708
      %v791 = vunpack.c.l.b16 %v782
      %v792 = vunpack.c.l.b16 %v715
      %v793 = vunpack.c.l.b16 %v783
      %v794 = vunpack.c.l.b16 %v722
      %v795 = vunpack.c.l.b16 %v784
      %v796 = vunpack.c.l.b16 %v729
      %v797 = vunpack.c.l.b16 %v785
      %v798 = vunpack.c.l.b16 %v736
      %v799 = vunpack.c.l.b16 %v786
      %v800 = vunpack.c.l.b16 %v743
      %v801 = vunpack.c.l.b16 %v787
      %v802 = vunpack.c.l.b16 %v750
      %v803 = vunpack.c.l.b16 %v788
      %v804 = vunpack.c.l.b16 %v757
      %v805 = vunpack.c.l.b16 %v789
      %v806 = vld [vmem:[%s3] sm:$0xf]
      %v807 = vld [vmem:[%s3 + $0x4] sm:$0xf]
      %v808 = vld [vmem:[%s3 + $0x8] sm:$0xf]
      %v809 = vld [vmem:[%s3 + $0xc] sm:$0xf]
      %v810 = vld [vmem:[%s3 + $0x10] sm:$0xf]
      %v811 = vld [vmem:[%s3 + $0x14] sm:$0xf]
      %v812 = vld [vmem:[%s3 + $0x18] sm:$0xf]
      %v813 = vld [vmem:[%s3 + $0x1c] sm:$0xf]
      %v814 = vld [vmem:[%s3 + $0x20] sm:$0xf]
      %v815 = vld [vmem:[%s3 + $0x24] sm:$0xf]
      %v816 = vld [vmem:[%s3 + $0x28] sm:$0xf]
      %v817 = vld [vmem:[%s3 + $0x2c] sm:$0xf]
      %v818 = vld [vmem:[%s3 + $0x30] sm:$0xf]
      %v819 = vld [vmem:[%s3 + $0x34] sm:$0xf]
      %v820 = vld [vmem:[%s3 + $0x38] sm:$0xf]
      %v821 = vld [vmem:[%s3 + $0x3c] sm:$0xf]
      %v822 = vld [vmem:[%s3 + $0x40] sm:$0xf]
      %v823 = vld [vmem:[%s3 + $0x44] sm:$0xf]
      %v824 = vld [vmem:[%s3 + $0x48] sm:$0xf]
      %v825 = vld [vmem:[%s3 + $0x4c] sm:$0xf]
      %v826 = vld [vmem:[%s3 + $0x50] sm:$0xf]
      %v827 = vld [vmem:[%s3 + $0x54] sm:$0xf]
      %v828 = vld [vmem:[%s3 + $0x58] sm:$0xf]
      %v829 = vld [vmem:[%s3 + $0x5c] sm:$0xf]
      %v830 = vld [vmem:[%s3 + $0x60] sm:$0xf]
      %v831 = vld [vmem:[%s3 + $0x64] sm:$0xf]
      %v832 = vld [vmem:[%s3 + $0x68] sm:$0xf]
      %v833 = vld [vmem:[%s3 + $0x6c] sm:$0xf]
      %v834 = vld [vmem:[%s3 + $0x70] sm:$0xf]
      %v835 = vld [vmem:[%s3 + $0x74] sm:$0xf]
      %v836 = vld [vmem:[%s3 + $0x78] sm:$0xf]
      %v837 = vld [vmem:[%s3 + $0x7c] sm:$0xf]
      %v838 = vld [vmem:[%s3 + $0x80] sm:$0xf]
      %v839 = vld [vmem:[%s3 + $0x84] sm:$0xf]
      %v840 = vld [vmem:[%s3 + $0x88] sm:$0xf]
      %v841 = vld [vmem:[%s3 + $0x8c] sm:$0xf]
      %v842 = vld [vmem:[%s3 + $0x90] sm:$0xf]
      %v843 = vld [vmem:[%s3 + $0x94] sm:$0xf]
      %v844 = vld [vmem:[%s3 + $0x98] sm:$0xf]
      %v845 = vld [vmem:[%s3 + $0x9c] sm:$0xf]
      %v846 = vld [vmem:[%s3 + $0xa0] sm:$0xf]
      %v847 = vld [vmem:[%s3 + $0xa4] sm:$0xf]
      %v848 = vld [vmem:[%s3 + $0xa8] sm:$0xf]
      %v849 = vld [vmem:[%s3 + $0xac] sm:$0xf]
      %v850 = vld [vmem:[%s3 + $0xb0] sm:$0xf]
      %v851 = vld [vmem:[%s3 + $0xb4] sm:$0xf]
      %v852 = vld [vmem:[%s3 + $0xb8] sm:$0xf]
      %v853 = vld [vmem:[%s3 + $0xbc] sm:$0xf]
      %v854 = vld [vmem:[%s516] sm:$0xf]
      %v855 = vld [vmem:[%s516 + $0x8] sm:$0xf]
      %v856 = vld [vmem:[%s516 + $0x10] sm:$0xf]
      %v857 = vld [vmem:[%s516 + $0x18] sm:$0xf]
      %v858 = vld [vmem:[%s516 + $0x20] sm:$0xf]
      %v859 = vld [vmem:[%s516 + $0x28] sm:$0xf]
      %v860 = vld [vmem:[%s516 + $0x30] sm:$0xf]
      %v861 = vld [vmem:[%s516 + $0x38] sm:$0xf]
      %v862 = vld [vmem:[%s516 + $0x4] sm:$0x1]
      %v863 = vld [vmem:[%s516 + $0xc] sm:$0x1]
      %v864 = vld [vmem:[%s516 + $0x14] sm:$0x1]
      %v865 = vld [vmem:[%s516 + $0x1c] sm:$0x1]
      %v866 = vld [vmem:[%s516 + $0x24] sm:$0x1]
      %v867 = vld [vmem:[%s516 + $0x2c] sm:$0x1]
      %v868 = vld [vmem:[%s516 + $0x34] sm:$0x1]
      %v869 = vld [vmem:[%s516 + $0x3c] sm:$0x1]
      %v870 = vld [vmem:[%s516] sm:$0xe]
      %v871 = vld [vmem:[%s516 + $0x8] sm:$0xe]
      %v872 = vld [vmem:[%s516 + $0x10] sm:$0xe]
      %v873 = vld [vmem:[%s516 + $0x18] sm:$0xe]
      %v874 = vld [vmem:[%s516 + $0x20] sm:$0xe]
      %v875 = vld [vmem:[%s516 + $0x28] sm:$0xe]
      %v876 = vld [vmem:[%s516 + $0x30] sm:$0xe]
      %v877 = vld [vmem:[%s516 + $0x38] sm:$0xe]
      %v894 = vunpack.c.l.b16 %v854
      %v895 = vunpack.c.l.b16 %v862
      %v896 = vunpack.c.l.b16 %v855
      %v897 = vunpack.c.l.b16 %v863
      %v898 = vunpack.c.l.b16 %v856
      %v899 = vunpack.c.l.b16 %v864
      %v900 = vunpack.c.l.b16 %v857
      %v901 = vunpack.c.l.b16 %v865
      %v902 = vunpack.c.l.b16 %v858
      %v903 = vunpack.c.l.b16 %v866
      %v904 = vunpack.c.l.b16 %v859
      %v905 = vunpack.c.l.b16 %v867
      %v906 = vunpack.c.l.b16 %v860
      %v907 = vunpack.c.l.b16 %v868
      %v908 = vunpack.c.l.b16 %v861
      %v909 = vunpack.c.l.b16 %v869
      %v910 = vpack.c.b16 %v895, %v894
      %v911 = vpack.c.b16 %v897, %v896
      %v912 = vpack.c.b16 %v899, %v898
      %v913 = vpack.c.b16 %v901, %v900
      %v914 = vpack.c.b16 %v903, %v902
      %v915 = vpack.c.b16 %v905, %v904
      %v916 = vpack.c.b16 %v907, %v906
      %v917 = vpack.c.b16 %v909, %v908
      %v919 = vshrl.u32 %v910, 16
      %v921 = vshll.u32 %v910, 16
      %v923 = vrot.slane %v921, 1
      %v924 = vor.u32 %v919, %v923
      %v926 = vshrl.u32 %v911, 16
      %v928 = vshll.u32 %v911, 16
      %v930 = vrot.slane %v928, 1
      %v931 = vor.u32 %v926, %v930
      %v933 = vshrl.u32 %v912, 16
      %v935 = vshll.u32 %v912, 16
      %v937 = vrot.slane %v935, 1
      %v938 = vor.u32 %v933, %v937
      %v940 = vshrl.u32 %v913, 16
      %v942 = vshll.u32 %v913, 16
      %v944 = vrot.slane %v942, 1
      %v945 = vor.u32 %v940, %v944
      %v947 = vshrl.u32 %v914, 16
      %v949 = vshll.u32 %v914, 16
      %v951 = vrot.slane %v949, 1
      %v952 = vor.u32 %v947, %v951
      %v954 = vshrl.u32 %v915, 16
      %v956 = vshll.u32 %v915, 16
      %v958 = vrot.slane %v956, 1
      %v959 = vor.u32 %v954, %v958
      %v961 = vshrl.u32 %v916, 16
      %v963 = vshll.u32 %v916, 16
      %v965 = vrot.slane %v963, 1
      %v966 = vor.u32 %v961, %v965
      %v968 = vshrl.u32 %v917, 16
      %v970 = vshll.u32 %v917, 16
      %v972 = vrot.slane %v970, 1
      %v973 = vor.u32 %v968, %v972
      %v982 = vunpack.c.l.b16 %v870
      %v983 = vunpack.c.l.b16 %v871
      %v984 = vunpack.c.l.b16 %v872
      %v985 = vunpack.c.l.b16 %v873
      %v986 = vunpack.c.l.b16 %v874
      %v987 = vunpack.c.l.b16 %v875
      %v988 = vunpack.c.l.b16 %v876
      %v989 = vunpack.c.l.b16 %v877
      %v990 = vpack.c.b16 %v895, %v982
      %v991 = vpack.c.b16 %v897, %v983
      %v992 = vpack.c.b16 %v899, %v984
      %v993 = vpack.c.b16 %v901, %v985
      %v994 = vpack.c.b16 %v903, %v986
      %v995 = vpack.c.b16 %v905, %v987
      %v996 = vpack.c.b16 %v907, %v988
      %v997 = vpack.c.b16 %v909, %v989
      %v998 = vrot.slane %v990, 1
      %v999 = vrot.slane %v991, 1
      %v1000 = vrot.slane %v992, 1
      %v1001 = vrot.slane %v993, 1
      %v1002 = vrot.slane %v994, 1
      %v1003 = vrot.slane %v995, 1
      %v1004 = vrot.slane %v996, 1
      %v1005 = vrot.slane %v997, 1
      %v1006 = vunpack.c.l.b16 %v924
      %v1007 = vunpack.c.l.b16 %v998
      %v1008 = vunpack.c.l.b16 %v931
      %v1009 = vunpack.c.l.b16 %v999
      %v1010 = vunpack.c.l.b16 %v938
      %v1011 = vunpack.c.l.b16 %v1000
      %v1012 = vunpack.c.l.b16 %v945
      %v1013 = vunpack.c.l.b16 %v1001
      %v1014 = vunpack.c.l.b16 %v952
      %v1015 = vunpack.c.l.b16 %v1002
      %v1016 = vunpack.c.l.b16 %v959
      %v1017 = vunpack.c.l.b16 %v1003
      %v1018 = vunpack.c.l.b16 %v966
      %v1019 = vunpack.c.l.b16 %v1004
      %v1020 = vunpack.c.l.b16 %v973
      %v1021 = vunpack.c.l.b16 %v1005
      %s1022 = scalar_lea.vmem %s3, 192
      %v1023 = vld [vmem:[%s1022] sm:$0xf]
      %v1024 = vld [vmem:[%s1022 + $0x4] sm:$0xf]
      %v1025 = vld [vmem:[%s1022 + $0x8] sm:$0xf]
      %v1026 = vld [vmem:[%s1022 + $0xc] sm:$0xf]
      %v1027 = vld [vmem:[%s1022 + $0x10] sm:$0xf]
      %v1028 = vld [vmem:[%s1022 + $0x14] sm:$0xf]
      %v1029 = vld [vmem:[%s1022 + $0x18] sm:$0xf]
      %v1030 = vld [vmem:[%s1022 + $0x1c] sm:$0xf]
      %v1031 = vld [vmem:[%s1022 + $0x20] sm:$0xf]
      %v1032 = vld [vmem:[%s1022 + $0x24] sm:$0xf]
      %v1033 = vld [vmem:[%s1022 + $0x28] sm:$0xf]
      %v1034 = vld [vmem:[%s1022 + $0x2c] sm:$0xf]
      %v1035 = vld [vmem:[%s1022 + $0x30] sm:$0xf]
      %v1036 = vld [vmem:[%s1022 + $0x34] sm:$0xf]
      %v1037 = vld [vmem:[%s1022 + $0x38] sm:$0xf]
      %v1038 = vld [vmem:[%s1022 + $0x3c] sm:$0xf]
      %v1039 = vld [vmem:[%s1022 + $0x40] sm:$0xf]
      %v1040 = vld [vmem:[%s1022 + $0x44] sm:$0xf]
      %v1041 = vld [vmem:[%s1022 + $0x48] sm:$0xf]
      %v1042 = vld [vmem:[%s1022 + $0x4c] sm:$0xf]
      %v1043 = vld [vmem:[%s1022 + $0x50] sm:$0xf]
      %v1044 = vld [vmem:[%s1022 + $0x54] sm:$0xf]
      %v1045 = vld [vmem:[%s1022 + $0x58] sm:$0xf]
      %v1046 = vld [vmem:[%s1022 + $0x5c] sm:$0xf]
      %v1047 = vld [vmem:[%s1022 + $0x60] sm:$0xf]
      %v1048 = vld [vmem:[%s1022 + $0x64] sm:$0xf]
      %v1049 = vld [vmem:[%s1022 + $0x68] sm:$0xf]
      %v1050 = vld [vmem:[%s1022 + $0x6c] sm:$0xf]
      %v1051 = vld [vmem:[%s1022 + $0x70] sm:$0xf]
      %v1052 = vld [vmem:[%s1022 + $0x74] sm:$0xf]
      %v1053 = vld [vmem:[%s1022 + $0x78] sm:$0xf]
      %v1054 = vld [vmem:[%s1022 + $0x7c] sm:$0xf]
      %v1055 = vld [vmem:[%s1022 + $0x80] sm:$0xf]
      %v1056 = vld [vmem:[%s1022 + $0x84] sm:$0xf]
      %v1057 = vld [vmem:[%s1022 + $0x88] sm:$0xf]
      %v1058 = vld [vmem:[%s1022 + $0x8c] sm:$0xf]
      %v1059 = vld [vmem:[%s1022 + $0x90] sm:$0xf]
      %v1060 = vld [vmem:[%s1022 + $0x94] sm:$0xf]
      %v1061 = vld [vmem:[%s1022 + $0x98] sm:$0xf]
      %v1062 = vld [vmem:[%s1022 + $0x9c] sm:$0xf]
      %v1063 = vld [vmem:[%s1022 + $0xa0] sm:$0xf]
      %v1064 = vld [vmem:[%s1022 + $0xa4] sm:$0xf]
      %v1065 = vld [vmem:[%s1022 + $0xa8] sm:$0xf]
      %v1066 = vld [vmem:[%s1022 + $0xac] sm:$0xf]
      %v1067 = vld [vmem:[%s1022 + $0xb0] sm:$0xf]
      %v1068 = vld [vmem:[%s1022 + $0xb4] sm:$0xf]
      %v1069 = vld [vmem:[%s1022 + $0xb8] sm:$0xf]
      %v1070 = vld [vmem:[%s1022 + $0xbc] sm:$0xf]
      %v1071 = vpack.c.b16 %v896, %v894
      %v1072 = vpack.c.b16 %v1008, %v1006
      %v1073 = vpack.c.b16 %v1009, %v1007
      %v1074 = vpack.c.b16 %v900, %v898
      %v1075 = vpack.c.b16 %v1012, %v1010
      %v1076 = vpack.c.b16 %v1013, %v1011
      %v1077 = vpack.c.b16 %v904, %v902
      %v1078 = vpack.c.b16 %v1016, %v1014
      %v1079 = vpack.c.b16 %v1017, %v1015
      %v1080 = vpack.c.b16 %v908, %v906
      %v1081 = vpack.c.b16 %v1020, %v1018
      %v1082 = vpack.c.b16 %v1021, %v1019
      %v1143 = vunpack.c.l.b16 %v1023
      %v1144 = vunpack.c.l.b16 %v1024
      %v1145 = vunpack.c.l.b16 %v1025
      %v1146 = vunpack.c.l.b16 %v1026
      %v1147 = vunpack.c.l.b16 %v1027
      %v1148 = vunpack.c.l.b16 %v1028
      %v1149 = vunpack.c.l.b16 %v1029
      %v1150 = vunpack.c.l.b16 %v1030
      %v1151 = vunpack.c.l.b16 %v1031
      %v1152 = vunpack.c.l.b16 %v1032
      %v1153 = vunpack.c.l.b16 %v1033
      %v1154 = vunpack.c.l.b16 %v1034
      %v1155 = vunpack.c.l.b16 %v1035
      %v1156 = vunpack.c.l.b16 %v1036
      %v1157 = vunpack.c.l.b16 %v1037
      %v1158 = vunpack.c.l.b16 %v1038
      %v1159 = vunpack.c.l.b16 %v1039
      %v1160 = vunpack.c.l.b16 %v1040
      %v1161 = vunpack.c.l.b16 %v1041
      %v1162 = vunpack.c.l.b16 %v1042
      %v1163 = vunpack.c.l.b16 %v1043
      %v1164 = vunpack.c.l.b16 %v1044
      %v1165 = vunpack.c.l.b16 %v1045
      %v1166 = vunpack.c.l.b16 %v1046
      %v1167 = vunpack.c.l.b16 %v1047
      %v1168 = vunpack.c.l.b16 %v1048
      %v1169 = vunpack.c.l.b16 %v1049
      %v1170 = vunpack.c.l.b16 %v1050
      %v1171 = vunpack.c.l.b16 %v1051
      %v1172 = vunpack.c.l.b16 %v1052
      %v1173 = vunpack.c.l.b16 %v1053
      %v1174 = vunpack.c.l.b16 %v1054
      %v1175 = vunpack.c.l.b16 %v1055
      %v1176 = vunpack.c.l.b16 %v1056
      %v1177 = vunpack.c.l.b16 %v1057
      %v1178 = vunpack.c.l.b16 %v1058
      %v1179 = vunpack.c.l.b16 %v1059
      %v1180 = vunpack.c.l.b16 %v1060
      %v1181 = vunpack.c.l.b16 %v1061
      %v1182 = vunpack.c.l.b16 %v1062
      %v1183 = vunpack.c.l.b16 %v1063
      %v1184 = vunpack.c.l.b16 %v1064
      %v1185 = vunpack.c.l.b16 %v1065
      %v1186 = vunpack.c.l.b16 %v1066
      %v1187 = vunpack.c.l.b16 %v1067
      %v1188 = vunpack.c.l.b16 %v1068
      %v1189 = vunpack.c.l.b16 %v1069
      %v1190 = vunpack.c.l.b16 %v1070
      %v1191 = vpack.c.b16 %v1144, %v1143
      %v1192 = vpack.c.b16 %v1146, %v1145
      %v1193 = vpack.c.b16 %v1148, %v1147
      %v1194 = vpack.c.b16 %v1150, %v1149
      %v1195 = vpack.c.b16 %v1152, %v1151
      %v1196 = vpack.c.b16 %v1154, %v1153
      %v1197 = vpack.c.b16 %v1156, %v1155
      %v1198 = vpack.c.b16 %v1158, %v1157
      %v1199 = vpack.c.b16 %v1160, %v1159
      %v1200 = vpack.c.b16 %v1162, %v1161
      %v1201 = vpack.c.b16 %v1164, %v1163
      %v1202 = vpack.c.b16 %v1166, %v1165
      %v1203 = vpack.c.b16 %v1168, %v1167
      %v1204 = vpack.c.b16 %v1170, %v1169
      %v1205 = vpack.c.b16 %v1172, %v1171
      %v1206 = vpack.c.b16 %v1174, %v1173
      %v1207 = vpack.c.b16 %v1176, %v1175
      %v1208 = vpack.c.b16 %v1178, %v1177
      %v1209 = vpack.c.b16 %v1180, %v1179
      %v1210 = vpack.c.b16 %v1182, %v1181
      %v1211 = vpack.c.b16 %v1184, %v1183
      %v1212 = vpack.c.b16 %v1186, %v1185
      %v1213 = vpack.c.b16 %v1188, %v1187
      %v1214 = vpack.c.b16 %v1190, %v1189
      %1239 = vmatprep.subr.bf16.mxu0 0
      %1240 = vmatpush1.bf16.msra.mxu0 %v1191
      %1241 = vmatprep.subr.bf16.mxu0 0
      %1242 = vmatpush1.bf16.msra.mxu0 %v1192
      %1243 = vmatprep.subr.bf16.mxu0 0
      %1244 = vmatpush1.bf16.msra.mxu0 %v1193
      %1245 = vmatprep.subr.bf16.mxu0 0
      %1246 = vmatpush1.bf16.msra.mxu0 %v1194
      %1247 = vmatprep.subr.bf16.mxu0 0
      %1248 = vmatpush1.bf16.msra.mxu0 %v1195
      %1249 = vmatprep.subr.bf16.mxu0 0
      %1250 = vmatpush1.bf16.msra.mxu0 %v1196
      %1251 = vmatprep.subr.bf16.mxu0 0
      %1252 = vmatpush1.bf16.msra.mxu0 %v1197
      %1253 = vmatprep.subr.bf16.mxu0 0
      %1254 = vmatpush1.bf16.msra.mxu0 %v1198
      %1255 = vmatprep.subr.bf16.mxu0 0
      %1256 = vmatpush1.bf16.msra.mxu0 %v1199
      %1257 = vmatprep.subr.bf16.mxu0 0
      %1258 = vmatpush1.bf16.msra.mxu0 %v1200
      %1259 = vmatprep.subr.bf16.mxu0 0
      %1260 = vmatpush1.bf16.msra.mxu0 %v1201
      %1261 = vmatprep.subr.bf16.mxu0 0
      %1262 = vmatpush1.bf16.msra.mxu0 %v1202
      %1263 = vmatprep.subr.bf16.mxu0 0
      %1264 = vmatpush1.bf16.msra.mxu0 %v1203
      %1265 = vmatprep.subr.bf16.mxu0 0
      %1266 = vmatpush1.bf16.msra.mxu0 %v1204
      %1267 = vmatprep.subr.bf16.mxu0 0
      %1268 = vmatpush1.bf16.msra.mxu0 %v1205
      %1269 = vmatprep.subr.bf16.mxu0 0
      %1270 = vmatpush1.bf16.msra.mxu0 %v1206
      %1271 = vmatprep.mubr.bf16.mxu0 %v1072
      %1272 = vmatmul.mubr.bf16.gmra.mrb[0].mxu0 %v1071
      %v1273 = vpop.f32.mrb[0].mxu0
      %v1274 = vadd.f32 0.0, %v1273
      %v1275 = vpop.f32.mrb[0].mxu0
      %v1276 = vpop.f32.mrb[0].mxu0
      %v1277 = vadd.f32 0.0, %v1276
      %v1278 = vpop.f32.mrb[0].mxu0
      %1279 = vmatprep.mubr.bf16.mxu0 %v1075
      %1280 = vmatmul.mubr.bf16.gmra.mrb[0].mxu0 %v1074
      %v1281 = vpop.f32.mrb[0].mxu0
      %v1282 = vadd.f32 0.0, %v1281
      %v1283 = vpop.f32.mrb[0].mxu0
      %v1284 = vpop.f32.mrb[0].mxu0
      %v1285 = vadd.f32 0.0, %v1284
      %v1286 = vpop.f32.mrb[0].mxu0
      %1287 = vmatprep.mubr.bf16.mxu0 %v1078
      %1288 = vmatmul.mubr.bf16.gmra.mrb[0].mxu0 %v1077
      %v1289 = vpop.f32.mrb[0].mxu0
      %v1290 = vadd.f32 0.0, %v1289
      %v1291 = vpop.f32.mrb[0].mxu0
      %v1292 = vpop.f32.mrb[0].mxu0
      %v1293 = vadd.f32 0.0, %v1292
      %v1294 = vpop.f32.mrb[0].mxu0
      %1295 = vmatprep.mubr.bf16.mxu0 %v1081
      %1296 = vmatmul.mubr.bf16.gmra.mrb[0].mxu0 %v1080
      %v1297 = vpop.f32.mrb[0].mxu0
      %v1298 = vadd.f32 0.0, %v1297
      %v1299 = vpop.f32.mrb[0].mxu0
      %v1300 = vpop.f32.mrb[0].mxu0
      %v1301 = vadd.f32 0.0, %v1300
      %v1302 = vpop.f32.mrb[0].mxu0
      %1303 = vdwg.mxu0
      %1304 = vmatprep.subr.bf16.mxu0 0
      %1305 = vmatpush1.bf16.msra.mxu0 %v1207
      %1306 = vmatprep.subr.bf16.mxu0 0
      %1307 = vmatpush1.bf16.msra.mxu0 %v1208
      %1308 = vmatprep.subr.bf16.mxu0 0
      %1309 = vmatpush1.bf16.msra.mxu0 %v1209
      %1310 = vmatprep.subr.bf16.mxu0 0
      %1311 = vmatpush1.bf16.msra.mxu0 %v1210
      %1312 = vmatprep.subr.bf16.mxu0 0
      %1313 = vmatpush1.bf16.msra.mxu0 %v1211
      %1314 = vmatprep.subr.bf16.mxu0 0
      %1315 = vmatpush1.bf16.msra.mxu0 %v1212
      %1316 = vmatprep.subr.bf16.mxu0 0
      %1317 = vmatpush1.bf16.msra.mxu0 %v1213
      %1318 = vmatprep.subr.bf16.mxu0 0
      %1319 = vmatpush1.bf16.msra.mxu0 %v1214
      %1320 = vmatprep.subr.bf16.mxu0 0
      %1321 = vmatpush1.bf16.msra.mxu0 0
      %1322 = vmatprep.subr.bf16.mxu0 0
      %1323 = vmatpush1.bf16.msra.mxu0 0
      %1324 = vmatprep.subr.bf16.mxu0 0
      %1325 = vmatpush1.bf16.msra.mxu0 0
      %1326 = vmatprep.subr.bf16.mxu0 0
      %1327 = vmatpush1.bf16.msra.mxu0 0
      %1328 = vmatprep.subr.bf16.mxu0 0
      %1329 = vmatpush1.bf16.msra.mxu0 0
      %1330 = vmatprep.subr.bf16.mxu0 0
      %1331 = vmatpush1.bf16.msra.mxu0 0
      %1332 = vmatprep.subr.bf16.mxu0 0
      %1333 = vmatpush1.bf16.msra.mxu0 0
      %1334 = vmatprep.subr.bf16.mxu0 0
      %1335 = vmatpush1.bf16.msra.mxu0 0
      %1336 = vmatprep.mubr.bf16.mxu0 0
      %1337 = vmatmul.mubr.bf16.gmra.mrb[0].mxu0 %v1073
      %v1338 = vpop.f32.mrb[0].mxu0
      %v1339 = vadd.f32 %v1274, %v1338
      %v1340 = vpop.f32.mrb[0].mxu0
      %v1341 = vpop.f32.mrb[0].mxu0
      %v1342 = vadd.f32 %v1277, %v1341
      %v1343 = vpop.f32.mrb[0].mxu0
      %1344 = vmatprep.mubr.bf16.mxu0 0
      %1345 = vmatmul.mubr.bf16.gmra.mrb[0].mxu0 %v1076
      %v1346 = vpop.f32.mrb[0].mxu0
      %v1347 = vadd.f32 %v1282, %v1346
      %v1348 = vpop.f32.mrb[0].mxu0
      %v1349 = vpop.f32.mrb[0].mxu0
      %v1350 = vadd.f32 %v1285, %v1349
      %v1351 = vpop.f32.mrb[0].mxu0
      %1352 = vmatprep.mubr.bf16.mxu0 0
      %1353 = vmatmul.mubr.bf16.gmra.mrb[0].mxu0 %v1079
      %v1354 = vpop.f32.mrb[0].mxu0
      %v1355 = vadd.f32 %v1290, %v1354
      %v1356 = vpop.f32.mrb[0].mxu0
      %v1357 = vpop.f32.mrb[0].mxu0
      %v1358 = vadd.f32 %v1293, %v1357
      %v1359 = vpop.f32.mrb[0].mxu0
      %1360 = vmatprep.mubr.bf16.mxu0 0
      %1361 = vmatmul.mubr.bf16.gmra.mrb[0].mxu0 %v1082
      %v1362 = vpop.f32.mrb[0].mxu0
      %v1363 = vadd.f32 %v1298, %v1362
      %v1364 = vpop.f32.mrb[0].mxu0
      %v1365 = vpop.f32.mrb[0].mxu0
      %v1366 = vadd.f32 %v1301, %v1365
      %v1367 = vpop.f32.mrb[0].mxu0
      %1368 = vdwg.mxu0
      %v1369 = vpack.c.b16 %v680, %v678
      %v1370 = vpack.c.b16 %v792, %v790
      %v1371 = vpack.c.b16 %v793, %v791
      %v1372 = vpack.c.b16 %v684, %v682
      %v1373 = vpack.c.b16 %v796, %v794
      %v1374 = vpack.c.b16 %v797, %v795
      %v1375 = vpack.c.b16 %v688, %v686
      %v1376 = vpack.c.b16 %v800, %v798
      %v1377 = vpack.c.b16 %v801, %v799
      %v1378 = vpack.c.b16 %v692, %v690
      %v1379 = vpack.c.b16 %v804, %v802
      %v1380 = vpack.c.b16 %v805, %v803
      %v1441 = vunpack.c.l.b16 %v806
      %v1442 = vunpack.c.l.b16 %v807
      %v1443 = vunpack.c.l.b16 %v808
      %v1444 = vunpack.c.l.b16 %v809
      %v1445 = vunpack.c.l.b16 %v810
      %v1446 = vunpack.c.l.b16 %v811
      %v1447 = vunpack.c.l.b16 %v812
      %v1448 = vunpack.c.l.b16 %v813
      %v1449 = vunpack.c.l.b16 %v814
      %v1450 = vunpack.c.l.b16 %v815
      %v1451 = vunpack.c.l.b16 %v816
      %v1452 = vunpack.c.l.b16 %v817
      %v1453 = vunpack.c.l.b16 %v818
      %v1454 = vunpack.c.l.b16 %v819
      %v1455 = vunpack.c.l.b16 %v820
      %v1456 = vunpack.c.l.b16 %v821
      %v1457 = vunpack.c.l.b16 %v822
      %v1458 = vunpack.c.l.b16 %v823
      %v1459 = vunpack.c.l.b16 %v824
      %v1460 = vunpack.c.l.b16 %v825
      %v1461 = vunpack.c.l.b16 %v826
      %v1462 = vunpack.c.l.b16 %v827
      %v1463 = vunpack.c.l.b16 %v828
      %v1464 = vunpack.c.l.b16 %v829
      %v1465 = vunpack.c.l.b16 %v830
      %v1466 = vunpack.c.l.b16 %v831
      %v1467 = vunpack.c.l.b16 %v832
      %v1468 = vunpack.c.l.b16 %v833
      %v1469 = vunpack.c.l.b16 %v834
      %v1470 = vunpack.c.l.b16 %v835
      %v1471 = vunpack.c.l.b16 %v836
      %v1472 = vunpack.c.l.b16 %v837
      %v1473 = vunpack.c.l.b16 %v838
      %v1474 = vunpack.c.l.b16 %v839
      %v1475 = vunpack.c.l.b16 %v840
      %v1476 = vunpack.c.l.b16 %v841
      %v1477 = vunpack.c.l.b16 %v842
      %v1478 = vunpack.c.l.b16 %v843
      %v1479 = vunpack.c.l.b16 %v844
      %v1480 = vunpack.c.l.b16 %v845
      %v1481 = vunpack.c.l.b16 %v846
      %v1482 = vunpack.c.l.b16 %v847
      %v1483 = vunpack.c.l.b16 %v848
      %v1484 = vunpack.c.l.b16 %v849
      %v1485 = vunpack.c.l.b16 %v850
      %v1486 = vunpack.c.l.b16 %v851
      %v1487 = vunpack.c.l.b16 %v852
      %v1488 = vunpack.c.l.b16 %v853
      %v1489 = vpack.c.b16 %v1442, %v1441
      %v1490 = vpack.c.b16 %v1444, %v1443
      %v1491 = vpack.c.b16 %v1446, %v1445
      %v1492 = vpack.c.b16 %v1448, %v1447
      %v1493 = vpack.c.b16 %v1450, %v1449
      %v1494 = vpack.c.b16 %v1452, %v1451
      %v1495 = vpack.c.b16 %v1454, %v1453
      %v1496 = vpack.c.b16 %v1456, %v1455
      %v1497 = vpack.c.b16 %v1458, %v1457
      %v1498 = vpack.c.b16 %v1460, %v1459
      %v1499 = vpack.c.b16 %v1462, %v1461
      %v1500 = vpack.c.b16 %v1464, %v1463
      %v1501 = vpack.c.b16 %v1466, %v1465
      %v1502 = vpack.c.b16 %v1468, %v1467
      %v1503 = vpack.c.b16 %v1470, %v1469
      %v1504 = vpack.c.b16 %v1472, %v1471
      %v1505 = vpack.c.b16 %v1474, %v1473
      %v1506 = vpack.c.b16 %v1476, %v1475
      %v1507 = vpack.c.b16 %v1478, %v1477
      %v1508 = vpack.c.b16 %v1480, %v1479
      %v1509 = vpack.c.b16 %v1482, %v1481
      %v1510 = vpack.c.b16 %v1484, %v1483
      %v1511 = vpack.c.b16 %v1486, %v1485
      %v1512 = vpack.c.b16 %v1488, %v1487
      %1537 = vmatprep.subr.bf16.mxu0 0
      %1538 = vmatpush1.bf16.msra.mxu0 %v1489
      %1539 = vmatprep.subr.bf16.mxu0 0
      %1540 = vmatpush1.bf16.msra.mxu0 %v1490
      %1541 = vmatprep.subr.bf16.mxu0 0
      %1542 = vmatpush1.bf16.msra.mxu0 %v1491
      %1543 = vmatprep.subr.bf16.mxu0 0
      %1544 = vmatpush1.bf16.msra.mxu0 %v1492
      %1545 = vmatprep.subr.bf16.mxu0 0
      %1546 = vmatpush1.bf16.msra.mxu0 %v1493
      %1547 = vmatprep.subr.bf16.mxu0 0
      %1548 = vmatpush1.bf16.msra.mxu0 %v1494
      %1549 = vmatprep.subr.bf16.mxu0 0
      %1550 = vmatpush1.bf16.msra.mxu0 %v1495
      %1551 = vmatprep.subr.bf16.mxu0 0
      %1552 = vmatpush1.bf16.msra.mxu0 %v1496
      %1553 = vmatprep.subr.bf16.mxu0 0
      %1554 = vmatpush1.bf16.msra.mxu0 %v1497
      %1555 = vmatprep.subr.bf16.mxu0 0
      %1556 = vmatpush1.bf16.msra.mxu0 %v1498
      %1557 = vmatprep.subr.bf16.mxu0 0
      %1558 = vmatpush1.bf16.msra.mxu0 %v1499
      %1559 = vmatprep.subr.bf16.mxu0 0
      %1560 = vmatpush1.bf16.msra.mxu0 %v1500
      %1561 = vmatprep.subr.bf16.mxu0 0
      %1562 = vmatpush1.bf16.msra.mxu0 %v1501
      %1563 = vmatprep.subr.bf16.mxu0 0
      %1564 = vmatpush1.bf16.msra.mxu0 %v1502
      %1565 = vmatprep.subr.bf16.mxu0 0
      %1566 = vmatpush1.bf16.msra.mxu0 %v1503
      %1567 = vmatprep.subr.bf16.mxu0 0
      %1568 = vmatpush1.bf16.msra.mxu0 %v1504
      %1569 = vmatprep.mubr.bf16.mxu0 %v1370
      %1570 = vmatmul.mubr.bf16.gmra.mrb[0].mxu0 %v1369
      %v1571 = vpop.f32.mrb[0].mxu0
      %v1572 = vadd.f32 %v1339, %v1571
      %v1573 = vpop.f32.mrb[0].mxu0
      %v1574 = vpop.f32.mrb[0].mxu0
      %v1575 = vadd.f32 %v1342, %v1574
      %v1576 = vpop.f32.mrb[0].mxu0
      %1577 = vmatprep.mubr.bf16.mxu0 %v1373
      %1578 = vmatmul.mubr.bf16.gmra.mrb[0].mxu0 %v1372
      %v1579 = vpop.f32.mrb[0].mxu0
      %v1580 = vadd.f32 %v1347, %v1579
      %v1581 = vpop.f32.mrb[0].mxu0
      %v1582 = vpop.f32.mrb[0].mxu0
      %v1583 = vadd.f32 %v1350, %v1582
      %v1584 = vpop.f32.mrb[0].mxu0
      %1585 = vmatprep.mubr.bf16.mxu0 %v1376
      %1586 = vmatmul.mubr.bf16.gmra.mrb[0].mxu0 %v1375
      %v1587 = vpop.f32.mrb[0].mxu0
      %v1588 = vadd.f32 %v1355, %v1587
      %v1589 = vpop.f32.mrb[0].mxu0
      %v1590 = vpop.f32.mrb[0].mxu0
      %v1591 = vadd.f32 %v1358, %v1590
      %v1592 = vpop.f32.mrb[0].mxu0
      %1593 = vmatprep.mubr.bf16.mxu0 %v1379
      %1594 = vmatmul.mubr.bf16.gmra.mrb[0].mxu0 %v1378
      %v1595 = vpop.f32.mrb[0].mxu0
      %v1596 = vadd.f32 %v1363, %v1595
      %v1597 = vpop.f32.mrb[0].mxu0
      %v1598 = vpop.f32.mrb[0].mxu0
      %v1599 = vadd.f32 %v1366, %v1598
      %v1600 = vpop.f32.mrb[0].mxu0
      %1601 = vdwg.mxu0
      %1602 = vmatprep.subr.bf16.mxu0 0
      %1603 = vmatpush1.bf16.msra.mxu0 %v1505
      %1604 = vmatprep.subr.bf16.mxu0 0
      %1605 = vmatpush1.bf16.msra.mxu0 %v1506
      %1606 = vmatprep.subr.bf16.mxu0 0
      %1607 = vmatpush1.bf16.msra.mxu0 %v1507
      %1608 = vmatprep.subr.bf16.mxu0 0
      %1609 = vmatpush1.bf16.msra.mxu0 %v1508
      %1610 = vmatprep.subr.bf16.mxu0 0
      %1611 = vmatpush1.bf16.msra.mxu0 %v1509
      %1612 = vmatprep.subr.bf16.mxu0 0
      %1613 = vmatpush1.bf16.msra.mxu0 %v1510
      %1614 = vmatprep.subr.bf16.mxu0 0
      %1615 = vmatpush1.bf16.msra.mxu0 %v1511
      %1616 = vmatprep.subr.bf16.mxu0 0
      %1617 = vmatpush1.bf16.msra.mxu0 %v1512
      %1618 = vmatprep.subr.bf16.mxu0 0
      %1619 = vmatpush1.bf16.msra.mxu0 0
      %1620 = vmatprep.subr.bf16.mxu0 0
      %1621 = vmatpush1.bf16.msra.mxu0 0
      %1622 = vmatprep.subr.bf16.mxu0 0
      %1623 = vmatpush1.bf16.msra.mxu0 0
      %1624 = vmatprep.subr.bf16.mxu0 0
      %1625 = vmatpush1.bf16.msra.mxu0 0
      %1626 = vmatprep.subr.bf16.mxu0 0
      %1627 = vmatpush1.bf16.msra.mxu0 0
      %1628 = vmatprep.subr.bf16.mxu0 0
      %1629 = vmatpush1.bf16.msra.mxu0 0
      %1630 = vmatprep.subr.bf16.mxu0 0
      %1631 = vmatpush1.bf16.msra.mxu0 0
      %1632 = vmatprep.subr.bf16.mxu0 0
      %1633 = vmatpush1.bf16.msra.mxu0 0
      %1634 = vmatprep.mubr.bf16.mxu0 0
      %1635 = vmatmul.mubr.bf16.gmra.mrb[0].mxu0 %v1371
      %v1636 = vpop.f32.mrb[0].mxu0
      %v1637 = vadd.f32 %v1572, %v1636
      %v1638 = vpop.f32.mrb[0].mxu0
      %v1639 = vpop.f32.mrb[0].mxu0
      %v1640 = vadd.f32 %v1575, %v1639
      %v1641 = vpop.f32.mrb[0].mxu0
      %1642 = vmatprep.mubr.bf16.mxu0 0
      %1643 = vmatmul.mubr.bf16.gmra.mrb[0].mxu0 %v1374
      %v1644 = vpop.f32.mrb[0].mxu0
      %v1645 = vadd.f32 %v1580, %v1644
      %v1646 = vpop.f32.mrb[0].mxu0
      %v1647 = vpop.f32.mrb[0].mxu0
      %v1648 = vadd.f32 %v1583, %v1647
      %v1649 = vpop.f32.mrb[0].mxu0
      %1650 = vmatprep.mubr.bf16.mxu0 0
      %1651 = vmatmul.mubr.bf16.gmra.mrb[0].mxu0 %v1377
      %v1652 = vpop.f32.mrb[0].mxu0
      %v1653 = vadd.f32 %v1588, %v1652
      %v1654 = vpop.f32.mrb[0].mxu0
      %v1655 = vpop.f32.mrb[0].mxu0
      %v1656 = vadd.f32 %v1591, %v1655
      %v1657 = vpop.f32.mrb[0].mxu0
      %1658 = vmatprep.mubr.bf16.mxu0 0
      %1659 = vmatmul.mubr.bf16.gmra.mrb[0].mxu0 %v1380
      %v1660 = vpop.f32.mrb[0].mxu0
      %v1661 = vadd.f32 %v1596, %v1660
      %v1662 = vpop.f32.mrb[0].mxu0
      %v1663 = vpop.f32.mrb[0].mxu0
      %v1664 = vadd.f32 %v1599, %v1663
      %v1665 = vpop.f32.mrb[0].mxu0
      %1666 = vdwg.mxu0
      %s1667 = scalar_lea.vmem [#allocation2], 16
      %v1668 = vld [vmem:[%s1667] sm:$0xf]
      %v1669 = vld [vmem:[%s1667 + $0x8] sm:$0xf]
      %v1670 = vld [vmem:[%s1667 + $0x10] sm:$0xf]
      %v1671 = vld [vmem:[%s1667 + $0x18] sm:$0xf]
      %v1672 = vld [vmem:[%s1667 + $0x20] sm:$0xf]
      %v1673 = vld [vmem:[%s1667 + $0x28] sm:$0xf]
      %v1674 = vld [vmem:[%s1667 + $0x30] sm:$0xf]
      %v1675 = vld [vmem:[%s1667 + $0x38] sm:$0xf]
      %v1676 = vld [vmem:[%s1667 + $0x4] sm:$0x1]
      %v1677 = vld [vmem:[%s1667 + $0xc] sm:$0x1]
      %v1678 = vld [vmem:[%s1667 + $0x14] sm:$0x1]
      %v1679 = vld [vmem:[%s1667 + $0x1c] sm:$0x1]
      %v1680 = vld [vmem:[%s1667 + $0x24] sm:$0x1]
      %v1681 = vld [vmem:[%s1667 + $0x2c] sm:$0x1]
      %v1682 = vld [vmem:[%s1667 + $0x34] sm:$0x1]
      %v1683 = vld [vmem:[%s1667 + $0x3c] sm:$0x1]
      %v1684 = vld [vmem:[%s1667] sm:$0xe]
      %v1685 = vld [vmem:[%s1667 + $0x8] sm:$0xe]
      %v1686 = vld [vmem:[%s1667 + $0x10] sm:$0xe]
      %v1687 = vld [vmem:[%s1667 + $0x18] sm:$0xe]
      %v1688 = vld [vmem:[%s1667 + $0x20] sm:$0xe]
      %v1689 = vld [vmem:[%s1667 + $0x28] sm:$0xe]
      %v1690 = vld [vmem:[%s1667 + $0x30] sm:$0xe]
      %v1691 = vld [vmem:[%s1667 + $0x38] sm:$0xe]
      %v1708 = vunpack.c.l.b16 %v1668
      %v1709 = vunpack.c.l.b16 %v1676
      %v1710 = vunpack.c.l.b16 %v1669
      %v1711 = vunpack.c.l.b16 %v1677
      %v1712 = vunpack.c.l.b16 %v1670
      %v1713 = vunpack.c.l.b16 %v1678
      %v1714 = vunpack.c.l.b16 %v1671
      %v1715 = vunpack.c.l.b16 %v1679
      %v1716 = vunpack.c.l.b16 %v1672
      %v1717 = vunpack.c.l.b16 %v1680
      %v1718 = vunpack.c.l.b16 %v1673
      %v1719 = vunpack.c.l.b16 %v1681
      %v1720 = vunpack.c.l.b16 %v1674
      %v1721 = vunpack.c.l.b16 %v1682
      %v1722 = vunpack.c.l.b16 %v1675
      %v1723 = vunpack.c.l.b16 %v1683
      %v1724 = vpack.c.b16 %v1709, %v1708
      %v1725 = vpack.c.b16 %v1711, %v1710
      %v1726 = vpack.c.b16 %v1713, %v1712
      %v1727 = vpack.c.b16 %v1715, %v1714
      %v1728 = vpack.c.b16 %v1717, %v1716
      %v1729 = vpack.c.b16 %v1719, %v1718
      %v1730 = vpack.c.b16 %v1721, %v1720
      %v1731 = vpack.c.b16 %v1723, %v1722
      %v1733 = vshrl.u32 %v1724, 16
      %v1735 = vshll.u32 %v1724, 16
      %v1737 = vrot.slane %v1735, 1
      %v1738 = vor.u32 %v1733, %v1737
      %v1740 = vshrl.u32 %v1725, 16
      %v1742 = vshll.u32 %v1725, 16
      %v1744 = vrot.slane %v1742, 1
      %v1745 = vor.u32 %v1740, %v1744
      %v1747 = vshrl.u32 %v1726, 16
      %v1749 = vshll.u32 %v1726, 16
      %v1751 = vrot.slane %v1749, 1
      %v1752 = vor.u32 %v1747, %v1751
      %v1754 = vshrl.u32 %v1727, 16
      %v1756 = vshll.u32 %v1727, 16
      %v1758 = vrot.slane %v1756, 1
      %v1759 = vor.u32 %v1754, %v1758
      %v1761 = vshrl.u32 %v1728, 16
      %v1763 = vshll.u32 %v1728, 16
      %v1765 = vrot.slane %v1763, 1
      %v1766 = vor.u32 %v1761, %v1765
      %v1768 = vshrl.u32 %v1729, 16
      %v1770 = vshll.u32 %v1729, 16
      %v1772 = vrot.slane %v1770, 1
      %v1773 = vor.u32 %v1768, %v1772
      %v1775 = vshrl.u32 %v1730, 16
      %v1777 = vshll.u32 %v1730, 16
      %v1779 = vrot.slane %v1777, 1
      %v1780 = vor.u32 %v1775, %v1779
      %v1782 = vshrl.u32 %v1731, 16
      %v1784 = vshll.u32 %v1731, 16
      %v1786 = vrot.slane %v1784, 1
      %v1787 = vor.u32 %v1782, %v1786
      %v1796 = vunpack.c.l.b16 %v1684
      %v1797 = vunpack.c.l.b16 %v1685
      %v1798 = vunpack.c.l.b16 %v1686
      %v1799 = vunpack.c.l.b16 %v1687
      %v1800 = vunpack.c.l.b16 %v1688
      %v1801 = vunpack.c.l.b16 %v1689
      %v1802 = vunpack.c.l.b16 %v1690
      %v1803 = vunpack.c.l.b16 %v1691
      %v1804 = vpack.c.b16 %v1709, %v1796
      %v1805 = vpack.c.b16 %v1711, %v1797
      %v1806 = vpack.c.b16 %v1713, %v1798
      %v1807 = vpack.c.b16 %v1715, %v1799
      %v1808 = vpack.c.b16 %v1717, %v1800
      %v1809 = vpack.c.b16 %v1719, %v1801
      %v1810 = vpack.c.b16 %v1721, %v1802
      %v1811 = vpack.c.b16 %v1723, %v1803
      %v1812 = vrot.slane %v1804, 1
      %v1813 = vrot.slane %v1805, 1
      %v1814 = vrot.slane %v1806, 1
      %v1815 = vrot.slane %v1807, 1
      %v1816 = vrot.slane %v1808, 1
      %v1817 = vrot.slane %v1809, 1
      %v1818 = vrot.slane %v1810, 1
      %v1819 = vrot.slane %v1811, 1
      %v1820 = vunpack.c.l.b16 %v1738
      %v1821 = vunpack.c.l.b16 %v1812
      %v1822 = vunpack.c.l.b16 %v1745
      %v1823 = vunpack.c.l.b16 %v1813
      %v1824 = vunpack.c.l.b16 %v1752
      %v1825 = vunpack.c.l.b16 %v1814
      %v1826 = vunpack.c.l.b16 %v1759
      %v1827 = vunpack.c.l.b16 %v1815
      %v1828 = vunpack.c.l.b16 %v1766
      %v1829 = vunpack.c.l.b16 %v1816
      %v1830 = vunpack.c.l.b16 %v1773
      %v1831 = vunpack.c.l.b16 %v1817
      %v1832 = vunpack.c.l.b16 %v1780
      %v1833 = vunpack.c.l.b16 %v1818
      %v1834 = vunpack.c.l.b16 %v1787
      %v1835 = vunpack.c.l.b16 %v1819
      %s1836 = scalar_lea.vmem %s3, 384
      %v1837 = vld [vmem:[%s1836] sm:$0xf]
      %v1838 = vld [vmem:[%s1836 + $0x4] sm:$0xf]
      %v1839 = vld [vmem:[%s1836 + $0x8] sm:$0xf]
      %v1840 = vld [vmem:[%s1836 + $0xc] sm:$0xf]
      %v1841 = vld [vmem:[%s1836 + $0x10] sm:$0xf]
      %v1842 = vld [vmem:[%s1836 + $0x14] sm:$0xf]
      %v1843 = vld [vmem:[%s1836 + $0x18] sm:$0xf]
      %v1844 = vld [vmem:[%s1836 + $0x1c] sm:$0xf]
      %v1845 = vld [vmem:[%s1836 + $0x20] sm:$0xf]
      %v1846 = vld [vmem:[%s1836 + $0x24] sm:$0xf]
      %v1847 = vld [vmem:[%s1836 + $0x28] sm:$0xf]
      %v1848 = vld [vmem:[%s1836 + $0x2c] sm:$0xf]
      %v1849 = vld [vmem:[%s1836 + $0x30] sm:$0xf]
      %v1850 = vld [vmem:[%s1836 + $0x34] sm:$0xf]
      %v1851 = vld [vmem:[%s1836 + $0x38] sm:$0xf]
      %v1852 = vld [vmem:[%s1836 + $0x3c] sm:$0xf]
      %v1853 = vld [vmem:[%s1836 + $0x40] sm:$0xf]
      %v1854 = vld [vmem:[%s1836 + $0x44] sm:$0xf]
      %v1855 = vld [vmem:[%s1836 + $0x48] sm:$0xf]
      %v1856 = vld [vmem:[%s1836 + $0x4c] sm:$0xf]
      %v1857 = vld [vmem:[%s1836 + $0x50] sm:$0xf]
      %v1858 = vld [vmem:[%s1836 + $0x54] sm:$0xf]
      %v1859 = vld [vmem:[%s1836 + $0x58] sm:$0xf]
      %v1860 = vld [vmem:[%s1836 + $0x5c] sm:$0xf]
      %v1861 = vld [vmem:[%s1836 + $0x60] sm:$0xf]
      %v1862 = vld [vmem:[%s1836 + $0x64] sm:$0xf]
      %v1863 = vld [vmem:[%s1836 + $0x68] sm:$0xf]
      %v1864 = vld [vmem:[%s1836 + $0x6c] sm:$0xf]
      %v1865 = vld [vmem:[%s1836 + $0x70] sm:$0xf]
      %v1866 = vld [vmem:[%s1836 + $0x74] sm:$0xf]
      %v1867 = vld [vmem:[%s1836 + $0x78] sm:$0xf]
      %v1868 = vld [vmem:[%s1836 + $0x7c] sm:$0xf]
      %v1869 = vld [vmem:[%s1836 + $0x80] sm:$0xf]
      %v1870 = vld [vmem:[%s1836 + $0x84] sm:$0xf]
      %v1871 = vld [vmem:[%s1836 + $0x88] sm:$0xf]
      %v1872 = vld [vmem:[%s1836 + $0x8c] sm:$0xf]
      %v1873 = vld [vmem:[%s1836 + $0x90] sm:$0xf]
      %v1874 = vld [vmem:[%s1836 + $0x94] sm:$0xf]
      %v1875 = vld [vmem:[%s1836 + $0x98] sm:$0xf]
      %v1876 = vld [vmem:[%s1836 + $0x9c] sm:$0xf]
      %v1877 = vld [vmem:[%s1836 + $0xa0] sm:$0xf]
      %v1878 = vld [vmem:[%s1836 + $0xa4] sm:$0xf]
      %v1879 = vld [vmem:[%s1836 + $0xa8] sm:$0xf]
      %v1880 = vld [vmem:[%s1836 + $0xac] sm:$0xf]
      %v1881 = vld [vmem:[%s1836 + $0xb0] sm:$0xf]
      %v1882 = vld [vmem:[%s1836 + $0xb4] sm:$0xf]
      %v1883 = vld [vmem:[%s1836 + $0xb8] sm:$0xf]
      %v1884 = vld [vmem:[%s1836 + $0xbc] sm:$0xf]
      %v1885 = vpack.c.b16 %v1710, %v1708
      %v1886 = vpack.c.b16 %v1822, %v1820
      %v1887 = vpack.c.b16 %v1823, %v1821
      %v1888 = vpack.c.b16 %v1714, %v1712
      %v1889 = vpack.c.b16 %v1826, %v1824
      %v1890 = vpack.c.b16 %v1827, %v1825
      %v1891 = vpack.c.b16 %v1718, %v1716
      %v1892 = vpack.c.b16 %v1830, %v1828
      %v1893 = vpack.c.b16 %v1831, %v1829
      %v1894 = vpack.c.b16 %v1722, %v1720
      %v1895 = vpack.c.b16 %v1834, %v1832
      %v1896 = vpack.c.b16 %v1835, %v1833
      %v1957 = vunpack.c.l.b16 %v1837
      %v1958 = vunpack.c.l.b16 %v1838
      %v1959 = vunpack.c.l.b16 %v1839
      %v1960 = vunpack.c.l.b16 %v1840
      %v1961 = vunpack.c.l.b16 %v1841
      %v1962 = vunpack.c.l.b16 %v1842
      %v1963 = vunpack.c.l.b16 %v1843
      %v1964 = vunpack.c.l.b16 %v1844
      %v1965 = vunpack.c.l.b16 %v1845
      %v1966 = vunpack.c.l.b16 %v1846
      %v1967 = vunpack.c.l.b16 %v1847
      %v1968 = vunpack.c.l.b16 %v1848
      %v1969 = vunpack.c.l.b16 %v1849
      %v1970 = vunpack.c.l.b16 %v1850
      %v1971 = vunpack.c.l.b16 %v1851
      %v1972 = vunpack.c.l.b16 %v1852
      %v1973 = vunpack.c.l.b16 %v1853
      %v1974 = vunpack.c.l.b16 %v1854
      %v1975 = vunpack.c.l.b16 %v1855
      %v1976 = vunpack.c.l.b16 %v1856
      %v1977 = vunpack.c.l.b16 %v1857
      %v1978 = vunpack.c.l.b16 %v1858
      %v1979 = vunpack.c.l.b16 %v1859
      %v1980 = vunpack.c.l.b16 %v1860
      %v1981 = vunpack.c.l.b16 %v1861
      %v1982 = vunpack.c.l.b16 %v1862
      %v1983 = vunpack.c.l.b16 %v1863
      %v1984 = vunpack.c.l.b16 %v1864
      %v1985 = vunpack.c.l.b16 %v1865
      %v1986 = vunpack.c.l.b16 %v1866
      %v1987 = vunpack.c.l.b16 %v1867
      %v1988 = vunpack.c.l.b16 %v1868
      %v1989 = vunpack.c.l.b16 %v1869
      %v1990 = vunpack.c.l.b16 %v1870
      %v1991 = vunpack.c.l.b16 %v1871
      %v1992 = vunpack.c.l.b16 %v1872
      %v1993 = vunpack.c.l.b16 %v1873
      %v1994 = vunpack.c.l.b16 %v1874
      %v1995 = vunpack.c.l.b16 %v1875
      %v1996 = vunpack.c.l.b16 %v1876
      %v1997 = vunpack.c.l.b16 %v1877
      %v1998 = vunpack.c.l.b16 %v1878
      %v1999 = vunpack.c.l.b16 %v1879
      %v2000 = vunpack.c.l.b16 %v1880
      %v2001 = vunpack.c.l.b16 %v1881
      %v2002 = vunpack.c.l.b16 %v1882
      %v2003 = vunpack.c.l.b16 %v1883
      %v2004 = vunpack.c.l.b16 %v1884
      %v2005 = vpack.c.b16 %v1958, %v1957
      %v2006 = vpack.c.b16 %v1960, %v1959
      %v2007 = vpack.c.b16 %v1962, %v1961
      %v2008 = vpack.c.b16 %v1964, %v1963
      %v2009 = vpack.c.b16 %v1966, %v1965
      %v2010 = vpack.c.b16 %v1968, %v1967
      %v2011 = vpack.c.b16 %v1970, %v1969
      %v2012 = vpack.c.b16 %v1972, %v1971
      %v2013 = vpack.c.b16 %v1974, %v1973
      %v2014 = vpack.c.b16 %v1976, %v1975
      %v2015 = vpack.c.b16 %v1978, %v1977
      %v2016 = vpack.c.b16 %v1980, %v1979
      %v2017 = vpack.c.b16 %v1982, %v1981
      %v2018 = vpack.c.b16 %v1984, %v1983
      %v2019 = vpack.c.b16 %v1986, %v1985
      %v2020 = vpack.c.b16 %v1988, %v1987
      %v2021 = vpack.c.b16 %v1990, %v1989
      %v2022 = vpack.c.b16 %v1992, %v1991
      %v2023 = vpack.c.b16 %v1994, %v1993
      %v2024 = vpack.c.b16 %v1996, %v1995
      %v2025 = vpack.c.b16 %v1998, %v1997
      %v2026 = vpack.c.b16 %v2000, %v1999
      %v2027 = vpack.c.b16 %v2002, %v2001
      %v2028 = vpack.c.b16 %v2004, %v2003
      %2053 = vmatprep.subr.bf16.mxu0 0
      %2054 = vmatpush1.bf16.msra.mxu0 %v2005
      %2055 = vmatprep.subr.bf16.mxu0 0
      %2056 = vmatpush1.bf16.msra.mxu0 %v2006
      %2057 = vmatprep.subr.bf16.mxu0 0
      %2058 = vmatpush1.bf16.msra.mxu0 %v2007
      %2059 = vmatprep.subr.bf16.mxu0 0
      %2060 = vmatpush1.bf16.msra.mxu0 %v2008
      %2061 = vmatprep.subr.bf16.mxu0 0
      %2062 = vmatpush1.bf16.msra.mxu0 %v2009
      %2063 = vmatprep.subr.bf16.mxu0 0
      %2064 = vmatpush1.bf16.msra.mxu0 %v2010
      %2065 = vmatprep.subr.bf16.mxu0 0
      %2066 = vmatpush1.bf16.msra.mxu0 %v2011
      %2067 = vmatprep.subr.bf16.mxu0 0
      %2068 = vmatpush1.bf16.msra.mxu0 %v2012
      %2069 = vmatprep.subr.bf16.mxu0 0
      %2070 = vmatpush1.bf16.msra.mxu0 %v2013
      %2071 = vmatprep.subr.bf16.mxu0 0
      %2072 = vmatpush1.bf16.msra.mxu0 %v2014
      %2073 = vmatprep.subr.bf16.mxu0 0
      %2074 = vmatpush1.bf16.msra.mxu0 %v2015
      %2075 = vmatprep.subr.bf16.mxu0 0
      %2076 = vmatpush1.bf16.msra.mxu0 %v2016
      %2077 = vmatprep.subr.bf16.mxu0 0
      %2078 = vmatpush1.bf16.msra.mxu0 %v2017
      %2079 = vmatprep.subr.bf16.mxu0 0
      %2080 = vmatpush1.bf16.msra.mxu0 %v2018
      %2081 = vmatprep.subr.bf16.mxu0 0
      %2082 = vmatpush1.bf16.msra.mxu0 %v2019
      %2083 = vmatprep.subr.bf16.mxu0 0
      %2084 = vmatpush1.bf16.msra.mxu0 %v2020
      %2085 = vmatprep.mubr.bf16.mxu0 %v1886
      %2086 = vmatmul.mubr.bf16.gmra.mrb[0].mxu0 %v1885
      %v2087 = vpop.f32.mrb[0].mxu0
      %v2088 = vadd.f32 0.0, %v2087
      %v2089 = vpop.f32.mrb[0].mxu0
      %v2090 = vpop.f32.mrb[0].mxu0
      %v2091 = vadd.f32 0.0, %v2090
      %v2092 = vpop.f32.mrb[0].mxu0
      %2093 = vmatprep.mubr.bf16.mxu0 %v1889
      %2094 = vmatmul.mubr.bf16.gmra.mrb[0].mxu0 %v1888
      %v2095 = vpop.f32.mrb[0].mxu0
      %v2096 = vadd.f32 0.0, %v2095
      %v2097 = vpop.f32.mrb[0].mxu0
      %v2098 = vpop.f32.mrb[0].mxu0
      %v2099 = vadd.f32 0.0, %v2098
      %v2100 = vpop.f32.mrb[0].mxu0
      %2101 = vmatprep.mubr.bf16.mxu0 %v1892
      %2102 = vmatmul.mubr.bf16.gmra.mrb[0].mxu0 %v1891
      %v2103 = vpop.f32.mrb[0].mxu0
      %v2104 = vadd.f32 0.0, %v2103
      %v2105 = vpop.f32.mrb[0].mxu0
      %v2106 = vpop.f32.mrb[0].mxu0
      %v2107 = vadd.f32 0.0, %v2106
      %v2108 = vpop.f32.mrb[0].mxu0
      %2109 = vmatprep.mubr.bf16.mxu0 %v1895
      %2110 = vmatmul.mubr.bf16.gmra.mrb[0].mxu0 %v1894
      %v2111 = vpop.f32.mrb[0].mxu0
      %v2112 = vadd.f32 0.0, %v2111
      %v2113 = vpop.f32.mrb[0].mxu0
      %v2114 = vpop.f32.mrb[0].mxu0
      %v2115 = vadd.f32 0.0, %v2114
      %v2116 = vpop.f32.mrb[0].mxu0
      %2117 = vdwg.mxu0
      %2118 = vmatprep.subr.bf16.mxu0 0
      %2119 = vmatpush1.bf16.msra.mxu0 %v2021
      %2120 = vmatprep.subr.bf16.mxu0 0
      %2121 = vmatpush1.bf16.msra.mxu0 %v2022
      %2122 = vmatprep.subr.bf16.mxu0 0
      %2123 = vmatpush1.bf16.msra.mxu0 %v2023
      %2124 = vmatprep.subr.bf16.mxu0 0
      %2125 = vmatpush1.bf16.msra.mxu0 %v2024
      %2126 = vmatprep.subr.bf16.mxu0 0
      %2127 = vmatpush1.bf16.msra.mxu0 %v2025
      %2128 = vmatprep.subr.bf16.mxu0 0
      %2129 = vmatpush1.bf16.msra.mxu0 %v2026
      %2130 = vmatprep.subr.bf16.mxu0 0
      %2131 = vmatpush1.bf16.msra.mxu0 %v2027
      %2132 = vmatprep.subr.bf16.mxu0 0
      %2133 = vmatpush1.bf16.msra.mxu0 %v2028
      %2134 = vmatprep.subr.bf16.mxu0 0
      %2135 = vmatpush1.bf16.msra.mxu0 0
      %2136 = vmatprep.subr.bf16.mxu0 0
      %2137 = vmatpush1.bf16.msra.mxu0 0
      %2138 = vmatprep.subr.bf16.mxu0 0
      %2139 = vmatpush1.bf16.msra.mxu0 0
      %2140 = vmatprep.subr.bf16.mxu0 0
      %2141 = vmatpush1.bf16.msra.mxu0 0
      %2142 = vmatprep.subr.bf16.mxu0 0
      %2143 = vmatpush1.bf16.msra.mxu0 0
      %2144 = vmatprep.subr.bf16.mxu0 0
      %2145 = vmatpush1.bf16.msra.mxu0 0
      %2146 = vmatprep.subr.bf16.mxu0 0
      %2147 = vmatpush1.bf16.msra.mxu0 0
      %2148 = vmatprep.subr.bf16.mxu0 0
      %2149 = vmatpush1.bf16.msra.mxu0 0
      %2150 = vmatprep.mubr.bf16.mxu0 0
      %2151 = vmatmul.mubr.bf16.gmra.mrb[0].mxu0 %v1887
      %v2152 = vpop.f32.mrb[0].mxu0
      %v2153 = vadd.f32 %v2088, %v2152
      %v2154 = vpop.f32.mrb[0].mxu0
      %v2155 = vpop.f32.mrb[0].mxu0
      %v2156 = vadd.f32 %v2091, %v2155
      %v2157 = vpop.f32.mrb[0].mxu0
      %2158 = vmatprep.mubr.bf16.mxu0 0
      %2159 = vmatmul.mubr.bf16.gmra.mrb[0].mxu0 %v1890
      %v2160 = vpop.f32.mrb[0].mxu0
      %v2161 = vadd.f32 %v2096, %v2160
      %v2162 = vpop.f32.mrb[0].mxu0
      %v2163 = vpop.f32.mrb[0].mxu0
      %v2164 = vadd.f32 %v2099, %v2163
      %v2165 = vpop.f32.mrb[0].mxu0
      %2166 = vmatprep.mubr.bf16.mxu0 0
      %2167 = vmatmul.mubr.bf16.gmra.mrb[0].mxu0 %v1893
      %v2168 = vpop.f32.mrb[0].mxu0
      %v2169 = vadd.f32 %v2104, %v2168
      %v2170 = vpop.f32.mrb[0].mxu0
      %v2171 = vpop.f32.mrb[0].mxu0
      %v2172 = vadd.f32 %v2107, %v2171
      %v2173 = vpop.f32.mrb[0].mxu0
      %2174 = vmatprep.mubr.bf16.mxu0 0
      %2175 = vmatmul.mubr.bf16.gmra.mrb[0].mxu0 %v1896
      %v2176 = vpop.f32.mrb[0].mxu0
      %v2177 = vadd.f32 %v2112, %v2176
      %v2178 = vpop.f32.mrb[0].mxu0
      %v2179 = vpop.f32.mrb[0].mxu0
      %v2180 = vadd.f32 %v2115, %v2179
      %v2181 = vpop.f32.mrb[0].mxu0
      %2182 = vdwg.mxu0
      %v2183 = vadd.f32 %v1637, %v2153
      %v2184 = vadd.f32 %v1640, %v2156
      %v2185 = vadd.f32 %v1645, %v2161
      %v2186 = vadd.f32 %v1648, %v2164
      %v2187 = vadd.f32 %v1653, %v2169
      %v2188 = vadd.f32 %v1656, %v2172
      %v2189 = vadd.f32 %v1661, %v2177
      %v2190 = vadd.f32 %v1664, %v2180
      %2191 = vst [vmem:[%s294] sm:$0xff] %v2183
      %2192 = vst [vmem:[%s294 + $0x8] sm:$0xff] %v2184
      %2193 = vst [vmem:[%s294 + $0x10] sm:$0xff] %v2185
      %2194 = vst [vmem:[%s294 + $0x18] sm:$0xff] %v2186
      %2195 = vst [vmem:[%s294 + $0x20] sm:$0xff] %v2187
      %2196 = vst [vmem:[%s294 + $0x28] sm:$0xff] %v2188
      %2197 = vst [vmem:[%s294 + $0x30] sm:$0xff] %v2189
      %2198 = vst [vmem:[%s294 + $0x38] sm:$0xff] %v2190
      %v2199 = vadd.f32 %v2183, %v2184
      %v2200 = vadd.f32 %v2199, %v2185
      %v2201 = vadd.f32 %v2200, %v2186
      %v2202 = vadd.f32 %v2201, %v2187
      %v2203 = vadd.f32 %v2202, %v2188
      %v2204 = vadd.f32 %v2203, %v2189
      %v2205 = vadd.f32 %v2204, %v2190
      %v2206 = vrot.slane %v2205, 4
      %v2207 = vadd.f32 %v2205, %v2206
      %v2208 = vrot.slane %v2207, 2
      %v2209 = vadd.f32 %v2207, %v2208
      %v2210 = vrot.slane %v2209, 1
      %v2211 = vadd.f32 %v2209, %v2210
      %2212 = vst [vmem:[%s301] sm:$0x1] %v2211
      %v2213 = vmul.f32 %v2183, %v2183
      %v2214 = vmul.f32 %v2184, %v2184
      %v2215 = vmul.f32 %v2185, %v2185
      %v2216 = vmul.f32 %v2186, %v2186
      %v2217 = vmul.f32 %v2187, %v2187
      %v2218 = vmul.f32 %v2188, %v2188
      %v2219 = vmul.f32 %v2189, %v2189
      %v2220 = vmul.f32 %v2190, %v2190
      %v2221 = vadd.f32 %v2213, %v2214
      %v2222 = vadd.f32 %v2221, %v2215
      %v2223 = vadd.f32 %v2222, %v2216
      %v2224 = vadd.f32 %v2223, %v2217
      %v2225 = vadd.f32 %v2224, %v2218
      %v2226 = vadd.f32 %v2225, %v2219
      %v2227 = vadd.f32 %v2226, %v2220
      %v2228 = vrot.slane %v2227, 4
      %v2229 = vadd.f32 %v2227, %v2228
      %v2230 = vrot.slane %v2229, 2
      %v2231 = vadd.f32 %v2229, %v2230
      %v2232 = vrot.slane %v2231, 1
      %v2233 = vadd.f32 %v2231, %v2232
      %2234 = vst [vmem:[%s307] sm:$0x1] %v2233
      %s2235 = smul.u32 8, %s23
      %p2236 = scmp.lt.s32.totalorder %s22, 1
      %s2237 = scalar_select %p2236, %s22, 1
      %p2238 = scmp.lt.s32.totalorder %s2235, 7
      %s2239 = scalar_select %p2238, %s2235, 7
      %s2240 = smul.addr %s2237, 8
      %s2241 = sadd.s32 %s2239, %s2240
      %s2242 = smul.addr %s2241, 8
      %s2243 = scalar_lea.vmem %s4, %s2242
      %p2244 = scmp.lt.s32.totalorder %s22, 1
      %s2245 = scalar_select %p2244, %s22, 1
      %p2246 = scmp.lt.s32.totalorder %s23, 0
      %s2247 = scalar_select %p2246, %s23, 0
      %s2248 = sadd.s32 %s2247, %s2245
      %s2249 = scalar_lea.vmem %s5, %s2248
      %p2250 = scmp.lt.s32.totalorder %s22, 1
      %s2251 = scalar_select %p2250, %s22, 1
      %p2252 = scmp.lt.s32.totalorder %s23, 0
      %s2253 = scalar_select %p2252, %s23, 0
      %s2254 = sadd.s32 %s2253, %s2251
      %s2255 = scalar_lea.vmem %s6, %s2254
      // Predicated region
      $region53: #{residual_block_forward.4} parent=35 // pred_check
        %p2256 = pneg %p139
      $region54: #{residual_block_forward.4} parent=35 // pred_check_branch
        %2258 = sbr.rel (%p2256) target = $region56
      $region55: #{residual_block_forward.4} parent=35 // pred_region
        %s2259 = smul.u32 8, %s23
      $region56: #{residual_block_forward.4} parent=35 // pred_fallthru
        _
      // Predicated region
      $region57: #{residual_block_forward.4} parent=35 // pred_check
        %p2260 = pneg %p167
      $region58: #{residual_block_forward.4} parent=35 // pred_check_branch
        %2262 = sbr.rel (%p2260) target = $region60
      $region59: #{residual_block_forward.4} parent=35 // pred_region
        _
      $region60: #{residual_block_forward.4} parent=35 // pred_fallthru
        _
      // Predicated region
      $region61: #{residual_block_forward.4} parent=35 // pred_check
        %p2263 = pneg %p195
      $region62: #{residual_block_forward.4} parent=35 // pred_check_branch
        %2265 = sbr.rel (%p2263) target = $region64
      $region63: #{residual_block_forward.4} parent=35 // pred_region
        _
      $region64: #{residual_block_forward.4} parent=35 // pred_fallthru
        _
    $region36: #{residual_block_forward.4} parent=5 // pred_fallthru
      _
    %p2266 = scmp.le.s32.totalorder 2, %s13
    // Predicated region
    $region65: #{residual_block_forward.4} parent=5 // pred_check
      %p2267 = pneg %p2266
    $region66: #{residual_block_forward.4} parent=5 // pred_check_branch
      %2269 = sbr.rel (%p2267) target = $region68
    $region67: #{residual_block_forward.4} parent=5 // pred_region
      %s2270 = ssub.s32 %s13, 2
      // Predicated region
      $region69: #{residual_block_forward.4} parent=67 // pred_check
        %p2271 = pneg %p145
      $region70: #{residual_block_forward.4} parent=67 // pred_check_branch
        %2273 = sbr.rel (%p2271) target = $region72
      $region71: #{residual_block_forward.4} parent=67 // pred_region
        %s2274 = smul.u32 8, %s25
        %p2275 = scmp.lt.s32.totalorder %s24, 1
        %s2276 = scalar_select %p2275, %s24, 1
        %p2277 = scmp.lt.s32.totalorder %s2274, 7
        %s2278 = scalar_select %p2277, %s2274, 7
        %s2279 = smul.addr %s2276, 8
        %s2280 = sadd.s32 %s2278, %s2279
        %s2281 = smul.addr %s2280, 8
        %s2282 = scalar_lea.vmem %s4, %s2281
      $region72: #{residual_block_forward.4} parent=67 // pred_fallthru
        _
      // Predicated region
      $region73: #{residual_block_forward.4} parent=67 // pred_check
        %p2283 = pneg %p173
      $region74: #{residual_block_forward.4} parent=67 // pred_check_branch
        %2285 = sbr.rel (%p2283) target = $region76
      $region75: #{residual_block_forward.4} parent=67 // pred_region
        %p2286 = scmp.lt.s32.totalorder %s24, 1
        %s2287 = scalar_select %p2286, %s24, 1
        %p2288 = scmp.lt.s32.totalorder %s25, 0
        %s2289 = scalar_select %p2288, %s25, 0
        %s2290 = sadd.s32 %s2289, %s2287
        %s2291 = scalar_lea.vmem %s5, %s2290
      $region76: #{residual_block_forward.4} parent=67 // pred_fallthru
        _
      // Predicated region
      $region77: #{residual_block_forward.4} parent=67 // pred_check
        %p2292 = pneg %p201
      $region78: #{residual_block_forward.4} parent=67 // pred_check_branch
        %2294 = sbr.rel (%p2292) target = $region80
      $region79: #{residual_block_forward.4} parent=67 // pred_region
        %p2295 = scmp.lt.s32.totalorder %s24, 1
        %s2296 = scalar_select %p2295, %s24, 1
        %p2297 = scmp.lt.s32.totalorder %s25, 0
        %s2298 = scalar_select %p2297, %s25, 0
        %s2299 = sadd.s32 %s2298, %s2296
        %s2300 = scalar_lea.vmem %s6, %s2299
      $region80: #{residual_block_forward.4} parent=67 // pred_fallthru
        _
    $region68: #{residual_block_forward.4} parent=5 // pred_fallthru
      _
  $region6: #{residual_block_forward.4} parent=0 // loop_footer
    %s17 = sadd.s32 1, %s13
  $region7: #{residual_block_forward.4} parent=0 // loop_footer_branch
    %12 = sbr.rel target = $region3
  $region8: #{residual_block_forward.4} parent=0 // loop_exit
    _

</llo_original>
